<compile_context>
chip_gen: v7x
topology: tpu7x:2x2x1
jax: 0.10.0
libtpu: 0.0.40
codegen_flags: <defaults>
</compile_context>

<pallas_src>
import functools

import jax
import jax.numpy as jnp
from jax.experimental import pallas as pl
from jax.experimental.pallas import tpu as pltpu

LANE = 128

_MM_PARAMS = pltpu.CompilerParams(
    dimension_semantics=("parallel",),
    vmem_limit_bytes=32 * 1024 * 1024,
)
_SEQ_PARAMS = pltpu.CompilerParams(
    dimension_semantics=("arbitrary",),       # accumulator over edge chunks
    vmem_limit_bytes=32 * 1024 * 1024,
)


# ------------------------------------------------------------------ helpers
def _round_up(x, m):
    return (x + m - 1) // m * m


def _pad2(a, rows, cols):
    return jnp.pad(a, ((0, rows - a.shape[0]), (0, cols - a.shape[1])))


def _tile(n, cap=512):
    """Tile size: multiple of 8, capped (bigger tiles amortize per-step overhead)."""
    return max(8, min(cap, _round_up(max(n, 1), 8)))


# ------------------------------------------------------------------ matmul kernels
def _mm_bias_kernel(x_ref, w_ref, b_ref, o_ref):
    acc = jnp.dot(x_ref[...].astype(jnp.bfloat16), w_ref[...].astype(jnp.bfloat16),
                  preferred_element_type=jnp.float32)
    o_ref[...] = (acc + b_ref[...]).astype(o_ref.dtype)


def _mm_kernel(x_ref, w_ref, o_ref):
    o_ref[...] = jnp.dot(x_ref[...].astype(jnp.bfloat16), w_ref[...].astype(jnp.bfloat16),
                         preferred_element_type=jnp.float32).astype(o_ref.dtype)


def pallas_matmul(x, w, b=None, *, row_tile, out_dtype=jnp.float32):
    """Row-tiled matmul, bf16 MXU operands cast in-kernel, f32 accumulation."""
    m, k = x.shape
    n = w.shape[1]
    assert m % row_tile == 0
    grid = (m // row_tile,)
    x_spec = pl.BlockSpec((row_tile, k), lambda i: (i, 0))
    w_spec = pl.BlockSpec((k, n), lambda i: (0, 0))
    o_spec = pl.BlockSpec((row_tile, n), lambda i: (i, 0))
    out_shape = jax.ShapeDtypeStruct((m, n), out_dtype)
    if b is None:
        return pl.pallas_call(_mm_kernel, out_shape=out_shape, grid=grid,
                              in_specs=[x_spec, w_spec], out_specs=o_spec,
                              compiler_params=_MM_PARAMS)(x, w)
    b_spec = pl.BlockSpec((1, n), lambda i: (0, 0))
    return pl.pallas_call(_mm_bias_kernel, out_shape=out_shape, grid=grid,
                          in_specs=[x_spec, w_spec, b_spec], out_specs=o_spec,
                          compiler_params=_MM_PARAMS)(x, w, b)


# ------------------------------------------------------------------ fused GMM layer
def _gmm_layer_kernel(cb_ref, rows_ref,                              # scalar prefetch (SMEM)
                      pseudo_ref, col_ref, a_ref, b_ref, c_ref,
                      ppw_ref, ppb_ref, rsel_ref, shift_ref,
                      *rest, te, residual):
    if residual:
        hin_ref, hproj_ref, out_ref, gbuf, gsem, acc_ref = rest
    else:
        hproj_ref, out_ref, gbuf, gsem, acc_ref = rest
        hin_ref = None

    j = pl.program_id(0)
    n_chunks = pl.num_programs(0)
    tm = acc_ref.shape[0]
    nb = cb_ref[j]                                  # destination node block of this chunk
    slot = jax.lax.rem(j, 2)

    # ---- fused gather of source-node projections: one contiguous-row DMA per edge,
    #      double-buffered across grid steps (prefetch chunk j+1 while computing j).
    def issue_gather(chunk, slot_):
        base = chunk * te

        @pl.loop(0, te)
        def _(k):
            pltpu.make_async_copy(hproj_ref.at[rows_ref[base + k]],
                                  gbuf.at[slot_, k], gsem.at[slot_]).start()

    @pl.when(j == 0)
    def _():
        issue_gather(0, 0)                          # prime the pipeline

    @pl.loop(0, te)                                 # wait for this chunk's rows
    def _(k):
        pltpu.make_async_copy(hproj_ref.at[0], gbuf.at[slot, k],
                              gsem.at[slot]).wait()

    @pl.when(j + 1 < n_chunks)                      # prefetch next chunk's rows
    def _():
        issue_gather(j + 1, 1 - slot)

    # ---- init the destination-block accumulator on that block's first chunk
    prev = cb_ref[jnp.maximum(j - 1, 0)]
    is_first = jnp.logical_or(j == 0, nb != prev)

    @pl.when(is_first)
    def _():
        acc_ref[...] = jnp.zeros_like(acc_ref)

    # ---- edge messages: pseudo proj -> Gaussian weights (constants folded) -> weighted src
    ps = pseudo_ref[...]                                              # (te, 2)
    u = jnp.tanh(jnp.dot(ps, ppw_ref[...], preferred_element_type=jnp.float32)
                 + ppb_ref[...])                                      # (te, dim)
    logit = (jnp.dot(u * u, a_ref[...], preferred_element_type=jnp.float32)
             + jnp.dot(u, b_ref[...], preferred_element_type=jnp.float32)
             + c_ref[...])                                            # (te, kd_p)
    w = jnp.exp(logit)                                                # EUP exp
    weighted = (w * gbuf[slot]).astype(jnp.bfloat16)                  # (te, kd_p)

    # ---- scatter-free segment-sum: local one-hot over this node block (padding edges
    #      carry col = -1 and vanish here), accumulated on the MXU in f32.
    colv = col_ref[0:1, :]                                            # (1, te) int32
    dst = jax.lax.broadcasted_iota(jnp.int32, (tm, te), 0) + nb * tm
    onehot = (dst == colv).astype(jnp.bfloat16)                       # (tm, te)
    acc_ref[...] += jnp.dot(onehot, weighted, preferred_element_type=jnp.float32)

    # ---- finalize: fold K kernels (+BN scale), shift, ReLU, residual, store bf16 once
    is_last = cb_ref[j + 1] != nb

    @pl.when(is_last)
    def _():
        y = jnp.dot(acc_ref[...], rsel_ref[...], preferred_element_type=jnp.float32)
        y = jnp.maximum(y + shift_ref[...], 0.0)
        if residual:
            y = y + hin_ref[...].astype(jnp.float32)
        out_ref[...] = y.astype(out_ref.dtype)


def pallas_gmm_layer(chunk_block, row_ba, pseudo_ba, col8, a_exp, b_exp, c_exp,
                     pp_w, pp_b, r_sel, shift, h_in, h_proj, *, tm, te, residual):
    n_pad, kd_p = h_proj.shape
    d_out_p = r_sel.shape[1]
    n_chunks = pseudo_ba.shape[0] // te
    kern = functools.partial(_gmm_layer_kernel, te=te, residual=residual)

    def emap(j, cb, rw):   # per edge-chunk blocks
        return (j, 0)

    def cmap(j, cb, rw):   # broadcast (constant) blocks
        return (0, 0)

    def nmap(j, cb, rw):   # per destination-node-block blocks (data dependent)
        return (cb[j], 0)

    in_specs = [
        pl.BlockSpec((te, 2), emap),                 # pseudo coords
        pl.BlockSpec((8, te), emap),                 # destination ids (8x replicated rows)
        pl.BlockSpec(a_exp.shape, cmap),
        pl.BlockSpec(b_exp.shape, cmap),
        pl.BlockSpec(c_exp.shape, cmap),
        pl.BlockSpec(pp_w.shape, cmap),
        pl.BlockSpec(pp_b.shape, cmap),
        pl.BlockSpec(r_sel.shape, cmap),
        pl.BlockSpec(shift.shape, cmap),
    ]
    args = [chunk_block, row_ba, pseudo_ba, col8, a_exp, b_exp, c_exp,
            pp_w, pp_b, r_sel, shift]
    if residual:
        in_specs.append(pl.BlockSpec((tm, d_out_p), nmap))
        args.append(h_in)
    in_specs.append(pl.BlockSpec(memory_space=pl.ANY))   # h_proj stays in HBM
    args.append(h_proj)

    grid_spec = pltpu.PrefetchScalarGridSpec(
        num_scalar_prefetch=2,
        grid=(n_chunks,),
        in_specs=in_specs,
        out_specs=pl.BlockSpec((tm, d_out_p), nmap),
        scratch_shapes=[
            pltpu.VMEM((2, te, kd_p), jnp.float32),      # gather double buffer
            pltpu.SemaphoreType.DMA((2,)),
            pltpu.VMEM((tm, kd_p), jnp.float32),         # per-block accumulator
        ],
    )
    return pl.pallas_call(
        kern,
        out_shape=jax.ShapeDtypeStruct((n_pad, d_out_p), jnp.bfloat16),
        grid_spec=grid_spec,
        compiler_params=_SEQ_PARAMS,
    )(*args)


# ------------------------------------------------------------------ parameters
def init_params(key, in_dim, hidden_dim, out_dim, n_kernels, pseudo_dim, n_layers):
    kit = iter(jax.random.split(key, 8 * n_layers + 8))

    def dense(shape, scale=0.1):
        return (scale * jax.random.normal(next(kit), shape)).astype(jnp.float32)

    params = {
        "emb_w": dense((in_dim, hidden_dim)),
        "emb_b": dense((hidden_dim,)),
        "layers": [],
    }
    dims = [hidden_dim] * (n_layers - 1) + [out_dim]
    cur = hidden_dim
    for d_out in dims:
        params["layers"].append({
            "fc_w": dense((cur, n_kernels * d_out)),            # Linear(no bias) -> (K*out)
            "mu": dense((n_kernels, pseudo_dim), scale=1.0),
            "inv_sigma": jnp.ones((n_kernels, pseudo_dim), jnp.float32),
            "pp_w": dense((2, pseudo_dim), scale=1.0),          # pseudo_proj Linear(2, dim)
            "pp_b": dense((pseudo_dim,), scale=0.1),
            "bn_gamma": jnp.ones((1, d_out), jnp.float32),
            "bn_beta": jnp.zeros((1, d_out), jnp.float32),
            "bn_mean": jnp.zeros((1, d_out), jnp.float32),
            "bn_var": jnp.ones((1, d_out), jnp.float32),
        })
        cur = d_out
    return params


# ------------------------------------------------------------------ forward
def monet_forward(feature, edge_index, params, *, n_kernels, residual, batch_norm,
                  bn_eps=1e-5):
    n, in_dim = feature.shape
    e = edge_index.shape[1]
    row = edge_index[0].astype(jnp.int32)
    col = edge_index[1].astype(jnp.int32)

    tm = _tile(n)                      # destination-node block rows
    te = _tile(e)                      # edges per chunk
    n_pad = _round_up(n, tm)
    n_blocks = n_pad // tm

    # ---- embedding_h (bf16 node state, cast + bias fused in-kernel)
    in_p = _round_up(in_dim, 8)
    hid = params["emb_w"].shape[1]
    hid_p = _round_up(hid, LANE)
    feat_p = _pad2(feature.astype(jnp.float32), n_pad, in_p)
    emb_w = _pad2(params["emb_w"], in_p, hid_p)
    emb_b = jnp.pad(params["emb_b"], (0, hid_p - hid)).reshape(1, hid_p)
    h = pallas_matmul(feat_p, emb_w, emb_b, row_tile=tm, out_dtype=jnp.bfloat16)

    # ---- pseudo coordinates (spec: 1/sqrt(degree(row)[row]+1), 1/sqrt(degree(col)[col]+1))
    deg_row = jnp.zeros((n,), jnp.float32).at[row].add(1.0)
    deg_col = jnp.zeros((n,), jnp.float32).at[col].add(1.0)
    pseudo = jnp.stack([1.0 / jnp.sqrt(deg_row[row] + 1.0),
                        1.0 / jnp.sqrt(deg_col[col] + 1.0)], axis=1)      # (E, 2)

    # ---- sort edges by destination and lay them out chunk-aligned per node block
    #      (small per-edge scalar glue in XLA; the heavy tensors never get permuted).
    perm = jnp.argsort(col)
    col_s, row_s, pseudo_s = col[perm], row[perm], pseudo[perm]
    bounds = jnp.arange(n_blocks + 1, dtype=jnp.int32) * tm
    off = jnp.searchsorted(col_s, bounds).astype(jnp.int32)
    cnt = off[1:] - off[:-1]
    chunks_per_blk = jnp.maximum(1, (cnt + te - 1) // te).astype(jnp.int32)
    n_chunks = n_blocks + (-(-e // te))                                   # static bound
    e_ba = n_chunks * te
    cb_cum = jnp.concatenate([jnp.zeros((1,), jnp.int32),
                              jnp.cumsum(chunks_per_blk)]).astype(jnp.int32)
    blk_of = (col_s // tm).astype(jnp.int32)
    pos = cb_cum[blk_of] * te + (jnp.arange(e, dtype=jnp.int32) - off[blk_of])
    row_ba = jnp.zeros((e_ba,), jnp.int32).at[pos].set(row_s)
    col_ba = jnp.full((e_ba,), -1, dtype=jnp.int32).at[pos].set(col_s)    # -1 = padding edge
    pseudo_ba = jnp.zeros((e_ba, 2), jnp.float32).at[pos].set(pseudo_s)
    col8 = jnp.broadcast_to(col_ba.reshape(n_chunks, 1, te),
                            (n_chunks, 8, te)).reshape(n_chunks * 8, te)
    chunk_block = jnp.clip(
        jnp.searchsorted(cb_cum, jnp.arange(n_chunks, dtype=jnp.int32), side="right") - 1,
        0, n_blocks - 1).astype(jnp.int32)
    chunk_block = jnp.concatenate([chunk_block, jnp.full((1,), n_blocks, jnp.int32)])
    # TODO(synk): row_ba / chunk_block ride in SMEM via scalar prefetch; for very large
    # edge counts switch the row indices to per-chunk SMEM blocks to bound SMEM use.

    cur, cur_p = hid, hid_p
    for lp in params["layers"]:
        d_out = lp["fc_w"].shape[1] // n_kernels
        d_out_p = _round_up(d_out, LANE)
        kd = n_kernels * d_out
        kd_p = _round_up(kd, LANE)                   # packed K*d_out lanes (128 here)
        dim = lp["mu"].shape[1]
        h_in = h

        # fc projection (no bias), K*d_out packed into kd_p lanes.  f32 rows so the
        # per-edge gather is a clean 32-bit-aligned single-row DMA.
        # TODO(synk): pack 2xbf16 rows into u32 to halve gather bytes.
        fc_w = _pad2(lp["fc_w"], cur_p, kd_p)
        h_proj = pallas_matmul(h, fc_w, None, row_tile=tm, out_dtype=jnp.float32)

        # Gaussian kernel params expanded to the packed lanes, constants folded so the
        # kernel computes w = exp(u^2 @ A + u @ B + C) with no extra VPU scaling passes.
        isig2 = lp["inv_sigma"] * lp["inv_sigma"]                         # (K, dim)
        a_exp = _pad2(jnp.repeat(-0.5 * isig2, d_out, axis=0), kd_p, dim).T
        b_exp = _pad2(jnp.repeat(lp["mu"] * isig2, d_out, axis=0), kd_p, dim).T
        c_exp = jnp.pad(jnp.repeat(-0.5 * jnp.sum(lp["mu"] ** 2 * isig2, axis=1), d_out),
                        (0, kd_p - kd)).reshape(1, kd_p)

        # Folded BatchNorm affine; scale folded into the K-fold selector matmul.
        if batch_norm:
            scale = lp["bn_gamma"] * jax.lax.rsqrt(lp["bn_var"] + bn_eps)
            shift = lp["bn_beta"] - lp["bn_mean"] * scale
        else:
            scale = jnp.ones((1, d_out), jnp.float32)
            shift = jnp.zeros((1, d_out), jnp.float32)
        jj = jnp.arange(kd_p)
        r_sel = ((jj[:, None] < kd)
                 & (jnp.arange(d_out_p)[None, :] == (jj % d_out)[:, None])).astype(jnp.float32)
        r_sel = r_sel * _pad2(scale, 1, d_out_p)
        shift_p = _pad2(shift, 1, d_out_p)

        use_res = bool(residual) and (cur == d_out)
        h = pallas_gmm_layer(chunk_block, row_ba, pseudo_ba, col8,
                             a_exp, b_exp, c_exp,
                             lp["pp_w"], lp["pp_b"].reshape(1, -1),
                             r_sel, shift_p,
                             h_in if use_res else None, h_proj,
                             tm=tm, te=te, residual=use_res)
        # F.dropout: inference-mode identity
        cur, cur_p = d_out, d_out_p

    # TODO(synk): split destination blocks across TensorCores (v7x megacore) — the fused
    # kernel's chunk axis is an accumulator axis and currently runs on one core.
    return h[:n, :cur].astype(jnp.float32)


# ------------------------------------------------------------------ main
if __name__ == "__main__":
    key = jax.random.PRNGKey(0)
    kf, ke, kp = jax.random.split(key, 3)

    # small shapes consistent with the module
    N, E = 32, 64
    in_dim, hidden_dim, out_dim = 8, 32, 16
    n_kernels, pseudo_dim, n_layers = 3, 2, 3

    feature = jax.random.normal(kf, (N, in_dim), dtype=jnp.float32)
    edge_index = jax.random.randint(ke, (2, E), 0, N, dtype=jnp.int32)
    params = init_params(kp, in_dim, hidden_dim, out_dim, n_kernels, pseudo_dim, n_layers)

    fwd = jax.jit(functools.partial(monet_forward, n_kernels=n_kernels,
                                    residual=True, batch_norm=True))
    h = fwd(feature, edge_index, params)
    jax.block_until_ready(h)
    assert h.shape == (N, out_dim) and h.dtype == jnp.float32
    print("KERNEL_OK")
</pallas_src>

<mosaic_0001>
module attributes {stable_mosaic.version = 11 : i64} {
  func.func private @main(%arg0: i32) attributes {dimension_semantics = [#tpu.dimension_semantics<core_parallel>], iteration_bounds = array<i64: 2>, tpu.core_type = #tpu.core_type<sc_scalar_subcore>, window_params = []} {
    return
  }
}

module attributes {stable_mosaic.version = 11 : i64} {
  func.func private @main(%arg0: i32) attributes {dimension_semantics = [#tpu.dimension_semantics<core_parallel>], iteration_bounds = array<i64: 2>, tpu.core_type = #tpu.core_type<sc_scalar_subcore>, window_params = []} {
    return
  }
}

module attributes {stable_mosaic.version = 11 : i64} {
  func.func @_mm_kernel(%arg0: i32, %arg1: memref<32x128xbf16, #tpu.memory_space<vmem>>, %arg2: memref<128x128xf32, #tpu.memory_space<vmem>>, %arg3: memref<32x128xf32, #tpu.memory_space<vmem>>) attributes {dimension_semantics = [#tpu.dimension_semantics<parallel>], iteration_bounds = array<i64: 1>, scalar_prefetch = 0 : i64, scratch_operands = 0 : i64, tpu.core_type = #tpu.core_type<tc>, window_params = [{transform_indices = @transform_0, window_bounds = array<i64: 32, 128>}, {pipeline_mode = #tpu.pipeline_mode<synchronous>, transform_indices = @transform_1, window_bounds = array<i64: 128, 128>}, {transform_indices = @transform_2, window_bounds = array<i64: 32, 128>}]} {
    %c0 = arith.constant 0 : index
    %c0_0 = arith.constant 0 : index
    %0 = vector.load %arg1[%c0, %c0_0] : memref<32x128xbf16, #tpu.memory_space<vmem>>, vector<32x128xbf16>
    %c0_1 = arith.constant 0 : index
    %c0_2 = arith.constant 0 : index
    %1 = vector.load %arg2[%c0_1, %c0_2] : memref<128x128xf32, #tpu.memory_space<vmem>>, vector<128x128xf32>
    %2 = arith.truncf %1 : vector<128x128xf32> to vector<128x128xbf16>
    %cst = arith.constant dense<0.000000e+00> : vector<32x128xf32>
    %3 = tpu.matmul %0, %2, %cst {dimension_numbers = #tpu.dot_dimension_numbers<[1], [0], [0], [1], [0, 0, 1, 1], [], []>} : vector<32x128xbf16>, vector<128x128xbf16>, vector<32x128xf32> -> vector<32x128xf32>
    %c0_3 = arith.constant 0 : index
    %c0_4 = arith.constant 0 : index
    %4 = vector.load %arg3[%c0_3, %c0_4] : memref<32x128xf32, #tpu.memory_space<vmem>>, vector<32x128xf32>
    tpu.vector_store %arg3[%c0_3, %c0_4], %3 {strides = array<i32>} : memref<32x128xf32, #tpu.memory_space<vmem>>, vector<32x128xf32>,
    return
  }
  func.func @transform_0(%arg0: i32) -> (i32, i32) {
    %c0_i32 = arith.constant 0 : i32
    %c0_i32_0 = arith.constant 0 : i32
    return %arg0, %c0_i32 : i32, i32
  }
  func.func @transform_1(%arg0: i32) -> (i32, i32) {
    %c0_i32 = arith.constant 0 : i32
    %c0_i32_0 = arith.constant 0 : i32
    %c0_i32_1 = arith.constant 0 : i32
    return %c0_i32, %c0_i32_0 : i32, i32
  }
  func.func @transform_2(%arg0: i32) -> (i32, i32) {
    %c0_i32 = arith.constant 0 : i32
    %c0_i32_0 = arith.constant 0 : i32
    return %arg0, %c0_i32 : i32, i32
  }
}

module attributes {stable_mosaic.version = 11 : i64} {
  func.func @_mm_bias_kernel(%arg0: i32, %arg1: memref<32x8xf32, #tpu.memory_space<vmem>>, %arg2: memref<8x128xf32, #tpu.memory_space<vmem>>, %arg3: memref<1x128xf32, #tpu.memory_space<vmem>>, %arg4: memref<32x128xbf16, #tpu.memory_space<vmem>>) attributes {dimension_semantics = [#tpu.dimension_semantics<parallel>], iteration_bounds = array<i64: 1>, scalar_prefetch = 0 : i64, scratch_operands = 0 : i64, tpu.core_type = #tpu.core_type<tc>, window_params = [{transform_indices = @transform_0, window_bounds = array<i64: 32, 8>}, {pipeline_mode = #tpu.pipeline_mode<synchronous>, transform_indices = @transform_1, window_bounds = array<i64: 8, 128>}, {pipeline_mode = #tpu.pipeline_mode<synchronous>, transform_indices = @transform_2, window_bounds = array<i64: 1, 128>}, {transform_indices = @transform_3, window_bounds = array<i64: 32, 128>}]} {
    %c0 = arith.constant 0 : index
    %c0_0 = arith.constant 0 : index
    %0 = vector.load %arg1[%c0, %c0_0] : memref<32x8xf32, #tpu.memory_space<vmem>>, vector<32x8xf32>
    %1 = arith.truncf %0 : vector<32x8xf32> to vector<32x8xbf16>
    %c0_1 = arith.constant 0 : index
    %c0_2 = arith.constant 0 : index
    %2 = vector.load %arg2[%c0_1, %c0_2] : memref<8x128xf32, #tpu.memory_space<vmem>>, vector<8x128xf32>
    %3 = arith.truncf %2 : vector<8x128xf32> to vector<8x128xbf16>
    %cst = arith.constant dense<0.000000e+00> : vector<32x128xf32>
    %4 = tpu.matmul %1, %3, %cst {dimension_numbers = #tpu.dot_dimension_numbers<[1], [0], [0], [1], [0, 0, 1, 1], [], []>} : vector<32x8xbf16>, vector<8x128xbf16>, vector<32x128xf32> -> vector<32x128xf32>
    %c0_3 = arith.constant 0 : index
    %c0_4 = arith.constant 0 : index
    %5 = vector.load %arg3[%c0_3, %c0_4] : memref<1x128xf32, #tpu.memory_space<vmem>>, vector<1x128xf32>
    %6 = vector.broadcast %5 : vector<1x128xf32> to vector<32x128xf32>
    %7 = arith.addf %4, %6 : vector<32x128xf32>
    %8 = arith.truncf %7 : vector<32x128xf32> to vector<32x128xbf16>
    %c0_5 = arith.constant 0 : index
    %c0_6 = arith.constant 0 : index
    %9 = vector.load %arg4[%c0_5, %c0_6] : memref<32x128xbf16, #tpu.memory_space<vmem>>, vector<32x128xbf16>
    tpu.vector_store %arg4[%c0_5, %c0_6], %8 {strides = array<i32>} : memref<32x128xbf16, #tpu.memory_space<vmem>>, vector<32x128xbf16>,
    return
  }
  func.func @transform_0(%arg0: i32) -> (i32, i32) {
    %c0_i32 = arith.constant 0 : i32
    %c0_i32_0 = arith.constant 0 : i32
    return %arg0, %c0_i32 : i32, i32
  }
  func.func @transform_1(%arg0: i32) -> (i32, i32) {
    %c0_i32 = arith.constant 0 : i32
    %c0_i32_0 = arith.constant 0 : i32
    %c0_i32_1 = arith.constant 0 : i32
    return %c0_i32, %c0_i32_0 : i32, i32
  }
  func.func @transform_2(%arg0: i32) -> (i32, i32) {
    %c0_i32 = arith.constant 0 : i32
    %c0_i32_0 = arith.constant 0 : i32
    %c0_i32_1 = arith.constant 0 : i32
    return %c0_i32, %c0_i32_0 : i32, i32
  }
  func.func @transform_3(%arg0: i32) -> (i32, i32) {
    %c0_i32 = arith.constant 0 : i32
    %c0_i32_0 = arith.constant 0 : i32
    return %arg0, %c0_i32 : i32, i32
  }
}

module attributes {stable_mosaic.version = 11 : i64} {
  func.func @_gmm_layer_kernel(%arg0: i32, %arg1: memref<3xi32, #tpu.memory_space<smem>>, %arg2: memref<128xi32, #tpu.memory_space<smem>>, %arg3: memref<64x2xf32, #tpu.memory_space<vmem>>, %arg4: memref<8x64xi32, #tpu.memory_space<vmem>>, %arg5: memref<2x128xf32, #tpu.memory_space<vmem>>, %arg6: memref<2x128xf32, #tpu.memory_space<vmem>>, %arg7: memref<1x128xf32, #tpu.memory_space<vmem>>, %arg8: memref<2x2xf32, #tpu.memory_space<vmem>>, %arg9: memref<1x2xf32, #tpu.memory_space<vmem>>, %arg10: memref<128x128xf32, #tpu.memory_space<vmem>>, %arg11: memref<1x128xf32, #tpu.memory_space<vmem>>, %arg12: memref<32x128xbf16, #tpu.memory_space<vmem>>, %arg13: memref<32x128xf32, #tpu.memory_space<any>>, %arg14: memref<32x128xbf16, #tpu.memory_space<vmem>>, %arg15: memref<2x64x128xf32, #tpu.memory_space<vmem>>, %arg16: memref<2x!tpu.dma_semaphore, #tpu.memory_space<semaphore_mem>>, %arg17: memref<32x128xf32, #tpu.memory_space<vmem>>) attributes {dimension_semantics = [#tpu.dimension_semantics<arbitrary>], iteration_bounds = array<i64: 2>, scalar_prefetch = 2 : i64, scratch_operands = 3 : i64, tpu.core_type = #tpu.core_type<tc>, window_params = [{transform_indices = @transform_0, window_bounds = array<i64: 64, 2>}, {transform_indices = @transform_1, window_bounds = array<i64: 8, 64>}, {pipeline_mode = #tpu.pipeline_mode<synchronous>, transform_indices = @transform_2, window_bounds = array<i64: 2, 128>}, {pipeline_mode = #tpu.pipeline_mode<synchronous>, transform_indices = @transform_3, window_bounds = array<i64: 2, 128>}, {pipeline_mode = #tpu.pipeline_mode<synchronous>, transform_indices = @transform_4, window_bounds = array<i64: 1, 128>}, {pipeline_mode = #tpu.pipeline_mode<synchronous>, transform_indices = @transform_5, window_bounds = array<i64: 2, 2>}, {pipeline_mode = #tpu.pipeline_mode<synchronous>, transform_indices = @transform_6, window_bounds = array<i64: 1, 2>}, {pipeline_mode = #tpu.pipeline_mode<synchronous>, transform_indices = @transform_7, window_bounds = array<i64: 128, 128>}, {pipeline_mode = #tpu.pipeline_mode<synchronous>, transform_indices = @transform_8, window_bounds = array<i64: 1, 128>}, {transform_indices = @transform_9, window_bounds = array<i64: 32, 128>}, {}, {transform_indices = @transform_11, window_bounds = array<i64: 32, 128>}]} {
    %0 = arith.index_cast %arg0 : i32 to index
    %1 = memref.load %arg1[%0] : memref<3xi32, #tpu.memory_space<smem>>
    %c2_i32 = arith.constant 2 : i32
    %2 = arith.remsi %arg0, %c2_i32 : i32
    %c0_i32 = arith.constant 0 : i32
    %3 = arith.cmpi eq, %arg0, %c0_i32 : i32
    %4 = arith.extui %3 : i1 to i32
    %c0_i32_0 = arith.constant 0 : i32
    %5 = arith.cmpi ne, %4, %c0_i32_0 : i32
    scf.if %5 {
      %c0_i32_34 = arith.constant 0 : i32
      %c64_i32_35 = arith.constant 64 : i32
      %62 = arith.addi %c0_i32_34, %c64_i32_35 : i32
      %c1_i32_36 = arith.constant 1 : i32
      scf.for %arg18 = %c0_i32_34 to %62 step %c1_i32_36  : i32 {
        %c1_i32_38 = arith.constant 1 : i32
        %63 = arith.muli %arg18, %c1_i32_38 : i32
        %c0_i32_39 = arith.constant 0 : i32
        %64 = arith.addi %c0_i32_39, %63 : i32
        %c0_i32_40 = arith.constant 0 : i32
        %65 = arith.addi %c0_i32_40, %64 : i32
        %66 = arith.index_cast %65 : i32 to index
        %67 = memref.load %arg2[%66] : memref<128xi32, #tpu.memory_space<smem>>
        %c0_i32_41 = arith.constant 0 : i32
        %c0_i32_42 = arith.constant 0 : i32
        %c0_i32_43 = arith.constant 0 : i32
        %68 = tpu.memref_slice %arg13[%67, %c0_i32_43] : memref<32x128xf32, #tpu.memory_space<any>> -> memref<1x128xf32, #tpu.memory_space<any>>
        %69 = tpu.memref_squeeze %68 : memref<1x128xf32, #tpu.memory_space<any>> -> memref<128xf32, #tpu.memory_space<any>>
        %c0_i32_44 = arith.constant 0 : i32
        %70 = tpu.memref_slice %arg15[%c0_i32_41, %64, %c0_i32_44] : memref<2x64x128xf32, #tpu.memory_space<vmem>> -> memref<1x1x128xf32, #tpu.memory_space<vmem>>
        %71 = tpu.memref_squeeze %70 : memref<1x1x128xf32, #tpu.memory_space<vmem>> -> memref<128xf32, #tpu.memory_space<vmem>>
        %72 = tpu.memref_slice %arg16[%c0_i32_42] : memref<2x!tpu.dma_semaphore, #tpu.memory_space<semaphore_mem>> -> memref<1x!tpu.dma_semaphore, #tpu.memory_space<semaphore_mem>>
        %73 = tpu.memref_squeeze %72 : memref<1x!tpu.dma_semaphore, #tpu.memory_space<semaphore_mem>> -> memref<!tpu.dma_semaphore, #tpu.memory_space<semaphore_mem>>
        tpu.enqueue_dma source(%69 : memref<128xf32, #tpu.memory_space<any>>) target(%71 : memref<128xf32, #tpu.memory_space<vmem>>) target_semaphore(%73 : memref<!tpu.dma_semaphore, #tpu.memory_space<semaphore_mem>>)
      }
      %c64_i32_37 = arith.constant 64 : i32
    } else {
    }
    %c0_i32_1 = arith.constant 0 : i32
    %c64_i32 = arith.constant 64 : i32
    %6 = arith.addi %c0_i32_1, %c64_i32 : i32
    %c1_i32 = arith.constant 1 : i32
    scf.for %arg18 = %c0_i32_1 to %6 step %c1_i32  : i32 {
      %c1_i32_34 = arith.constant 1 : i32
      %62 = arith.muli %arg18, %c1_i32_34 : i32
      %c0_i32_35 = arith.constant 0 : i32
      %63 = arith.addi %c0_i32_35, %62 : i32
      %c0_i32_36 = arith.constant 0 : i32
      %c0_i32_37 = arith.constant 0 : i32
      %64 = tpu.memref_slice %arg13[%c0_i32_36, %c0_i32_37] : memref<32x128xf32, #tpu.memory_space<any>> -> memref<1x128xf32, #tpu.memory_space<any>>
      %65 = tpu.memref_squeeze %64 : memref<1x128xf32, #tpu.memory_space<any>> -> memref<128xf32, #tpu.memory_space<any>>
      %c0_i32_38 = arith.constant 0 : i32
      %66 = tpu.memref_slice %arg15[%2, %63, %c0_i32_38] : memref<2x64x128xf32, #tpu.memory_space<vmem>> -> memref<1x1x128xf32, #tpu.memory_space<vmem>>
      %67 = tpu.memref_squeeze %66 : memref<1x1x128xf32, #tpu.memory_space<vmem>> -> memref<128xf32, #tpu.memory_space<vmem>>
      %68 = tpu.memref_slice %arg16[%2] : memref<2x!tpu.dma_semaphore, #tpu.memory_space<semaphore_mem>> -> memref<1x!tpu.dma_semaphore, #tpu.memory_space<semaphore_mem>>
      %69 = tpu.memref_squeeze %68 : memref<1x!tpu.dma_semaphore, #tpu.memory_space<semaphore_mem>> -> memref<!tpu.dma_semaphore, #tpu.memory_space<semaphore_mem>>
      tpu.wait_dma2 semaphore(%69 : memref<!tpu.dma_semaphore, #tpu.memory_space<semaphore_mem>>) src(%65 : memref<128xf32, #tpu.memory_space<any>>) dst(%67 : memref<128xf32, #tpu.memory_space<vmem>>)
    }
    %c64_i32_2 = arith.constant 64 : i32
    %c1_i32_3 = arith.constant 1 : i32
    %7 = arith.addi %arg0, %c1_i32_3 : i32
    %c2_i32_4 = arith.constant 2 : i32
    %8 = arith.cmpi slt, %7, %c2_i32_4 : i32
    %9 = arith.extui %8 : i1 to i32
    %c0_i32_5 = arith.constant 0 : i32
    %10 = arith.cmpi ne, %9, %c0_i32_5 : i32
    scf.if %10 {
      %c1_i32_34 = arith.constant 1 : i32
      %62 = arith.addi %arg0, %c1_i32_34 : i32
      %c1_i32_35 = arith.constant 1 : i32
      %63 = arith.subi %c1_i32_35, %2 : i32
      %c64_i32_36 = arith.constant 64 : i32
      %64 = arith.muli %62, %c64_i32_36 : i32
      %c0_i32_37 = arith.constant 0 : i32
      %c64_i32_38 = arith.constant 64 : i32
      %65 = arith.addi %c0_i32_37, %c64_i32_38 : i32
      %c1_i32_39 = arith.constant 1 : i32
      scf.for %arg18 = %c0_i32_37 to %65 step %c1_i32_39  : i32 {
        %c1_i32_41 = arith.constant 1 : i32
        %66 = arith.muli %arg18, %c1_i32_41 : i32
        %c0_i32_42 = arith.constant 0 : i32
        %67 = arith.addi %c0_i32_42, %66 : i32
        %68 = arith.addi %64, %67 : i32
        %69 = arith.index_cast %68 : i32 to index
        %70 = memref.load %arg2[%69] : memref<128xi32, #tpu.memory_space<smem>>
        %c0_i32_43 = arith.constant 0 : i32
        %71 = tpu.memref_slice %arg13[%70, %c0_i32_43] : memref<32x128xf32, #tpu.memory_space<any>> -> memref<1x128xf32, #tpu.memory_space<any>>
        %72 = tpu.memref_squeeze %71 : memref<1x128xf32, #tpu.memory_space<any>> -> memref<128xf32, #tpu.memory_space<any>>
        %c0_i32_44 = arith.constant 0 : i32
        %73 = tpu.memref_slice %arg15[%63, %67, %c0_i32_44] : memref<2x64x128xf32, #tpu.memory_space<vmem>> -> memref<1x1x128xf32, #tpu.memory_space<vmem>>
        %74 = tpu.memref_squeeze %73 : memref<1x1x128xf32, #tpu.memory_space<vmem>> -> memref<128xf32, #tpu.memory_space<vmem>>
        %75 = tpu.memref_slice %arg16[%63] : memref<2x!tpu.dma_semaphore, #tpu.memory_space<semaphore_mem>> -> memref<1x!tpu.dma_semaphore, #tpu.memory_space<semaphore_mem>>
        %76 = tpu.memref_squeeze %75 : memref<1x!tpu.dma_semaphore, #tpu.memory_space<semaphore_mem>> -> memref<!tpu.dma_semaphore, #tpu.memory_space<semaphore_mem>>
        tpu.enqueue_dma source(%72 : memref<128xf32, #tpu.memory_space<any>>) target(%74 : memref<128xf32, #tpu.memory_space<vmem>>) target_semaphore(%76 : memref<!tpu.dma_semaphore, #tpu.memory_space<semaphore_mem>>)
      }
      %c64_i32_40 = arith.constant 64 : i32
    } else {
    }
    %c1_i32_6 = arith.constant 1 : i32
    %11 = arith.subi %arg0, %c1_i32_6 : i32
    %c0_i32_7 = arith.constant 0 : i32
    %12 = arith.maxsi %11, %c0_i32_7 : i32
    %13 = arith.index_cast %12 : i32 to index
    %14 = memref.load %arg1[%13] : memref<3xi32, #tpu.memory_space<smem>>
    %c0_i32_8 = arith.constant 0 : i32
    %15 = arith.cmpi eq, %arg0, %c0_i32_8 : i32
    %16 = arith.cmpi ne, %1, %14 : i32
    %17 = arith.ori %15, %16 : i1
    %18 = arith.extui %17 : i1 to i32
    %c0_i32_9 = arith.constant 0 : i32
    %19 = arith.cmpi ne, %18, %c0_i32_9 : i32
    scf.if %19 {
      %cst_34 = arith.constant 0.000000e+00 : f32
      %62 = vector.broadcast %cst_34 : f32 to vector<32x128xf32>
      %c0_35 = arith.constant 0 : index
      %c0_36 = arith.constant 0 : index
      %63 = vector.load %arg17[%c0_35, %c0_36] : memref<32x128xf32, #tpu.memory_space<vmem>>, vector<32x128xf32>
      tpu.vector_store %arg17[%c0_35, %c0_36], %62 {strides = array<i32>} : memref<32x128xf32, #tpu.memory_space<vmem>>, vector<32x128xf32>,
    } else {
    }
    %c0 = arith.constant 0 : index
    %c0_10 = arith.constant 0 : index
    %20 = vector.load %arg3[%c0, %c0_10] : memref<64x2xf32, #tpu.memory_space<vmem>>, vector<64x2xf32>
    %c0_11 = arith.constant 0 : index
    %c0_12 = arith.constant 0 : index
    %21 = vector.load %arg8[%c0_11, %c0_12] : memref<2x2xf32, #tpu.memory_space<vmem>>, vector<2x2xf32>
    %cst = arith.constant dense<0.000000e+00> : vector<64x2xf32>
    %22 = tpu.matmul %20, %21, %cst {dimension_numbers = #tpu.dot_dimension_numbers<[1], [0], [0], [1], [0, 0, 1, 1], [], []>} : vector<64x2xf32>, vector<2x2xf32>, vector<64x2xf32> -> vector<64x2xf32>
    %c0_13 = arith.constant 0 : index
    %c0_14 = arith.constant 0 : index
    %23 = vector.load %arg9[%c0_13, %c0_14] : memref<1x2xf32, #tpu.memory_space<vmem>>, vector<1x2xf32>
    %24 = vector.broadcast %23 : vector<1x2xf32> to vector<64x2xf32>
    %25 = arith.addf %22, %24 : vector<64x2xf32>
    %26 = math.tanh %25 : vector<64x2xf32>
    %27 = arith.mulf %26, %26 : vector<64x2xf32>
    %c0_15 = arith.constant 0 : index
    %c0_16 = arith.constant 0 : index
    %28 = vector.load %arg5[%c0_15, %c0_16] : memref<2x128xf32, #tpu.memory_space<vmem>>, vector<2x128xf32>
    %cst_17 = arith.constant dense<0.000000e+00> : vector<64x128xf32>
    %29 = tpu.matmul %27, %28, %cst_17 {dimension_numbers = #tpu.dot_dimension_numbers<[1], [0], [0], [1], [0, 0, 1, 1], [], []>} : vector<64x2xf32>, vector<2x128xf32>, vector<64x128xf32> -> vector<64x128xf32>
    %c0_18 = arith.constant 0 : index
    %c0_19 = arith.constant 0 : index
    %30 = vector.load %arg6[%c0_18, %c0_19] : memref<2x128xf32, #tpu.memory_space<vmem>>, vector<2x128xf32>
    %cst_20 = arith.constant dense<0.000000e+00> : vector<64x128xf32>
    %31 = tpu.matmul %26, %30, %cst_20 {dimension_numbers = #tpu.dot_dimension_numbers<[1], [0], [0], [1], [0, 0, 1, 1], [], []>} : vector<64x2xf32>, vector<2x128xf32>, vector<64x128xf32> -> vector<64x128xf32>
    %32 = arith.addf %29, %31 : vector<64x128xf32>
    %c0_21 = arith.constant 0 : index
    %c0_22 = arith.constant 0 : index
    %33 = vector.load %arg7[%c0_21, %c0_22] : memref<1x128xf32, #tpu.memory_space<vmem>>, vector<1x128xf32>
    %34 = vector.broadcast %33 : vector<1x128xf32> to vector<64x128xf32>
    %35 = arith.addf %32, %34 : vector<64x128xf32>
    %36 = math.exp %35 : vector<64x128xf32>
    %37 = arith.index_cast %2 : i32 to index
    %c0_23 = arith.constant 0 : index
    %c0_24 = arith.constant 0 : index
    %38 = vector.load %arg15[%37, %c0_23, %c0_24] : memref<2x64x128xf32, #tpu.memory_space<vmem>>, vector<1x64x128xf32>
    %39 = vector.shape_cast %38 : vector<1x64x128xf32> to vector<64x128xf32>
    %40 = arith.mulf %36, %39 : vector<64x128xf32>
    %41 = arith.truncf %40 : vector<64x128xf32> to vector<64x128xbf16>
    %c0_25 = arith.constant 0 : index
    %c0_26 = arith.constant 0 : index
    %42 = vector.load %arg4[%c0_25, %c0_26] : memref<8x64xi32, #tpu.memory_space<vmem>>, vector<1x64xi32>
    %43 = tpu.iota {dimensions = array<i32: 0>} : vector<32x64xi32>
    %c32_i32 = arith.constant 32 : i32
    %44 = arith.muli %1, %c32_i32 : i32
    %45 = vector.broadcast %44 : i32 to vector<32x64xi32>
    %46 = arith.addi %43, %45 : vector<32x64xi32>
    %47 = vector.broadcast %42 : vector<1x64xi32> to vector<32x64xi32>
    %48 = arith.cmpi eq, %46, %47 : vector<32x64xi32>
    %49 = arith.extui %48 : vector<32x64xi1> to vector<32x64xi32>
    %50 = arith.sitofp %49 : vector<32x64xi32> to vector<32x64xf32>
    %51 = arith.truncf %50 : vector<32x64xf32> to vector<32x64xbf16>
    %c0_27 = arith.constant 0 : index
    %c0_28 = arith.constant 0 : index
    %52 = vector.load %arg17[%c0_27, %c0_28] : memref<32x128xf32, #tpu.memory_space<vmem>>, vector<32x128xf32>
    %cst_29 = arith.constant dense<0.000000e+00> : vector<32x128xf32>
    %53 = tpu.matmul %51, %41, %cst_29 {dimension_numbers = #tpu.dot_dimension_numbers<[1], [0], [0], [1], [0, 0, 1, 1], [], []>} : vector<32x64xbf16>, vector<64x128xbf16>, vector<32x128xf32> -> vector<32x128xf32>
    %54 = arith.addf %52, %53 : vector<32x128xf32>
    %c0_30 = arith.constant 0 : index
    %c0_31 = arith.constant 0 : index
    %55 = vector.load %arg17[%c0_30, %c0_31] : memref<32x128xf32, #tpu.memory_space<vmem>>, vector<32x128xf32>
    tpu.vector_store %arg17[%c0_30, %c0_31], %54 {strides = array<i32>} : memref<32x128xf32, #tpu.memory_space<vmem>>, vector<32x128xf32>,
    %c1_i32_32 = arith.constant 1 : i32
    %56 = arith.addi %arg0, %c1_i32_32 : i32
    %57 = arith.index_cast %56 : i32 to index
    %58 = memref.load %arg1[%57] : memref<3xi32, #tpu.memory_space<smem>>
    %59 = arith.cmpi ne, %58, %1 : i32
    %60 = arith.extui %59 : i1 to i32
    %c0_i32_33 = arith.constant 0 : i32
    %61 = arith.cmpi ne, %60, %c0_i32_33 : i32
    scf.if %61 {
      %c0_34 = arith.constant 0 : index
      %c0_35 = arith.constant 0 : index
      %62 = vector.load %arg17[%c0_34, %c0_35] : memref<32x128xf32, #tpu.memory_space<vmem>>, vector<32x128xf32>
      %c0_36 = arith.constant 0 : index
      %c0_37 = arith.constant 0 : index
      %63 = vector.load %arg10[%c0_36, %c0_37] : memref<128x128xf32, #tpu.memory_space<vmem>>, vector<128x128xf32>
      %cst_38 = arith.constant dense<0.000000e+00> : vector<32x128xf32>
      %64 = tpu.matmul %62, %63, %cst_38 {dimension_numbers = #tpu.dot_dimension_numbers<[1], [0], [0], [1], [0, 0, 1, 1], [], []>} : vector<32x128xf32>, vector<128x128xf32>, vector<32x128xf32> -> vector<32x128xf32>
      %c0_39 = arith.constant 0 : index
      %c0_40 = arith.constant 0 : index
      %65 = vector.load %arg11[%c0_39, %c0_40] : memref<1x128xf32, #tpu.memory_space<vmem>>, vector<1x128xf32>
      %66 = vector.broadcast %65 : vector<1x128xf32> to vector<32x128xf32>
      %67 = arith.addf %64, %66 : vector<32x128xf32>
      %cst_41 = arith.constant 0.000000e+00 : f32
      %68 = vector.broadcast %cst_41 : f32 to vector<32x128xf32>
      %69 = arith.maximumf %67, %68 : vector<32x128xf32>
      %c0_42 = arith.constant 0 : index
      %c0_43 = arith.constant 0 : index
      %70 = vector.load %arg12[%c0_42, %c0_43] : memref<32x128xbf16, #tpu.memory_space<vmem>>, vector<32x128xbf16>
      %71 = arith.extf %70 : vector<32x128xbf16> to vector<32x128xf32>
      %72 = arith.addf %69, %71 : vector<32x128xf32>
      %73 = arith.truncf %72 : vector<32x128xf32> to vector<32x128xbf16>
      %c0_44 = arith.constant 0 : index
      %c0_45 = arith.constant 0 : index
      %74 = vector.load %arg14[%c0_44, %c0_45] : memref<32x128xbf16, #tpu.memory_space<vmem>>, vector<32x128xbf16>
      tpu.vector_store %arg14[%c0_44, %c0_45], %73 {strides = array<i32>} : memref<32x128xbf16, #tpu.memory_space<vmem>>, vector<32x128xbf16>,
    } else {
    }
    return
  }
  func.func @transform_0(%arg0: i32, %arg1: memref<3xi32, #tpu.memory_space<smem>>, %arg2: memref<128xi32, #tpu.memory_space<smem>>) -> (i32, i32) {
    %c0_i32 = arith.constant 0 : i32
    %c0_i32_0 = arith.constant 0 : i32
    return %arg0, %c0_i32 : i32, i32
  }
  func.func @transform_1(%arg0: i32, %arg1: memref<3xi32, #tpu.memory_space<smem>>, %arg2: memref<128xi32, #tpu.memory_space<smem>>) -> (i32, i32) {
    %c0_i32 = arith.constant 0 : i32
    %c0_i32_0 = arith.constant 0 : i32
    return %arg0, %c0_i32 : i32, i32
  }
  func.func @transform_2(%arg0: i32, %arg1: memref<3xi32, #tpu.memory_space<smem>>, %arg2: memref<128xi32, #tpu.memory_space<smem>>) -> (i32, i32) {
    %c0_i32 = arith.constant 0 : i32
    %c0_i32_0 = arith.constant 0 : i32
    %c0_i32_1 = arith.constant 0 : i32
    return %c0_i32, %c0_i32_0 : i32, i32
  }
  func.func @transform_3(%arg0: i32, %arg1: memref<3xi32, #tpu.memory_space<smem>>, %arg2: memref<128xi32, #tpu.memory_space<smem>>) -> (i32, i32) {
    %c0_i32 = arith.constant 0 : i32
    %c0_i32_0 = arith.constant 0 : i32
    %c0_i32_1 = arith.constant 0 : i32
    return %c0_i32, %c0_i32_0 : i32, i32
  }
  func.func @transform_4(%arg0: i32, %arg1: memref<3xi32, #tpu.memory_space<smem>>, %arg2: memref<128xi32, #tpu.memory_space<smem>>) -> (i32, i32) {
    %c0_i32 = arith.constant 0 : i32
    %c0_i32_0 = arith.constant 0 : i32
    %c0_i32_1 = arith.constant 0 : i32
    return %c0_i32, %c0_i32_0 : i32, i32
  }
  func.func @transform_5(%arg0: i32, %arg1: memref<3xi32, #tpu.memory_space<smem>>, %arg2: memref<128xi32, #tpu.memory_space<smem>>) -> (i32, i32) {
    %c0_i32 = arith.constant 0 : i32
    %c0_i32_0 = arith.constant 0 : i32
    %c0_i32_1 = arith.constant 0 : i32
    return %c0_i32, %c0_i32_0 : i32, i32
  }
  func.func @transform_6(%arg0: i32, %arg1: memref<3xi32, #tpu.memory_space<smem>>, %arg2: memref<128xi32, #tpu.memory_space<smem>>) -> (i32, i32) {
    %c0_i32 = arith.constant 0 : i32
    %c0_i32_0 = arith.constant 0 : i32
    %c0_i32_1 = arith.constant 0 : i32
    return %c0_i32, %c0_i32_0 : i32, i32
  }
  func.func @transform_7(%arg0: i32, %arg1: memref<3xi32, #tpu.memory_space<smem>>, %arg2: memref<128xi32, #tpu.memory_space<smem>>) -> (i32, i32) {
    %c0_i32 = arith.constant 0 : i32
    %c0_i32_0 = arith.constant 0 : i32
    %c0_i32_1 = arith.constant 0 : i32
    return %c0_i32, %c0_i32_0 : i32, i32
  }
  func.func @transform_8(%arg0: i32, %arg1: memref<3xi32, #tpu.memory_space<smem>>, %arg2: memref<128xi32, #tpu.memory_space<smem>>) -> (i32, i32) {
    %c0_i32 = arith.constant 0 : i32
    %c0_i32_0 = arith.constant 0 : i32
    %c0_i32_1 = arith.constant 0 : i32
    return %c0_i32, %c0_i32_0 : i32, i32
  }
  func.func @transform_9(%arg0: i32, %arg1: memref<3xi32, #tpu.memory_space<smem>>, %arg2: memref<128xi32, #tpu.memory_space<smem>>) -> (i32, i32) {
    %0 = arith.index_cast %arg0 : i32 to index
    %1 = memref.load %arg1[%0] : memref<3xi32, #tpu.memory_space<smem>>
    %c0_i32 = arith.constant 0 : i32
    %c0_i32_0 = arith.constant 0 : i32
    return %1, %c0_i32 : i32, i32
  }
  func.func @transform_11(%arg0: i32, %arg1: memref<3xi32, #tpu.memory_space<smem>>, %arg2: memref<128xi32, #tpu.memory_space<smem>>) -> (i32, i32) {
    %0 = arith.index_cast %arg0 : i32 to index
    %1 = memref.load %arg1[%0] : memref<3xi32, #tpu.memory_space<smem>>
    %c0_i32 = arith.constant 0 : i32
    %c0_i32_0 = arith.constant 0 : i32
    return %1, %c0_i32 : i32, i32
  }
}

module attributes {stable_mosaic.version = 11 : i64} {
  func.func @_gmm_layer_kernel(%arg0: i32, %arg1: memref<3xi32, #tpu.memory_space<smem>>, %arg2: memref<128xi32, #tpu.memory_space<smem>>, %arg3: memref<64x2xf32, #tpu.memory_space<vmem>>, %arg4: memref<8x64xi32, #tpu.memory_space<vmem>>, %arg5: memref<2x128xf32, #tpu.memory_space<vmem>>, %arg6: memref<2x128xf32, #tpu.memory_space<vmem>>, %arg7: memref<1x128xf32, #tpu.memory_space<vmem>>, %arg8: memref<2x2xf32, #tpu.memory_space<vmem>>, %arg9: memref<1x2xf32, #tpu.memory_space<vmem>>, %arg10: memref<128x128xf32, #tpu.memory_space<vmem>>, %arg11: memref<1x128xf32, #tpu.memory_space<vmem>>, %arg12: memref<32x128xf32, #tpu.memory_space<any>>, %arg13: memref<32x128xbf16, #tpu.memory_space<vmem>>, %arg14: memref<2x64x128xf32, #tpu.memory_space<vmem>>, %arg15: memref<2x!tpu.dma_semaphore, #tpu.memory_space<semaphore_mem>>, %arg16: memref<32x128xf32, #tpu.memory_space<vmem>>) attributes {dimension_semantics = [#tpu.dimension_semantics<arbitrary>], iteration_bounds = array<i64: 2>, scalar_prefetch = 2 : i64, scratch_operands = 3 : i64, tpu.core_type = #tpu.core_type<tc>, window_params = [{transform_indices = @transform_0, window_bounds = array<i64: 64, 2>}, {transform_indices = @transform_1, window_bounds = array<i64: 8, 64>}, {pipeline_mode = #tpu.pipeline_mode<synchronous>, transform_indices = @transform_2, window_bounds = array<i64: 2, 128>}, {pipeline_mode = #tpu.pipeline_mode<synchronous>, transform_indices = @transform_3, window_bounds = array<i64: 2, 128>}, {pipeline_mode = #tpu.pipeline_mode<synchronous>, transform_indices = @transform_4, window_bounds = array<i64: 1, 128>}, {pipeline_mode = #tpu.pipeline_mode<synchronous>, transform_indices = @transform_5, window_bounds = array<i64: 2, 2>}, {pipeline_mode = #tpu.pipeline_mode<synchronous>, transform_indices = @transform_6, window_bounds = array<i64: 1, 2>}, {pipeline_mode = #tpu.pipeline_mode<synchronous>, transform_indices = @transform_7, window_bounds = array<i64: 128, 128>}, {pipeline_mode = #tpu.pipeline_mode<synchronous>, transform_indices = @transform_8, window_bounds = array<i64: 1, 128>}, {}, {transform_indices = @transform_10, window_bounds = array<i64: 32, 128>}]} {
    %0 = arith.index_cast %arg0 : i32 to index
    %1 = memref.load %arg1[%0] : memref<3xi32, #tpu.memory_space<smem>>
    %c2_i32 = arith.constant 2 : i32
    %2 = arith.remsi %arg0, %c2_i32 : i32
    %c0_i32 = arith.constant 0 : i32
    %3 = arith.cmpi eq, %arg0, %c0_i32 : i32
    %4 = arith.extui %3 : i1 to i32
    %c0_i32_0 = arith.constant 0 : i32
    %5 = arith.cmpi ne, %4, %c0_i32_0 : i32
    scf.if %5 {
      %c0_i32_34 = arith.constant 0 : i32
      %c64_i32_35 = arith.constant 64 : i32
      %62 = arith.addi %c0_i32_34, %c64_i32_35 : i32
      %c1_i32_36 = arith.constant 1 : i32
      scf.for %arg17 = %c0_i32_34 to %62 step %c1_i32_36  : i32 {
        %c1_i32_38 = arith.constant 1 : i32
        %63 = arith.muli %arg17, %c1_i32_38 : i32
        %c0_i32_39 = arith.constant 0 : i32
        %64 = arith.addi %c0_i32_39, %63 : i32
        %c0_i32_40 = arith.constant 0 : i32
        %65 = arith.addi %c0_i32_40, %64 : i32
        %66 = arith.index_cast %65 : i32 to index
        %67 = memref.load %arg2[%66] : memref<128xi32, #tpu.memory_space<smem>>
        %c0_i32_41 = arith.constant 0 : i32
        %c0_i32_42 = arith.constant 0 : i32
        %c0_i32_43 = arith.constant 0 : i32
        %68 = tpu.memref_slice %arg12[%67, %c0_i32_43] : memref<32x128xf32, #tpu.memory_space<any>> -> memref<1x128xf32, #tpu.memory_space<any>>
        %69 = tpu.memref_squeeze %68 : memref<1x128xf32, #tpu.memory_space<any>> -> memref<128xf32, #tpu.memory_space<any>>
        %c0_i32_44 = arith.constant 0 : i32
        %70 = tpu.memref_slice %arg14[%c0_i32_41, %64, %c0_i32_44] : memref<2x64x128xf32, #tpu.memory_space<vmem>> -> memref<1x1x128xf32, #tpu.memory_space<vmem>>
        %71 = tpu.memref_squeeze %70 : memref<1x1x128xf32, #tpu.memory_space<vmem>> -> memref<128xf32, #tpu.memory_space<vmem>>
        %72 = tpu.memref_slice %arg15[%c0_i32_42] : memref<2x!tpu.dma_semaphore, #tpu.memory_space<semaphore_mem>> -> memref<1x!tpu.dma_semaphore, #tpu.memory_space<semaphore_mem>>
        %73 = tpu.memref_squeeze %72 : memref<1x!tpu.dma_semaphore, #tpu.memory_space<semaphore_mem>> -> memref<!tpu.dma_semaphore, #tpu.memory_space<semaphore_mem>>
        tpu.enqueue_dma source(%69 : memref<128xf32, #tpu.memory_space<any>>) target(%71 : memref<128xf32, #tpu.memory_space<vmem>>) target_semaphore(%73 : memref<!tpu.dma_semaphore, #tpu.memory_space<semaphore_mem>>)
      }
      %c64_i32_37 = arith.constant 64 : i32
    } else {
    }
    %c0_i32_1 = arith.constant 0 : i32
    %c64_i32 = arith.constant 64 : i32
    %6 = arith.addi %c0_i32_1, %c64_i32 : i32
    %c1_i32 = arith.constant 1 : i32
    scf.for %arg17 = %c0_i32_1 to %6 step %c1_i32  : i32 {
      %c1_i32_34 = arith.constant 1 : i32
      %62 = arith.muli %arg17, %c1_i32_34 : i32
      %c0_i32_35 = arith.constant 0 : i32
      %63 = arith.addi %c0_i32_35, %62 : i32
      %c0_i32_36 = arith.constant 0 : i32
      %c0_i32_37 = arith.constant 0 : i32
      %64 = tpu.memref_slice %arg12[%c0_i32_36, %c0_i32_37] : memref<32x128xf32, #tpu.memory_space<any>> -> memref<1x128xf32, #tpu.memory_space<any>>
      %65 = tpu.memref_squeeze %64 : memref<1x128xf32, #tpu.memory_space<any>> -> memref<128xf32, #tpu.memory_space<any>>
      %c0_i32_38 = arith.constant 0 : i32
      %66 = tpu.memref_slice %arg14[%2, %63, %c0_i32_38] : memref<2x64x128xf32, #tpu.memory_space<vmem>> -> memref<1x1x128xf32, #tpu.memory_space<vmem>>
      %67 = tpu.memref_squeeze %66 : memref<1x1x128xf32, #tpu.memory_space<vmem>> -> memref<128xf32, #tpu.memory_space<vmem>>
      %68 = tpu.memref_slice %arg15[%2] : memref<2x!tpu.dma_semaphore, #tpu.memory_space<semaphore_mem>> -> memref<1x!tpu.dma_semaphore, #tpu.memory_space<semaphore_mem>>
      %69 = tpu.memref_squeeze %68 : memref<1x!tpu.dma_semaphore, #tpu.memory_space<semaphore_mem>> -> memref<!tpu.dma_semaphore, #tpu.memory_space<semaphore_mem>>
      tpu.wait_dma2 semaphore(%69 : memref<!tpu.dma_semaphore, #tpu.memory_space<semaphore_mem>>) src(%65 : memref<128xf32, #tpu.memory_space<any>>) dst(%67 : memref<128xf32, #tpu.memory_space<vmem>>)
    }
    %c64_i32_2 = arith.constant 64 : i32
    %c1_i32_3 = arith.constant 1 : i32
    %7 = arith.addi %arg0, %c1_i32_3 : i32
    %c2_i32_4 = arith.constant 2 : i32
    %8 = arith.cmpi slt, %7, %c2_i32_4 : i32
    %9 = arith.extui %8 : i1 to i32
    %c0_i32_5 = arith.constant 0 : i32
    %10 = arith.cmpi ne, %9, %c0_i32_5 : i32
    scf.if %10 {
      %c1_i32_34 = arith.constant 1 : i32
      %62 = arith.addi %arg0, %c1_i32_34 : i32
      %c1_i32_35 = arith.constant 1 : i32
      %63 = arith.subi %c1_i32_35, %2 : i32
      %c64_i32_36 = arith.constant 64 : i32
      %64 = arith.muli %62, %c64_i32_36 : i32
      %c0_i32_37 = arith.constant 0 : i32
      %c64_i32_38 = arith.constant 64 : i32
      %65 = arith.addi %c0_i32_37, %c64_i32_38 : i32
      %c1_i32_39 = arith.constant 1 : i32
      scf.for %arg17 = %c0_i32_37 to %65 step %c1_i32_39  : i32 {
        %c1_i32_41 = arith.constant 1 : i32
        %66 = arith.muli %arg17, %c1_i32_41 : i32
        %c0_i32_42 = arith.constant 0 : i32
        %67 = arith.addi %c0_i32_42, %66 : i32
        %68 = arith.addi %64, %67 : i32
        %69 = arith.index_cast %68 : i32 to index
        %70 = memref.load %arg2[%69] : memref<128xi32, #tpu.memory_space<smem>>
        %c0_i32_43 = arith.constant 0 : i32
        %71 = tpu.memref_slice %arg12[%70, %c0_i32_43] : memref<32x128xf32, #tpu.memory_space<any>> -> memref<1x128xf32, #tpu.memory_space<any>>
        %72 = tpu.memref_squeeze %71 : memref<1x128xf32, #tpu.memory_space<any>> -> memref<128xf32, #tpu.memory_space<any>>
        %c0_i32_44 = arith.constant 0 : i32
        %73 = tpu.memref_slice %arg14[%63, %67, %c0_i32_44] : memref<2x64x128xf32, #tpu.memory_space<vmem>> -> memref<1x1x128xf32, #tpu.memory_space<vmem>>
        %74 = tpu.memref_squeeze %73 : memref<1x1x128xf32, #tpu.memory_space<vmem>> -> memref<128xf32, #tpu.memory_space<vmem>>
        %75 = tpu.memref_slice %arg15[%63] : memref<2x!tpu.dma_semaphore, #tpu.memory_space<semaphore_mem>> -> memref<1x!tpu.dma_semaphore, #tpu.memory_space<semaphore_mem>>
        %76 = tpu.memref_squeeze %75 : memref<1x!tpu.dma_semaphore, #tpu.memory_space<semaphore_mem>> -> memref<!tpu.dma_semaphore, #tpu.memory_space<semaphore_mem>>
        tpu.enqueue_dma source(%72 : memref<128xf32, #tpu.memory_space<any>>) target(%74 : memref<128xf32, #tpu.memory_space<vmem>>) target_semaphore(%76 : memref<!tpu.dma_semaphore, #tpu.memory_space<semaphore_mem>>)
      }
      %c64_i32_40 = arith.constant 64 : i32
    } else {
    }
    %c1_i32_6 = arith.constant 1 : i32
    %11 = arith.subi %arg0, %c1_i32_6 : i32
    %c0_i32_7 = arith.constant 0 : i32
    %12 = arith.maxsi %11, %c0_i32_7 : i32
    %13 = arith.index_cast %12 : i32 to index
    %14 = memref.load %arg1[%13] : memref<3xi32, #tpu.memory_space<smem>>
    %c0_i32_8 = arith.constant 0 : i32
    %15 = arith.cmpi eq, %arg0, %c0_i32_8 : i32
    %16 = arith.cmpi ne, %1, %14 : i32
    %17 = arith.ori %15, %16 : i1
    %18 = arith.extui %17 : i1 to i32
    %c0_i32_9 = arith.constant 0 : i32
    %19 = arith.cmpi ne, %18, %c0_i32_9 : i32
    scf.if %19 {
      %cst_34 = arith.constant 0.000000e+00 : f32
      %62 = vector.broadcast %cst_34 : f32 to vector<32x128xf32>
      %c0_35 = arith.constant 0 : index
      %c0_36 = arith.constant 0 : index
      %63 = vector.load %arg16[%c0_35, %c0_36] : memref<32x128xf32, #tpu.memory_space<vmem>>, vector<32x128xf32>
      tpu.vector_store %arg16[%c0_35, %c0_36], %62 {strides = array<i32>} : memref<32x128xf32, #tpu.memory_space<vmem>>, vector<32x128xf32>,
    } else {
    }
    %c0 = arith.constant 0 : index
    %c0_10 = arith.constant 0 : index
    %20 = vector.load %arg3[%c0, %c0_10] : memref<64x2xf32, #tpu.memory_space<vmem>>, vector<64x2xf32>
    %c0_11 = arith.constant 0 : index
    %c0_12 = arith.constant 0 : index
    %21 = vector.load %arg8[%c0_11, %c0_12] : memref<2x2xf32, #tpu.memory_space<vmem>>, vector<2x2xf32>
    %cst = arith.constant dense<0.000000e+00> : vector<64x2xf32>
    %22 = tpu.matmul %20, %21, %cst {dimension_numbers = #tpu.dot_dimension_numbers<[1], [0], [0], [1], [0, 0, 1, 1], [], []>} : vector<64x2xf32>, vector<2x2xf32>, vector<64x2xf32> -> vector<64x2xf32>
    %c0_13 = arith.constant 0 : index
    %c0_14 = arith.constant 0 : index
    %23 = vector.load %arg9[%c0_13, %c0_14] : memref<1x2xf32, #tpu.memory_space<vmem>>, vector<1x2xf32>
    %24 = vector.broadcast %23 : vector<1x2xf32> to vector<64x2xf32>
    %25 = arith.addf %22, %24 : vector<64x2xf32>
    %26 = math.tanh %25 : vector<64x2xf32>
    %27 = arith.mulf %26, %26 : vector<64x2xf32>
    %c0_15 = arith.constant 0 : index
    %c0_16 = arith.constant 0 : index
    %28 = vector.load %arg5[%c0_15, %c0_16] : memref<2x128xf32, #tpu.memory_space<vmem>>, vector<2x128xf32>
    %cst_17 = arith.constant dense<0.000000e+00> : vector<64x128xf32>
    %29 = tpu.matmul %27, %28, %cst_17 {dimension_numbers = #tpu.dot_dimension_numbers<[1], [0], [0], [1], [0, 0, 1, 1], [], []>} : vector<64x2xf32>, vector<2x128xf32>, vector<64x128xf32> -> vector<64x128xf32>
    %c0_18 = arith.constant 0 : index
    %c0_19 = arith.constant 0 : index
    %30 = vector.load %arg6[%c0_18, %c0_19] : memref<2x128xf32, #tpu.memory_space<vmem>>, vector<2x128xf32>
    %cst_20 = arith.constant dense<0.000000e+00> : vector<64x128xf32>
    %31 = tpu.matmul %26, %30, %cst_20 {dimension_numbers = #tpu.dot_dimension_numbers<[1], [0], [0], [1], [0, 0, 1, 1], [], []>} : vector<64x2xf32>, vector<2x128xf32>, vector<64x128xf32> -> vector<64x128xf32>
    %32 = arith.addf %29, %31 : vector<64x128xf32>
    %c0_21 = arith.constant 0 : index
    %c0_22 = arith.constant 0 : index
    %33 = vector.load %arg7[%c0_21, %c0_22] : memref<1x128xf32, #tpu.memory_space<vmem>>, vector<1x128xf32>
    %34 = vector.broadcast %33 : vector<1x128xf32> to vector<64x128xf32>
    %35 = arith.addf %32, %34 : vector<64x128xf32>
    %36 = math.exp %35 : vector<64x128xf32>
    %37 = arith.index_cast %2 : i32 to index
    %c0_23 = arith.constant 0 : index
    %c0_24 = arith.constant 0 : index
    %38 = vector.load %arg14[%37, %c0_23, %c0_24] : memref<2x64x128xf32, #tpu.memory_space<vmem>>, vector<1x64x128xf32>
    %39 = vector.shape_cast %38 : vector<1x64x128xf32> to vector<64x128xf32>
    %40 = arith.mulf %36, %39 : vector<64x128xf32>
    %41 = arith.truncf %40 : vector<64x128xf32> to vector<64x128xbf16>
    %c0_25 = arith.constant 0 : index
    %c0_26 = arith.constant 0 : index
    %42 = vector.load %arg4[%c0_25, %c0_26] : memref<8x64xi32, #tpu.memory_space<vmem>>, vector<1x64xi32>
    %43 = tpu.iota {dimensions = array<i32: 0>} : vector<32x64xi32>
    %c32_i32 = arith.constant 32 : i32
    %44 = arith.muli %1, %c32_i32 : i32
    %45 = vector.broadcast %44 : i32 to vector<32x64xi32>
    %46 = arith.addi %43, %45 : vector<32x64xi32>
    %47 = vector.broadcast %42 : vector<1x64xi32> to vector<32x64xi32>
    %48 = arith.cmpi eq, %46, %47 : vector<32x64xi32>
    %49 = arith.extui %48 : vector<32x64xi1> to vector<32x64xi32>
    %50 = arith.sitofp %49 : vector<32x64xi32> to vector<32x64xf32>
    %51 = arith.truncf %50 : vector<32x64xf32> to vector<32x64xbf16>
    %c0_27 = arith.constant 0 : index
    %c0_28 = arith.constant 0 : index
    %52 = vector.load %arg16[%c0_27, %c0_28] : memref<32x128xf32, #tpu.memory_space<vmem>>, vector<32x128xf32>
    %cst_29 = arith.constant dense<0.000000e+00> : vector<32x128xf32>
    %53 = tpu.matmul %51, %41, %cst_29 {dimension_numbers = #tpu.dot_dimension_numbers<[1], [0], [0], [1], [0, 0, 1, 1], [], []>} : vector<32x64xbf16>, vector<64x128xbf16>, vector<32x128xf32> -> vector<32x128xf32>
    %54 = arith.addf %52, %53 : vector<32x128xf32>
    %c0_30 = arith.constant 0 : index
    %c0_31 = arith.constant 0 : index
    %55 = vector.load %arg16[%c0_30, %c0_31] : memref<32x128xf32, #tpu.memory_space<vmem>>, vector<32x128xf32>
    tpu.vector_store %arg16[%c0_30, %c0_31], %54 {strides = array<i32>} : memref<32x128xf32, #tpu.memory_space<vmem>>, vector<32x128xf32>,
    %c1_i32_32 = arith.constant 1 : i32
    %56 = arith.addi %arg0, %c1_i32_32 : i32
    %57 = arith.index_cast %56 : i32 to index
    %58 = memref.load %arg1[%57] : memref<3xi32, #tpu.memory_space<smem>>
    %59 = arith.cmpi ne, %58, %1 : i32
    %60 = arith.extui %59 : i1 to i32
    %c0_i32_33 = arith.constant 0 : i32
    %61 = arith.cmpi ne, %60, %c0_i32_33 : i32
    scf.if %61 {
      %c0_34 = arith.constant 0 : index
      %c0_35 = arith.constant 0 : index
      %62 = vector.load %arg16[%c0_34, %c0_35] : memref<32x128xf32, #tpu.memory_space<vmem>>, vector<32x128xf32>
      %c0_36 = arith.constant 0 : index
      %c0_37 = arith.constant 0 : index
      %63 = vector.load %arg10[%c0_36, %c0_37] : memref<128x128xf32, #tpu.memory_space<vmem>>, vector<128x128xf32>
      %cst_38 = arith.constant dense<0.000000e+00> : vector<32x128xf32>
      %64 = tpu.matmul %62, %63, %cst_38 {dimension_numbers = #tpu.dot_dimension_numbers<[1], [0], [0], [1], [0, 0, 1, 1], [], []>} : vector<32x128xf32>, vector<128x128xf32>, vector<32x128xf32> -> vector<32x128xf32>
      %c0_39 = arith.constant 0 : index
      %c0_40 = arith.constant 0 : index
      %65 = vector.load %arg11[%c0_39, %c0_40] : memref<1x128xf32, #tpu.memory_space<vmem>>, vector<1x128xf32>
      %66 = vector.broadcast %65 : vector<1x128xf32> to vector<32x128xf32>
      %67 = arith.addf %64, %66 : vector<32x128xf32>
      %cst_41 = arith.constant 0.000000e+00 : f32
      %68 = vector.broadcast %cst_41 : f32 to vector<32x128xf32>
      %69 = arith.maximumf %67, %68 : vector<32x128xf32>
      %70 = arith.truncf %69 : vector<32x128xf32> to vector<32x128xbf16>
      %c0_42 = arith.constant 0 : index
      %c0_43 = arith.constant 0 : index
      %71 = vector.load %arg13[%c0_42, %c0_43] : memref<32x128xbf16, #tpu.memory_space<vmem>>, vector<32x128xbf16>
      tpu.vector_store %arg13[%c0_42, %c0_43], %70 {strides = array<i32>} : memref<32x128xbf16, #tpu.memory_space<vmem>>, vector<32x128xbf16>,
    } else {
    }
    return
  }
  func.func @transform_0(%arg0: i32, %arg1: memref<3xi32, #tpu.memory_space<smem>>, %arg2: memref<128xi32, #tpu.memory_space<smem>>) -> (i32, i32) {
    %c0_i32 = arith.constant 0 : i32
    %c0_i32_0 = arith.constant 0 : i32
    return %arg0, %c0_i32 : i32, i32
  }
  func.func @transform_1(%arg0: i32, %arg1: memref<3xi32, #tpu.memory_space<smem>>, %arg2: memref<128xi32, #tpu.memory_space<smem>>) -> (i32, i32) {
    %c0_i32 = arith.constant 0 : i32
    %c0_i32_0 = arith.constant 0 : i32
    return %arg0, %c0_i32 : i32, i32
  }
  func.func @transform_2(%arg0: i32, %arg1: memref<3xi32, #tpu.memory_space<smem>>, %arg2: memref<128xi32, #tpu.memory_space<smem>>) -> (i32, i32) {
    %c0_i32 = arith.constant 0 : i32
    %c0_i32_0 = arith.constant 0 : i32
    %c0_i32_1 = arith.constant 0 : i32
    return %c0_i32, %c0_i32_0 : i32, i32
  }
  func.func @transform_3(%arg0: i32, %arg1: memref<3xi32, #tpu.memory_space<smem>>, %arg2: memref<128xi32, #tpu.memory_space<smem>>) -> (i32, i32) {
    %c0_i32 = arith.constant 0 : i32
    %c0_i32_0 = arith.constant 0 : i32
    %c0_i32_1 = arith.constant 0 : i32
    return %c0_i32, %c0_i32_0 : i32, i32
  }
  func.func @transform_4(%arg0: i32, %arg1: memref<3xi32, #tpu.memory_space<smem>>, %arg2: memref<128xi32, #tpu.memory_space<smem>>) -> (i32, i32) {
    %c0_i32 = arith.constant 0 : i32
    %c0_i32_0 = arith.constant 0 : i32
    %c0_i32_1 = arith.constant 0 : i32
    return %c0_i32, %c0_i32_0 : i32, i32
  }
  func.func @transform_5(%arg0: i32, %arg1: memref<3xi32, #tpu.memory_space<smem>>, %arg2: memref<128xi32, #tpu.memory_space<smem>>) -> (i32, i32) {
    %c0_i32 = arith.constant 0 : i32
    %c0_i32_0 = arith.constant 0 : i32
    %c0_i32_1 = arith.constant 0 : i32
    return %c0_i32, %c0_i32_0 : i32, i32
  }
  func.func @transform_6(%arg0: i32, %arg1: memref<3xi32, #tpu.memory_space<smem>>, %arg2: memref<128xi32, #tpu.memory_space<smem>>) -> (i32, i32) {
    %c0_i32 = arith.constant 0 : i32
    %c0_i32_0 = arith.constant 0 : i32
    %c0_i32_1 = arith.constant 0 : i32
    return %c0_i32, %c0_i32_0 : i32, i32
  }
  func.func @transform_7(%arg0: i32, %arg1: memref<3xi32, #tpu.memory_space<smem>>, %arg2: memref<128xi32, #tpu.memory_space<smem>>) -> (i32, i32) {
    %c0_i32 = arith.constant 0 : i32
    %c0_i32_0 = arith.constant 0 : i32
    %c0_i32_1 = arith.constant 0 : i32
    return %c0_i32, %c0_i32_0 : i32, i32
  }
  func.func @transform_8(%arg0: i32, %arg1: memref<3xi32, #tpu.memory_space<smem>>, %arg2: memref<128xi32, #tpu.memory_space<smem>>) -> (i32, i32) {
    %c0_i32 = arith.constant 0 : i32
    %c0_i32_0 = arith.constant 0 : i32
    %c0_i32_1 = arith.constant 0 : i32
    return %c0_i32, %c0_i32_0 : i32, i32
  }
  func.func @transform_10(%arg0: i32, %arg1: memref<3xi32, #tpu.memory_space<smem>>, %arg2: memref<128xi32, #tpu.memory_space<smem>>) -> (i32, i32) {
    %0 = arith.index_cast %arg0 : i32 to index
    %1 = memref.load %arg1[%0] : memref<3xi32, #tpu.memory_space<smem>>
    %c0_i32 = arith.constant 0 : i32
    %c0_i32_0 = arith.constant 0 : i32
    return %1, %c0_i32 : i32, i32
  }
}

</mosaic_0001>

<llo_original>
// kernel: custom-call
$region0: #{custom-call}
  %s0 = inlined_call_operand.vmem [shape: u32[2], index: 0, kind: output, shape index: {}]

// kernel: monet_forward.8
$region0: #{monet_forward.8}
  #allocation0 [shape = 'u32[]', space=smem, size = 0x4, offset = 0x4, fixed_abs, tag = 'smem constant byte address 0x4 - core index']
  #allocation1 [shape = 'u32[144,128]{1,0:T(1,128)}', space=vmem, size = 0x12000, scoped, tag = 'internal scratch']
  %s0 = inlined_call_operand.vmem [shape: bf16[32,128], index: 0, kind: input, shape index: {}]
  %s1 = inlined_call_operand.vmem [shape: f32[128,128], index: 1, kind: input, shape index: {}]
  %s2 = inlined_call_operand.vmem [shape: f32[32,128], index: 2, kind: output, shape index: {}]
  %s3 = sld [smem:[#allocation0]]
  $region18: #{monet_forward.8} parent=0
    _
  %s5 = ssub.s32 1, %s3
  %s6 = scalar_select 0, %s5, %s3
  // Predicated region
  $region2: #{monet_forward.8} parent=0 // pred_check
    _
  $region3: #{monet_forward.8} parent=0 // pred_check_branch
    %8 = sbr.rel (0) target = $region5
  $region4: #{monet_forward.8} parent=0 // pred_region
    _
  $region5: #{monet_forward.8} parent=0 // pred_fallthru
    _
  // Predicated region
  $region6: #{monet_forward.8} parent=0 // pred_check
    _
  $region7: #{monet_forward.8} parent=0 // pred_check_branch
    %10 = sbr.rel (0) target = $region9
  $region8: #{monet_forward.8} parent=0 // pred_region
    _
  $region9: #{monet_forward.8} parent=0 // pred_fallthru
    _
  %v12 = vld [vmem:[%s0] sm:$0xf]
  %v13 = vld [vmem:[%s0 + $0x4] sm:$0xf]
  %v14 = vld [vmem:[%s0 + $0x8] sm:$0xf]
  %v15 = vld [vmem:[%s0 + $0xc] sm:$0xf]
  %v16 = vld [vmem:[%s1] sm:$0xff]
  %v17 = vld [vmem:[%s1 + $0x8] sm:$0xff]
  %v18 = vld [vmem:[%s1 + $0x10] sm:$0xff]
  %v19 = vld [vmem:[%s1 + $0x18] sm:$0xff]
  %v20 = vld [vmem:[%s1 + $0x20] sm:$0xff]
  %v21 = vld [vmem:[%s1 + $0x28] sm:$0xff]
  %v22 = vld [vmem:[%s1 + $0x30] sm:$0xff]
  %v23 = vld [vmem:[%s1 + $0x38] sm:$0xff]
  %v24 = vld [vmem:[%s1 + $0x40] sm:$0xff]
  %v25 = vld [vmem:[%s1 + $0x48] sm:$0xff]
  %v26 = vld [vmem:[%s1 + $0x50] sm:$0xff]
  %v27 = vld [vmem:[%s1 + $0x58] sm:$0xff]
  %v28 = vld [vmem:[%s1 + $0x60] sm:$0xff]
  %v29 = vld [vmem:[%s1 + $0x68] sm:$0xff]
  %v30 = vld [vmem:[%s1 + $0x70] sm:$0xff]
  %v31 = vld [vmem:[%s1 + $0x78] sm:$0xff]
  %v32 = vpack.c.bf16 %v17, %v16
  %v33 = vpack.c.bf16 %v19, %v18
  %v34 = vpack.c.bf16 %v21, %v20
  %v35 = vpack.c.bf16 %v23, %v22
  %v36 = vpack.c.bf16 %v25, %v24
  %v37 = vpack.c.bf16 %v27, %v26
  %v38 = vpack.c.bf16 %v29, %v28
  %v39 = vpack.c.bf16 %v31, %v30
  %v44 = vunpack.c.l.b16 %v12
  %v45 = vunpack.c.l.b16 %v13
  %v46 = vunpack.c.l.b16 %v14
  %v47 = vunpack.c.l.b16 %v15
  %v48 = vpack.c.b16 %v45, %v44
  %v49 = vpack.c.b16 %v47, %v46
  %52 = vmatprep.subr.bf16.mxu0 0
  %53 = vmatpush1.bf16.msra.mxu0 %v32
  %54 = vmatprep.subr.bf16.mxu0 0
  %55 = vmatpush1.bf16.msra.mxu0 %v33
  %56 = vmatprep.subr.bf16.mxu0 0
  %57 = vmatpush1.bf16.msra.mxu0 %v34
  %58 = vmatprep.subr.bf16.mxu0 0
  %59 = vmatpush1.bf16.msra.mxu0 %v35
  %60 = vmatprep.subr.bf16.mxu0 0
  %61 = vmatpush1.bf16.msra.mxu0 %v36
  %62 = vmatprep.subr.bf16.mxu0 0
  %63 = vmatpush1.bf16.msra.mxu0 %v37
  %64 = vmatprep.subr.bf16.mxu0 0
  %65 = vmatpush1.bf16.msra.mxu0 %v38
  %66 = vmatprep.subr.bf16.mxu0 0
  %67 = vmatpush1.bf16.msra.mxu0 %v39
  %68 = vmatprep.subr.bf16.mxu0 0
  %69 = vmatpush1.bf16.msra.mxu0 0
  %70 = vmatprep.subr.bf16.mxu0 0
  %71 = vmatpush1.bf16.msra.mxu0 0
  %72 = vmatprep.subr.bf16.mxu0 0
  %73 = vmatpush1.bf16.msra.mxu0 0
  %74 = vmatprep.subr.bf16.mxu0 0
  %75 = vmatpush1.bf16.msra.mxu0 0
  %76 = vmatprep.subr.bf16.mxu0 0
  %77 = vmatpush1.bf16.msra.mxu0 0
  %78 = vmatprep.subr.bf16.mxu0 0
  %79 = vmatpush1.bf16.msra.mxu0 0
  %80 = vmatprep.subr.bf16.mxu0 0
  %81 = vmatpush1.bf16.msra.mxu0 0
  %82 = vmatprep.subr.bf16.mxu0 0
  %83 = vmatpush1.bf16.msra.mxu0 0
  %84 = vmatprep.mubr.bf16.mxu0 0
  %85 = vmatmul.mubr.bf16.gmra.mrb[0].mxu0 %v48
  %v86 = vpop.f32.mrb[0].mxu0
  %v87 = vadd.f32 0.0, %v86
  %v88 = vpop.f32.mrb[0].mxu0
  %v89 = vpop.f32.mrb[0].mxu0
  %v90 = vadd.f32 0.0, %v89
  %v91 = vpop.f32.mrb[0].mxu0
  %92 = vmatprep.mubr.bf16.mxu0 0
  %93 = vmatmul.mubr.bf16.gmra.mrb[0].mxu0 %v49
  %v94 = vpop.f32.mrb[0].mxu0
  %v95 = vadd.f32 0.0, %v94
  %v96 = vpop.f32.mrb[0].mxu0
  %v97 = vpop.f32.mrb[0].mxu0
  %v98 = vadd.f32 0.0, %v97
  %v99 = vpop.f32.mrb[0].mxu0
  %100 = vdwg.mxu0
  %101 = vst [vmem:[%s2] sm:$0xff] %v87
  %102 = vst [vmem:[%s2 + $0x8] sm:$0xff] %v90
  %103 = vst [vmem:[%s2 + $0x10] sm:$0xff] %v95
  %104 = vst [vmem:[%s2 + $0x18] sm:$0xff] %v98
  // Predicated region
  $region10: #{monet_forward.8} parent=0 // pred_check
    _
  $region11: #{monet_forward.8} parent=0 // pred_check_branch
    %106 = sbr.rel (0) target = $region13
  $region12: #{monet_forward.8} parent=0 // pred_region
    _
  $region13: #{monet_forward.8} parent=0 // pred_fallthru
    _
  // Predicated region
  $region14: #{monet_forward.8} parent=0 // pred_check
    _
  $region15: #{monet_forward.8} parent=0 // pred_check_branch
    %108 = sbr.rel (0) target = $region17
  $region16: #{monet_forward.8} parent=0 // pred_region
    _
  $region17: #{monet_forward.8} parent=0 // pred_fallthru
    _

// kernel: monet_forward.7
$region0: #{monet_forward.7}
  #allocation0 [shape = 'u32[]', space=smem, size = 0x4, offset = 0x4, fixed_abs, tag = 'smem constant byte address 0x4 - core index']
  #allocation1 [shape = 'u32[144,128]{1,0:T(1,128)}', space=vmem, size = 0x12000, scoped, tag = 'internal scratch']
  %s0 = inlined_call_operand.vmem [shape: f32[32,8], index: 0, kind: input, shape index: {}]
  %s1 = inlined_call_operand.vmem [shape: f32[8,128], index: 1, kind: input, shape index: {}]
  %s2 = inlined_call_operand.vmem [shape: f32[1,128], index: 2, kind: input, shape index: {}]
  %s3 = inlined_call_operand.vmem [shape: bf16[32,128], index: 3, kind: output, shape index: {}]
  %s4 = sld [smem:[#allocation0]]
  $region22: #{monet_forward.7} parent=0
    _
  %s6 = ssub.s32 1, %s4
  %s7 = scalar_select 0, %s6, %s4
  // Predicated region
  $region2: #{monet_forward.7} parent=0 // pred_check
    _
  $region3: #{monet_forward.7} parent=0 // pred_check_branch
    %9 = sbr.rel (0) target = $region5
  $region4: #{monet_forward.7} parent=0 // pred_region
    _
  $region5: #{monet_forward.7} parent=0 // pred_fallthru
    _
  // Predicated region
  $region6: #{monet_forward.7} parent=0 // pred_check
    _
  $region7: #{monet_forward.7} parent=0 // pred_check_branch
    %11 = sbr.rel (0) target = $region9
  $region8: #{monet_forward.7} parent=0 // pred_region
    _
  $region9: #{monet_forward.7} parent=0 // pred_fallthru
    _
  // Predicated region
  $region10: #{monet_forward.7} parent=0 // pred_check
    _
  $region11: #{monet_forward.7} parent=0 // pred_check_branch
    %13 = sbr.rel (0) target = $region13
  $region12: #{monet_forward.7} parent=0 // pred_region
    _
  $region13: #{monet_forward.7} parent=0 // pred_fallthru
    _
  %v15 = vld [vmem:[%s0] sm:$0xff]
  %v16 = vld [vmem:[%s0 + $0x8] sm:$0xff]
  %v17 = vld [vmem:[%s0 + $0x10] sm:$0xff]
  %v18 = vld [vmem:[%s0 + $0x18] sm:$0xff]
  %v19 = vpack.c.bf16 %v16, %v15
  %v20 = vpack.c.bf16 %v18, %v17
  %v21 = vld [vmem:[%s1] sm:$0xff]
  %v22 = vpack.c.bf16 %v21, %v21
  %v23 = vld [vmem:[%s2] sm:$0x1]
  %v25 = vlaneseq
  %v26 = vshrl.u32 %v25, 7
  %v27 = vsub.s32 0, %v26
  %v28 = vrot.slane %v23, %v27
  %vm30 = vcmask 64512
  %v32 = vsel %vm30, %v19, 0
  %v35 = vsel %vm30, %v20, 0
  %vm37 = vcmask 1043456
  %v39 = vsel %vm37, %v22, 0
  %41 = vmatprep.subr.bf16.mxu0 0
  %42 = vmatpush1.bf16.msra.mxu0 %v39
  %43 = vmatprep.subr.bf16.mxu0 0
  %44 = vmatpush1.bf16.msra.mxu0 0
  %45 = vmatprep.subr.bf16.mxu0 0
  %46 = vmatpush1.bf16.msra.mxu0 0
  %47 = vmatprep.subr.bf16.mxu0 0
  %48 = vmatpush1.bf16.msra.mxu0 0
  %49 = vmatprep.subr.bf16.mxu0 0
  %50 = vmatpush1.bf16.msra.mxu0 0
  %51 = vmatprep.subr.bf16.mxu0 0
  %52 = vmatpush1.bf16.msra.mxu0 0
  %53 = vmatprep.subr.bf16.mxu0 0
  %54 = vmatpush1.bf16.msra.mxu0 0
  %55 = vmatprep.subr.bf16.mxu0 0
  %56 = vmatpush1.bf16.msra.mxu0 0
  %57 = vmatprep.subr.bf16.mxu0 0
  %58 = vmatpush1.bf16.msra.mxu0 0
  %59 = vmatprep.subr.bf16.mxu0 0
  %60 = vmatpush1.bf16.msra.mxu0 0
  %61 = vmatprep.subr.bf16.mxu0 0
  %62 = vmatpush1.bf16.msra.mxu0 0
  %63 = vmatprep.subr.bf16.mxu0 0
  %64 = vmatpush1.bf16.msra.mxu0 0
  %65 = vmatprep.subr.bf16.mxu0 0
  %66 = vmatpush1.bf16.msra.mxu0 0
  %67 = vmatprep.subr.bf16.mxu0 0
  %68 = vmatpush1.bf16.msra.mxu0 0
  %69 = vmatprep.subr.bf16.mxu0 0
  %70 = vmatpush1.bf16.msra.mxu0 0
  %71 = vmatprep.subr.bf16.mxu0 0
  %72 = vmatpush1.bf16.msra.mxu0 0
  %73 = vmatprep.mubr.bf16.mxu0 0
  %74 = vmatmul.mubr.bf16.gmra.mrb[0].mxu0 %v32
  %v75 = vpop.f32.mrb[0].mxu0
  %v76 = vadd.f32 %v28, %v75
  %v77 = vpop.f32.mrb[0].mxu0
  %v78 = vpop.f32.mrb[0].mxu0
  %v79 = vadd.f32 %v28, %v78
  %v80 = vpop.f32.mrb[0].mxu0
  %81 = vmatprep.mubr.bf16.mxu0 0
  %82 = vmatmul.mubr.bf16.gmra.mrb[0].mxu0 %v35
  %v83 = vpop.f32.mrb[0].mxu0
  %v84 = vadd.f32 %v28, %v83
  %v85 = vpop.f32.mrb[0].mxu0
  %v86 = vpop.f32.mrb[0].mxu0
  %v87 = vadd.f32 %v28, %v86
  %v88 = vpop.f32.mrb[0].mxu0
  %89 = vdwg.mxu0
  %v90 = vpack.c.bf16 %v79, %v76
  %v91 = vpack.c.bf16 %v87, %v84
  %v94 = vunpack.c.l.b16 %v90
  %v95 = vunpack.c.h.b16 %v90
  %v96 = vunpack.c.l.b16 %v91
  %v97 = vunpack.c.h.b16 %v91
  %v98 = vpack.c.b16 %v94, %v94
  %v99 = vpack.c.b16 %v95, %v95
  %v100 = vpack.c.b16 %v96, %v96
  %v101 = vpack.c.b16 %v97, %v97
  %106 = vst [vmem:[%s3] sm:$0xf] %v98
  %107 = vst [vmem:[%s3 + $0x4] sm:$0xf] %v99
  %108 = vst [vmem:[%s3 + $0x8] sm:$0xf] %v100
  %109 = vst [vmem:[%s3 + $0xc] sm:$0xf] %v101
  // Predicated region
  $region14: #{monet_forward.7} parent=0 // pred_check
    _
  $region15: #{monet_forward.7} parent=0 // pred_check_branch
    %111 = sbr.rel (0) target = $region17
  $region16: #{monet_forward.7} parent=0 // pred_region
    _
  $region17: #{monet_forward.7} parent=0 // pred_fallthru
    _
  // Predicated region
  $region18: #{monet_forward.7} parent=0 // pred_check
    _
  $region19: #{monet_forward.7} parent=0 // pred_check_branch
    %113 = sbr.rel (0) target = $region21
  $region20: #{monet_forward.7} parent=0 // pred_region
    _
  $region21: #{monet_forward.7} parent=0 // pred_fallthru
    _

// kernel: monet_forward.9
$region0: #{monet_forward.9}
  #allocation0 [shape = 'u32[]', space=smem, size = 0x4, offset = 0x4, fixed_abs, tag = 'smem constant byte address 0x4 - core index']
  #allocation1 [shape = 'u32[144,128]{1,0:T(1,128)}', space=vmem, size = 0x12000, scoped, tag = 'internal scratch']
  #allocation2 [shape = 'f32[2,64,128]{2,1,0:T(8,128)}', space=vmem, size = 0x10000, scoped, tag = 'scratch operand']
  #allocation3 [shape = 's32[2]{0}', space=sflag, size = 0x8, scoped, tag = 'scratch operand']
  #allocation4 [shape = 'f32[32,128]{1,0:T(8,128)}', space=vmem, size = 0x4000, scoped, tag = 'scratch operand']
  #allocation5 [shape = 's32[1]{0}', space=sflag, size = 0x4, scoped, tag = 'scoped memory for monet_forward.9']
  #allocation6 [shape = 'u8[512]{0}', space=smem, size = 0x200, scoped, tag = 'prefetched SMEM operand 0']
  #allocation7 [shape = 'u8[512]{0}', space=smem, size = 0x200, scoped, tag = 'prefetched SMEM operand 1']
  #allocation8 [shape = 's32[]', space=sflag, size = 0x4, offset = 0, fixed_abs, tag = 'sflag constant byte address 0x0 - dummy sync flag']
  #allocation9 [shape = 's32[]', space=sflag, size = 0x4, offset = 0, fixed_abs, tag = 'sflag constant byte address 0x0 - dummy sync flag']
  %s0 = inlined_call_operand.vmem [shape: s32[3], index: 0, kind: input, shape index: {}]
  %s1 = inlined_call_operand.vmem [shape: s32[128], index: 1, kind: input, shape index: {}]
  %s2 = inlined_call_operand.vmem [shape: f32[128,2], index: 2, kind: input, shape index: {}]
  %s3 = inlined_call_operand.vmem [shape: s32[16,64], index: 3, kind: input, shape index: {}]
  %s4 = inlined_call_operand.vmem [shape: f32[2,128], index: 4, kind: input, shape index: {}]
  %s5 = inlined_call_operand.vmem [shape: f32[2,128], index: 5, kind: input, shape index: {}]
  %s6 = inlined_call_operand.vmem [shape: f32[1,128], index: 6, kind: input, shape index: {}]
  %s7 = inlined_call_operand.vmem [shape: f32[2,2], index: 7, kind: input, shape index: {}]
  %s8 = inlined_call_operand.vmem [shape: f32[1,2], index: 8, kind: input, shape index: {}]
  %s9 = inlined_call_operand.vmem [shape: f32[128,128], index: 9, kind: input, shape index: {}]
  %s10 = inlined_call_operand.vmem [shape: f32[1,128], index: 10, kind: input, shape index: {}]
  %s11 = inlined_call_operand.vmem [shape: bf16[32,128], index: 11, kind: input, shape index: {}]
  %s12 = inlined_call_operand.vmem [shape: f32[32,128], index: 12, kind: input, shape index: {}]
  %s13 = inlined_call_operand.vmem [shape: bf16[32,128], index: 13, kind: output, shape index: {}]
  %s14 = sld [smem:[#allocation0]]
  $region170: #{monet_forward.9} parent=0
    _
  %s16 = ssub.s32 1, %s14
  %s17 = scalar_select 0, %s16, %s14
  %s18 = sshll.u32 %s0, 4
  %s19 = int_to_ptr.vmem [resolvable:$true] %s18
  %21 = dma.vmem_to_smem %s19, 16, [#allocation6], [#allocation5]
  %s22 = sshll.u32 %s1, 4
  %s23 = int_to_ptr.vmem [resolvable:$true] %s22
  %25 = dma.vmem_to_smem %s23, 16, [#allocation7], [#allocation5]
  %26 = dma.done [#allocation5], 32
  %27 = sfence
  loop: start=0, step=1, limit=4
  $region2: #{monet_forward.9} parent=0 // loop_pre_header
    _
  $region3: #{monet_forward.9} parent=0 // loop_header
    %s29 = sphi 0, %s33
    %p30 = scmp.ge.s32.totalorder %s29, 4
    %s39 = sphi 0, %s41
    %s42 = sphi 0, %s39
    %s43 = sphi 0, %s42
    %s59 = sphi 0, %s43
    %s65 = sphi 0, %s67
    %s68 = sphi 0, %s65
    %s69 = sphi 0, %s68
    %s85 = sphi 0, %s69
    %s89 = sphi 0, %s89
    %s91 = sphi 0, %s89
    %s92 = sphi 0, %s91
    %s106 = sphi 0, %s92
    %s110 = sphi 0, %s110
    %s112 = sphi 0, %s110
    %s113 = sphi 0, %s112
    %s127 = sphi 0, %s113
    %s131 = sphi 0, %s131
    %s133 = sphi 0, %s131
    %s134 = sphi 0, %s133
    %s148 = sphi 0, %s134
    %s152 = sphi 0, %s152
    %s154 = sphi 0, %s152
    %s155 = sphi 0, %s154
    %s169 = sphi 0, %s155
    %s173 = sphi 0, %s173
    %s175 = sphi 0, %s173
    %s176 = sphi 0, %s175
    %s190 = sphi 0, %s176
    %s194 = sphi 0, %s194
    %s196 = sphi 0, %s194
    %s197 = sphi 0, %s196
    %s211 = sphi 0, %s197
    %s215 = sphi 0, %s215
    %s217 = sphi 0, %s215
    %s218 = sphi 0, %s217
    %s232 = sphi 0, %s218
    %s240 = sphi 0, %s242
    %s243 = sphi 0, %s240
    %s244 = sphi 0, %s243
    %s260 = sphi 0, %s244
    %s268 = sphi 0, %s270
    %s271 = sphi 0, %s268
    %s272 = sphi 0, %s271
    %s288 = sphi 0, %s272
  $region4: #{monet_forward.9} parent=0 // loop_header_branch
    %32 = sbr.rel (%p30) target = $region8
  $region5: #{monet_forward.9} parent=0 // loop_body
    %s34 = ssub.s32 %s29, 1
    %s35 = ssub.s32 %s29, 2
    %s36 = sadd.s32 %s29, 1
    %s37 = ssub.s32 %s29, %s36
    %p38 = scmp.eq.s32.totalorder %s37, 0
    %s40 = sadd.s32 %s39, 1
    %s41 = scalar_select %p38, %s39, %s40
    %p44 = pneg %p38
    %p45 = scmp.eq.s32.totalorder %s29, 1
    %p46 = por %p44, %p45
    %p47 = scmp.ne.s32.totalorder %s39, %s42
    %p48 = scmp.eq.s32.totalorder %s29, 0
    %p49 = por %p47, %p48
    %p50 = scmp.ne.s32.totalorder %s39, %s42
    %p51 = scmp.eq.s32.totalorder %s34, 1
    %p52 = por %p50, %p51
    %p53 = scmp.ne.s32.totalorder %s42, %s43
    %p54 = scmp.eq.s32.totalorder %s34, 0
    %p55 = por %p53, %p54
    %p56 = scmp.ne.s32.totalorder %s42, %s43
    %p57 = scmp.eq.s32.totalorder %s35, 1
    %p58 = por %p56, %p57
    %p60 = scmp.ne.s32.totalorder %s43, %s59
    %p61 = scmp.eq.s32.totalorder %s35, 0
    %p62 = por %p60, %p61
    %s63 = ssub.s32 %s29, %s36
    %p64 = scmp.eq.s32.totalorder %s63, 0
    %s66 = sadd.s32 %s65, 1
    %s67 = scalar_select %p64, %s65, %s66
    %p70 = pneg %p64
    %p71 = scmp.eq.s32.totalorder %s29, 1
    %p72 = por %p70, %p71
    %p73 = scmp.ne.s32.totalorder %s65, %s68
    %p74 = scmp.eq.s32.totalorder %s29, 0
    %p75 = por %p73, %p74
    %p76 = scmp.ne.s32.totalorder %s65, %s68
    %p77 = scmp.eq.s32.totalorder %s34, 1
    %p78 = por %p76, %p77
    %p79 = scmp.ne.s32.totalorder %s68, %s69
    %p80 = scmp.eq.s32.totalorder %s34, 0
    %p81 = por %p79, %p80
    %p82 = scmp.ne.s32.totalorder %s68, %s69
    %p83 = scmp.eq.s32.totalorder %s35, 1
    %p84 = por %p82, %p83
    %p86 = scmp.ne.s32.totalorder %s69, %s85
    %p87 = scmp.eq.s32.totalorder %s35, 0
    %p88 = por %p86, %p87
    %s90 = sadd.s32 %s89, 1
    %p93 = scmp.eq.s32.totalorder %s29, 1
    %p94 = scmp.ne.s32.totalorder %s89, %s91
    %p95 = scmp.eq.s32.totalorder %s29, 0
    %p96 = por %p94, %p95
    %p97 = scmp.ne.s32.totalorder %s89, %s91
    %p98 = scmp.eq.s32.totalorder %s34, 1
    %p99 = por %p97, %p98
    %p100 = scmp.ne.s32.totalorder %s91, %s92
    %p101 = scmp.eq.s32.totalorder %s34, 0
    %p102 = por %p100, %p101
    %p103 = scmp.ne.s32.totalorder %s91, %s92
    %p104 = scmp.eq.s32.totalorder %s35, 1
    %p105 = por %p103, %p104
    %p107 = scmp.ne.s32.totalorder %s92, %s106
    %p108 = scmp.eq.s32.totalorder %s35, 0
    %p109 = por %p107, %p108
    %s111 = sadd.s32 %s110, 1
    %p114 = scmp.eq.s32.totalorder %s29, 1
    %p115 = scmp.ne.s32.totalorder %s110, %s112
    %p116 = scmp.eq.s32.totalorder %s29, 0
    %p117 = por %p115, %p116
    %p118 = scmp.ne.s32.totalorder %s110, %s112
    %p119 = scmp.eq.s32.totalorder %s34, 1
    %p120 = por %p118, %p119
    %p121 = scmp.ne.s32.totalorder %s112, %s113
    %p122 = scmp.eq.s32.totalorder %s34, 0
    %p123 = por %p121, %p122
    %p124 = scmp.ne.s32.totalorder %s112, %s113
    %p125 = scmp.eq.s32.totalorder %s35, 1
    %p126 = por %p124, %p125
    %p128 = scmp.ne.s32.totalorder %s113, %s127
    %p129 = scmp.eq.s32.totalorder %s35, 0
    %p130 = por %p128, %p129
    %s132 = sadd.s32 %s131, 1
    %p135 = scmp.eq.s32.totalorder %s29, 1
    %p136 = scmp.ne.s32.totalorder %s131, %s133
    %p137 = scmp.eq.s32.totalorder %s29, 0
    %p138 = por %p136, %p137
    %p139 = scmp.ne.s32.totalorder %s131, %s133
    %p140 = scmp.eq.s32.totalorder %s34, 1
    %p141 = por %p139, %p140
    %p142 = scmp.ne.s32.totalorder %s133, %s134
    %p143 = scmp.eq.s32.totalorder %s34, 0
    %p144 = por %p142, %p143
    %p145 = scmp.ne.s32.totalorder %s133, %s134
    %p146 = scmp.eq.s32.totalorder %s35, 1
    %p147 = por %p145, %p146
    %p149 = scmp.ne.s32.totalorder %s134, %s148
    %p150 = scmp.eq.s32.totalorder %s35, 0
    %p151 = por %p149, %p150
    %s153 = sadd.s32 %s152, 1
    %p156 = scmp.eq.s32.totalorder %s29, 1
    %p157 = scmp.ne.s32.totalorder %s152, %s154
    %p158 = scmp.eq.s32.totalorder %s29, 0
    %p159 = por %p157, %p158
    %p160 = scmp.ne.s32.totalorder %s152, %s154
    %p161 = scmp.eq.s32.totalorder %s34, 1
    %p162 = por %p160, %p161
    %p163 = scmp.ne.s32.totalorder %s154, %s155
    %p164 = scmp.eq.s32.totalorder %s34, 0
    %p165 = por %p163, %p164
    %p166 = scmp.ne.s32.totalorder %s154, %s155
    %p167 = scmp.eq.s32.totalorder %s35, 1
    %p168 = por %p166, %p167
    %p170 = scmp.ne.s32.totalorder %s155, %s169
    %p171 = scmp.eq.s32.totalorder %s35, 0
    %p172 = por %p170, %p171
    %s174 = sadd.s32 %s173, 1
    %p177 = scmp.eq.s32.totalorder %s29, 1
    %p178 = scmp.ne.s32.totalorder %s173, %s175
    %p179 = scmp.eq.s32.totalorder %s29, 0
    %p180 = por %p178, %p179
    %p181 = scmp.ne.s32.totalorder %s173, %s175
    %p182 = scmp.eq.s32.totalorder %s34, 1
    %p183 = por %p181, %p182
    %p184 = scmp.ne.s32.totalorder %s175, %s176
    %p185 = scmp.eq.s32.totalorder %s34, 0
    %p186 = por %p184, %p185
    %p187 = scmp.ne.s32.totalorder %s175, %s176
    %p188 = scmp.eq.s32.totalorder %s35, 1
    %p189 = por %p187, %p188
    %p191 = scmp.ne.s32.totalorder %s176, %s190
    %p192 = scmp.eq.s32.totalorder %s35, 0
    %p193 = por %p191, %p192
    %s195 = sadd.s32 %s194, 1
    %p198 = scmp.eq.s32.totalorder %s29, 1
    %p199 = scmp.ne.s32.totalorder %s194, %s196
    %p200 = scmp.eq.s32.totalorder %s29, 0
    %p201 = por %p199, %p200
    %p202 = scmp.ne.s32.totalorder %s194, %s196
    %p203 = scmp.eq.s32.totalorder %s34, 1
    %p204 = por %p202, %p203
    %p205 = scmp.ne.s32.totalorder %s196, %s197
    %p206 = scmp.eq.s32.totalorder %s34, 0
    %p207 = por %p205, %p206
    %p208 = scmp.ne.s32.totalorder %s196, %s197
    %p209 = scmp.eq.s32.totalorder %s35, 1
    %p210 = por %p208, %p209
    %p212 = scmp.ne.s32.totalorder %s197, %s211
    %p213 = scmp.eq.s32.totalorder %s35, 0
    %p214 = por %p212, %p213
    %s216 = sadd.s32 %s215, 1
    %p219 = scmp.eq.s32.totalorder %s29, 1
    %p220 = scmp.ne.s32.totalorder %s215, %s217
    %p221 = scmp.eq.s32.totalorder %s29, 0
    %p222 = por %p220, %p221
    %p223 = scmp.ne.s32.totalorder %s215, %s217
    %p224 = scmp.eq.s32.totalorder %s34, 1
    %p225 = por %p223, %p224
    %p226 = scmp.ne.s32.totalorder %s217, %s218
    %p227 = scmp.eq.s32.totalorder %s34, 0
    %p228 = por %p226, %p227
    %p229 = scmp.ne.s32.totalorder %s217, %s218
    %p230 = scmp.eq.s32.totalorder %s35, 1
    %p231 = por %p229, %p230
    %p233 = scmp.ne.s32.totalorder %s218, %s232
    %p234 = scmp.eq.s32.totalorder %s35, 0
    %p235 = por %p233, %p234
    %s236 = sld [smem:[#allocation6 + %s29]]
    %s237 = sld [smem:[#allocation6 + %s36]]
    %s238 = ssub.s32 %s236, %s237
    %p239 = scmp.eq.s32.totalorder %s238, 0
    %s241 = sadd.s32 %s240, 1
    %s242 = scalar_select %p239, %s240, %s241
    %p245 = pneg %p239
    %p246 = scmp.eq.s32.totalorder %s29, 1
    %p247 = por %p245, %p246
    %p248 = scmp.ne.s32.totalorder %s240, %s243
    %p249 = scmp.eq.s32.totalorder %s29, 0
    %p250 = por %p248, %p249
    %p251 = scmp.ne.s32.totalorder %s240, %s243
    %p252 = scmp.eq.s32.totalorder %s34, 1
    %p253 = por %p251, %p252
    %p254 = scmp.ne.s32.totalorder %s243, %s244
    %p255 = scmp.eq.s32.totalorder %s34, 0
    %p256 = por %p254, %p255
    %p257 = scmp.ne.s32.totalorder %s243, %s244
    %p258 = scmp.eq.s32.totalorder %s35, 1
    %p259 = por %p257, %p258
    %p261 = scmp.ne.s32.totalorder %s244, %s260
    %p262 = scmp.eq.s32.totalorder %s35, 0
    %p263 = por %p261, %p262
    %s264 = sld [smem:[#allocation6 + %s29]]
    %s265 = sld [smem:[#allocation6 + %s36]]
    %s266 = ssub.s32 %s264, %s265
    %p267 = scmp.eq.s32.totalorder %s266, 0
    %s269 = sadd.s32 %s268, 1
    %s270 = scalar_select %p267, %s268, %s269
    %p273 = pneg %p267
    %p274 = scmp.eq.s32.totalorder %s29, 1
    %p275 = por %p273, %p274
    %p276 = scmp.ne.s32.totalorder %s268, %s271
    %p277 = scmp.eq.s32.totalorder %s29, 0
    %p278 = por %p276, %p277
    %p279 = scmp.ne.s32.totalorder %s268, %s271
    %p280 = scmp.eq.s32.totalorder %s34, 1
    %p281 = por %p279, %p280
    %p282 = scmp.ne.s32.totalorder %s271, %s272
    %p283 = scmp.eq.s32.totalorder %s34, 0
    %p284 = por %p282, %p283
    %p285 = scmp.ne.s32.totalorder %s271, %s272
    %p286 = scmp.eq.s32.totalorder %s35, 1
    %p287 = por %p285, %p286
    %p289 = scmp.ne.s32.totalorder %s272, %s288
    %p290 = scmp.eq.s32.totalorder %s35, 0
    %p291 = por %p289, %p290
    %p292 = scmp.le.s32.totalorder 1, %s29
    %p293 = scmp.lt.s32.totalorder %s29, 3
    %p294 = pnand %p292, %p293
    %p295 = pneg %p294
    // Predicated region
    $region9: #{monet_forward.9} parent=5 // pred_check
      _
    $region10: #{monet_forward.9} parent=5 // pred_check_branch
      %297 = sbr.rel (%p294) target = $region12
    $region11: #{monet_forward.9} parent=5 // pred_region
      %s298 = ssub.s32 %s29, 1
      // Predicated region
      $region13: #{monet_forward.9} parent=11 // pred_check
        %p299 = pneg %p102
      $region14: #{monet_forward.9} parent=11 // pred_check_branch
        %301 = sbr.rel (%p299) target = $region16
      $region15: #{monet_forward.9} parent=11 // pred_region
        _
      $region16: #{monet_forward.9} parent=11 // pred_fallthru
        _
      // Predicated region
      $region17: #{monet_forward.9} parent=11 // pred_check
        %p302 = pneg %p123
      $region18: #{monet_forward.9} parent=11 // pred_check_branch
        %304 = sbr.rel (%p302) target = $region20
      $region19: #{monet_forward.9} parent=11 // pred_region
        _
      $region20: #{monet_forward.9} parent=11 // pred_fallthru
        _
      // Predicated region
      $region21: #{monet_forward.9} parent=11 // pred_check
        %p305 = pneg %p144
      $region22: #{monet_forward.9} parent=11 // pred_check_branch
        %307 = sbr.rel (%p305) target = $region24
      $region23: #{monet_forward.9} parent=11 // pred_region
        _
      $region24: #{monet_forward.9} parent=11 // pred_fallthru
        _
      // Predicated region
      $region25: #{monet_forward.9} parent=11 // pred_check
        %p308 = pneg %p165
      $region26: #{monet_forward.9} parent=11 // pred_check_branch
        %310 = sbr.rel (%p308) target = $region28
      $region27: #{monet_forward.9} parent=11 // pred_region
        _
      $region28: #{monet_forward.9} parent=11 // pred_fallthru
        _
      // Predicated region
      $region29: #{monet_forward.9} parent=11 // pred_check
        %p311 = pneg %p186
      $region30: #{monet_forward.9} parent=11 // pred_check_branch
        %313 = sbr.rel (%p311) target = $region32
      $region31: #{monet_forward.9} parent=11 // pred_region
        _
      $region32: #{monet_forward.9} parent=11 // pred_fallthru
        _
      // Predicated region
      $region33: #{monet_forward.9} parent=11 // pred_check
        %p314 = pneg %p207
      $region34: #{monet_forward.9} parent=11 // pred_check_branch
        %316 = sbr.rel (%p314) target = $region36
      $region35: #{monet_forward.9} parent=11 // pred_region
        _
      $region36: #{monet_forward.9} parent=11 // pred_fallthru
        _
      // Predicated region
      $region37: #{monet_forward.9} parent=11 // pred_check
        %p317 = pneg %p228
      $region38: #{monet_forward.9} parent=11 // pred_check_branch
        %319 = sbr.rel (%p317) target = $region40
      $region39: #{monet_forward.9} parent=11 // pred_region
        _
      $region40: #{monet_forward.9} parent=11 // pred_fallthru
        _
    $region12: #{monet_forward.9} parent=5 // pred_fallthru
      _
    %p320 = scmp.lt.s32.totalorder %s29, 2
    // Predicated region
    $region41: #{monet_forward.9} parent=5 // pred_check
      %p321 = pneg %p320
    $region42: #{monet_forward.9} parent=5 // pred_check_branch
      %323 = sbr.rel (%p321) target = $region44
    $region43: #{monet_forward.9} parent=5 // pred_region
      // Predicated region
      $region45: #{monet_forward.9} parent=43 // pred_check
        %p324 = pneg %p49
      $region46: #{monet_forward.9} parent=43 // pred_check_branch
        %326 = sbr.rel (%p324) target = $region48
      $region47: #{monet_forward.9} parent=43 // pred_region
        %s327 = smul.u32 8, %s29
        %p328 = scmp.lt.s32.totalorder %s327, 15
        %s329 = scalar_select %p328, %s327, 15
        %s330 = smul.addr %s329, 8
        %s331 = scalar_lea.vmem %s2, %s330
        %s332 = smul.u32 8, %s29
      $region48: #{monet_forward.9} parent=43 // pred_fallthru
        _
      // Predicated region
      $region49: #{monet_forward.9} parent=43 // pred_check
        %p333 = pneg %p75
      $region50: #{monet_forward.9} parent=43 // pred_check_branch
        %335 = sbr.rel (%p333) target = $region52
      $region51: #{monet_forward.9} parent=43 // pred_region
        %p336 = scmp.lt.s32.totalorder %s29, 1
        %s337 = scalar_select %p336, %s29, 1
        %s338 = smul.addr %s337, 8
        %s339 = scalar_lea.vmem %s3, %s338
      $region52: #{monet_forward.9} parent=43 // pred_fallthru
        _
      // Predicated region
      $region53: #{monet_forward.9} parent=43 // pred_check
        %p340 = pneg %p250
      $region54: #{monet_forward.9} parent=43 // pred_check_branch
        %342 = sbr.rel (%p340) target = $region56
      $region55: #{monet_forward.9} parent=43 // pred_region
        %s343 = sld [smem:[#allocation6 + %s29]]
        %s344 = smul.u32 4, %s343
        %p345 = scmp.lt.s32.totalorder %s344, 3
        %s346 = scalar_select %p345, %s344, 3
        %s347 = smul.addr %s346, 4
        %s348 = scalar_lea.vmem %s11, %s347
        %s349 = sld [smem:[#allocation6 + %s29]]
        %s350 = smul.u32 4, %s349
      $region56: #{monet_forward.9} parent=43 // pred_fallthru
        _
    $region44: #{monet_forward.9} parent=5 // pred_fallthru
      _
    %p351 = scmp.le.s32.totalorder 1, %s29
    %p352 = scmp.lt.s32.totalorder %s29, 3
    %p353 = pnand %p351, %p352
    %p354 = pneg %p353
    // Predicated region
    $region57: #{monet_forward.9} parent=5 // pred_check
      _
    $region58: #{monet_forward.9} parent=5 // pred_check_branch
      %356 = sbr.rel (%p353) target = $region60
    $region59: #{monet_forward.9} parent=5 // pred_region
      %s357 = ssub.s32 %s29, 1
      %s358 = smul.u32 8, %s34
      %p359 = scmp.lt.s32.totalorder %s358, 15
      %s360 = scalar_select %p359, %s358, 15
      %s361 = smul.addr %s360, 8
      %s362 = scalar_lea.vmem %s2, %s361
      %p363 = pneg %p55
      %p364 = pneg %p52
      %p365 = scmp.lt.s32.totalorder %s34, 1
      %s366 = scalar_select %p365, %s34, 1
      %s367 = smul.addr %s366, 8
      %s368 = scalar_lea.vmem %s3, %s367
      %p369 = pneg %p81
      %p370 = pneg %p78
      %p371 = pneg %p102
      %p372 = pneg %p99
      %p373 = pneg %p123
      %p374 = pneg %p120
      %p375 = pneg %p144
      %p376 = pneg %p141
      %p377 = pneg %p165
      %p378 = pneg %p162
      %p379 = pneg %p186
      %p380 = pneg %p183
      %p381 = pneg %p207
      %p382 = pneg %p204
      %p383 = pneg %p228
      %p384 = pneg %p225
      %s385 = sld [smem:[#allocation6 + %s34]]
      %s386 = smul.u32 4, %s385
      %p387 = scmp.lt.s32.totalorder %s386, 3
      %s388 = scalar_select %p387, %s386, 3
      %s389 = smul.addr %s388, 4
      %s390 = scalar_lea.vmem %s11, %s389
      %p391 = pneg %p256
      %p392 = pneg %p253
      %p393 = pneg %p284
      %p394 = pneg %p281
      %s395 = sld [smem:[#allocation6 + %s34]]
      %s396 = smul.u32 4, %s395
      %p397 = scmp.lt.s32.totalorder %s396, 3
      %s398 = scalar_select %p397, %s396, 3
      %s399 = smul.addr %s398, 4
      %s400 = scalar_lea.vmem %s13, %s399
      %s401 = smul.u32 8, %s34
      %p402 = scmp.lt.s32.totalorder %s401, 15
      %s403 = scalar_select %p402, %s401, 15
      %s404 = smul.addr %s403, 8
      %s405 = scalar_lea.vmem %s2, %s404
      %s406 = smul.u32 8, %s34
      %p407 = scmp.lt.s32.totalorder %s34, 1
      %s408 = scalar_select %p407, %s34, 1
      %s409 = smul.addr %s408, 8
      %s410 = scalar_lea.vmem %s3, %s409
      %s411 = sld [smem:[#allocation6 + %s34]]
      %s412 = smul.u32 4, %s411
      %p413 = scmp.lt.s32.totalorder %s412, 3
      %s414 = scalar_select %p413, %s412, 3
      %s415 = smul.addr %s414, 4
      %s416 = scalar_lea.vmem %s11, %s415
      %s417 = sld [smem:[#allocation6 + %s34]]
      %s418 = smul.u32 4, %s417
      %s419 = sld [smem:[#allocation6 + %s34]]
      %s420 = smul.u32 4, %s419
      %p421 = scmp.lt.s32.totalorder %s420, 3
      %s422 = scalar_select %p421, %s420, 3
      %s423 = smul.addr %s422, 4
      %s424 = scalar_lea.vmem %s13, %s423
      %s425 = sld [smem:[#allocation6 + %s34]]
      %s426 = smul.u32 4, %s425
      %s428 = sld [smem:[#allocation6 + %s34]]
      %p429 = scmp.lt.s32.totalorder %s34, 0
      %s430 = ssub.s32 0, %s34
      %s431 = scalar_select %p429, %s430, %s34
      %s432 = sand.u32 %s431, 1
      %s433 = ssub.s32 0, %s432
      %s434 = scalar_select %p429, %s433, %s432
      %p435 = scmp.eq.s32.totalorder %s34, 0
      // Predicated region
      $region61: #{monet_forward.9} parent=59 // pred_check
        %p436 = pneg %p435
      $region62: #{monet_forward.9} parent=59 // pred_check_branch
        %438 = sbr.rel (%p436) target = $region64
      $region63: #{monet_forward.9} parent=59 // pred_region
        loop: start=0, step=1, limit=64
        $region65: #{monet_forward.9} parent=63 // loop_pre_header
          _
        $region66: #{monet_forward.9} parent=63 // loop_header
          %s440 = sphi 0, %s444
          %p441 = scmp.ge.s32.totalorder %s440, 64
        $region67: #{monet_forward.9} parent=63 // loop_header_branch
          %443 = sbr.rel (%p441) target = $region71
        $region68: #{monet_forward.9} parent=63 // loop_body
          %s445 = sld [smem:[#allocation7 + %s440]]
          %s446 = scalar_lea.vmem %s12, %s445
          %s447 = scalar_lea.vmem [#allocation2], %s440
          %p449 = scmp.lt.u32.totalorder 1, 8
          %p450 = pneg %p449
          // Predicated region
          $region72: #{monet_forward.9} parent=68 // pred_check
            _
          $region73: #{monet_forward.9} parent=68 // pred_check_branch
            %452 = sbr.rel (%p449) target = $region75
          $region74: #{monet_forward.9} parent=68 // pred_region
            %s467 = sand.u32 1, 7
            %p468 = scmp.eq.s32.totalorder %s467, 0
            %p469 = pneg %p468
            // Predicated region
            $region87: #{monet_forward.9} parent=74 // pred_check
              _
            $region88: #{monet_forward.9} parent=74 // pred_check_branch
              %471 = sbr.rel (%p468) target = $region90
            $region89: #{monet_forward.9} parent=74 // pred_region
              %s472 = sand.u32 1, 7
              %s473 = ssub.s32 1, %s472
              %s474 = scalar_lea.vmem %s446, %s473
              %s475 = ssub.s32 1, %s472
              %s476 = scalar_lea.vmem %s447, %s475 [#allocation2]
              %s477 = sshllo.u32 0, %s472
              loop: start=0, step=1, limit=1
              $region91: #{monet_forward.9} parent=89 // loop_pre_header
                _
              $region92: #{monet_forward.9} parent=89 // loop_header
                %s479 = sphi 0, %s483
                %p480 = scmp.ge.s32.totalorder %s479, 1
                %s484 = sphi %s474, %s474
                %s485 = sphi %s476, %s476
              $region93: #{monet_forward.9} parent=89 // loop_header_branch
                %482 = sbr.rel (%p480) target = $region97
              $region94: #{monet_forward.9} parent=89 // loop_body
                %v486 = vld [vmem:[%s484] sm:%s477]
                %487 = vst [vmem:[%s485] sm:%s477] %v486
              $region95: #{monet_forward.9} parent=89 // loop_footer
                %s483 = sadd.s32 1, %s479
              $region96: #{monet_forward.9} parent=89 // loop_footer_branch
                %478 = sbr.rel target = $region92
              $region97: #{monet_forward.9} parent=89 // loop_exit
                _
            $region90: #{monet_forward.9} parent=74 // pred_fallthru
              _
          $region75: #{monet_forward.9} parent=68 // pred_fallthru
            _
          // Predicated region
          $region76: #{monet_forward.9} parent=68 // pred_check
            %p453 = pneg %p449
          $region77: #{monet_forward.9} parent=68 // pred_check_branch
            %455 = sbr.rel (%p453) target = $region79
          $region78: #{monet_forward.9} parent=68 // pred_region
            %s456 = sshllo.u32 0, 1
            loop: start=0, step=1, limit=1
            $region80: #{monet_forward.9} parent=78 // loop_pre_header
              _
            $region81: #{monet_forward.9} parent=78 // loop_header
              %s458 = sphi 0, %s462
              %p459 = scmp.ge.s32.totalorder %s458, 1
              %s463 = sphi %s446, %s446
              %s464 = sphi %s447, %s447
            $region82: #{monet_forward.9} parent=78 // loop_header_branch
              %461 = sbr.rel (%p459) target = $region86
            $region83: #{monet_forward.9} parent=78 // loop_body
              %v465 = vld [vmem:[%s463] sm:%s456]
              %466 = vst [vmem:[%s464] sm:%s456] %v465
            $region84: #{monet_forward.9} parent=78 // loop_footer
              %s462 = sadd.s32 1, %s458
            $region85: #{monet_forward.9} parent=78 // loop_footer_branch
              %457 = sbr.rel target = $region81
            $region86: #{monet_forward.9} parent=78 // loop_exit
              _
          $region79: #{monet_forward.9} parent=68 // pred_fallthru
            _
          // Predicated region
          $region98: #{monet_forward.9} parent=68 // pred_check
            _
          $region99: #{monet_forward.9} parent=68 // pred_check_branch
            %490 = sbr.rel (0) target = $region101
          $region100: #{monet_forward.9} parent=68 // pred_region
            %491 = vsyncadd [#allocation3], 16
          $region101: #{monet_forward.9} parent=68 // pred_fallthru
            _
        $region69: #{monet_forward.9} parent=63 // loop_footer
          %s444 = sadd.s32 1, %s440
        $region70: #{monet_forward.9} parent=63 // loop_footer_branch
          %439 = sbr.rel target = $region66
        $region71: #{monet_forward.9} parent=63 // loop_exit
          _
      $region64: #{monet_forward.9} parent=59 // pred_fallthru
        _
      loop: start=0, step=1, limit=64
      $region102: #{monet_forward.9} parent=59 // loop_pre_header
        _
      $region103: #{monet_forward.9} parent=59 // loop_header
        %s493 = sphi 0, %s497
        %p494 = scmp.ge.s32.totalorder %s493, 64
      $region104: #{monet_forward.9} parent=59 // loop_header_branch
        %496 = sbr.rel (%p494) target = $region108
      $region105: #{monet_forward.9} parent=59 // loop_body
        %s498 = scalar_lea.sflag [#allocation3], %s434
        %500 = dma.done %s498, 16
      $region106: #{monet_forward.9} parent=59 // loop_footer
        %s497 = sadd.s32 1, %s493
      $region107: #{monet_forward.9} parent=59 // loop_footer_branch
        %492 = sbr.rel target = $region103
      $region108: #{monet_forward.9} parent=59 // loop_exit
        _
      %s501 = sadd.s32 %s34, 1
      %p502 = scmp.lt.s32.totalorder %s501, 2
      // Predicated region
      $region109: #{monet_forward.9} parent=59 // pred_check
        %p503 = pneg %p502
      $region110: #{monet_forward.9} parent=59 // pred_check_branch
        %505 = sbr.rel (%p503) target = $region112
      $region111: #{monet_forward.9} parent=59 // pred_region
        %s506 = ssub.s32 1, %s434
        %s507 = smul.u32 %s501, 64
        loop: start=0, step=1, limit=64
        $region113: #{monet_forward.9} parent=111 // loop_pre_header
          _
        $region114: #{monet_forward.9} parent=111 // loop_header
          %s509 = sphi 0, %s513
          %p510 = scmp.ge.s32.totalorder %s509, 64
        $region115: #{monet_forward.9} parent=111 // loop_header_branch
          %512 = sbr.rel (%p510) target = $region119
        $region116: #{monet_forward.9} parent=111 // loop_body
          %s514 = sadd.s32 %s507, %s509
          %s515 = sld [smem:[#allocation7 + %s514]]
          %s516 = scalar_lea.vmem %s12, %s515
          %s517 = smul.u32 %s506, 64
          %s518 = sadd.s32 %s509, %s517
          %s519 = scalar_lea.vmem [#allocation2], %s518
          %s520 = scalar_lea.sflag [#allocation3], %s506
          %p522 = scmp.lt.u32.totalorder 1, 8
          %p523 = pneg %p522
          // Predicated region
          $region120: #{monet_forward.9} parent=116 // pred_check
            _
          $region121: #{monet_forward.9} parent=116 // pred_check_branch
            %525 = sbr.rel (%p522) target = $region123
          $region122: #{monet_forward.9} parent=116 // pred_region
            %s540 = sand.u32 1, 7
            %p541 = scmp.eq.s32.totalorder %s540, 0
            %p542 = pneg %p541
            // Predicated region
            $region135: #{monet_forward.9} parent=122 // pred_check
              _
            $region136: #{monet_forward.9} parent=122 // pred_check_branch
              %544 = sbr.rel (%p541) target = $region138
            $region137: #{monet_forward.9} parent=122 // pred_region
              %s545 = sand.u32 1, 7
              %s546 = ssub.s32 1, %s545
              %s547 = scalar_lea.vmem %s516, %s546
              %s548 = ssub.s32 1, %s545
              %s549 = scalar_lea.vmem %s519, %s548 [#allocation2]
              %s550 = sshllo.u32 0, %s545
              loop: start=0, step=1, limit=1
              $region139: #{monet_forward.9} parent=137 // loop_pre_header
                _
              $region140: #{monet_forward.9} parent=137 // loop_header
                %s552 = sphi 0, %s556
                %p553 = scmp.ge.s32.totalorder %s552, 1
                %s557 = sphi %s547, %s547
                %s558 = sphi %s549, %s549
              $region141: #{monet_forward.9} parent=137 // loop_header_branch
                %555 = sbr.rel (%p553) target = $region145
              $region142: #{monet_forward.9} parent=137 // loop_body
                %v559 = vld [vmem:[%s557] sm:%s550]
                %560 = vst [vmem:[%s558] sm:%s550] %v559
              $region143: #{monet_forward.9} parent=137 // loop_footer
                %s556 = sadd.s32 1, %s552
              $region144: #{monet_forward.9} parent=137 // loop_footer_branch
                %551 = sbr.rel target = $region140
              $region145: #{monet_forward.9} parent=137 // loop_exit
                _
            $region138: #{monet_forward.9} parent=122 // pred_fallthru
              _
          $region123: #{monet_forward.9} parent=116 // pred_fallthru
            _
          // Predicated region
          $region124: #{monet_forward.9} parent=116 // pred_check
            %p526 = pneg %p522
          $region125: #{monet_forward.9} parent=116 // pred_check_branch
            %528 = sbr.rel (%p526) target = $region127
          $region126: #{monet_forward.9} parent=116 // pred_region
            %s529 = sshllo.u32 0, 1
            loop: start=0, step=1, limit=1
            $region128: #{monet_forward.9} parent=126 // loop_pre_header
              _
            $region129: #{monet_forward.9} parent=126 // loop_header
              %s531 = sphi 0, %s535
              %p532 = scmp.ge.s32.totalorder %s531, 1
              %s536 = sphi %s516, %s516
              %s537 = sphi %s519, %s519
            $region130: #{monet_forward.9} parent=126 // loop_header_branch
              %534 = sbr.rel (%p532) target = $region134
            $region131: #{monet_forward.9} parent=126 // loop_body
              %v538 = vld [vmem:[%s536] sm:%s529]
              %539 = vst [vmem:[%s537] sm:%s529] %v538
            $region132: #{monet_forward.9} parent=126 // loop_footer
              %s535 = sadd.s32 1, %s531
            $region133: #{monet_forward.9} parent=126 // loop_footer_branch
              %530 = sbr.rel target = $region129
            $region134: #{monet_forward.9} parent=126 // loop_exit
              _
          $region127: #{monet_forward.9} parent=116 // pred_fallthru
            _
          // Predicated region
          $region146: #{monet_forward.9} parent=116 // pred_check
            _
          $region147: #{monet_forward.9} parent=116 // pred_check_branch
            %563 = sbr.rel (0) target = $region149
          $region148: #{monet_forward.9} parent=116 // pred_region
            %564 = vsyncadd %s520, 16
          $region149: #{monet_forward.9} parent=116 // pred_fallthru
            _
        $region117: #{monet_forward.9} parent=111 // loop_footer
          %s513 = sadd.s32 1, %s509
        $region118: #{monet_forward.9} parent=111 // loop_footer_branch
          %508 = sbr.rel target = $region114
        $region119: #{monet_forward.9} parent=111 // loop_exit
          _
      $region112: #{monet_forward.9} parent=59 // pred_fallthru
        _
      %s565 = ssub.s32 %s34, 1
      %p566 = scmp.gt.s32.totalorder %s565, 0
      %s567 = scalar_select %p566, %s565, 0
      %s568 = sld [smem:[#allocation6 + %s567]]
      %p569 = scmp.ne.s32.totalorder %s428, %s568
      %p570 = por %p435, %p569
      // Predicated region
      $region150: #{monet_forward.9} parent=59 // pred_check
        %p571 = pneg %p570
      $region151: #{monet_forward.9} parent=59 // pred_check_branch
        %573 = sbr.rel (%p571) target = $region153
      $region152: #{monet_forward.9} parent=59 // pred_region
        %574 = vst [vmem:[#allocation4] sm:$0xff] 0.0
        %575 = vst [vmem:[#allocation4 + $0x8] sm:$0xff] 0.0
        %576 = vst [vmem:[#allocation4 + $0x10] sm:$0xff] 0.0
        %577 = vst [vmem:[#allocation4 + $0x18] sm:$0xff] 0.0
      $region153: #{monet_forward.9} parent=59 // pred_fallthru
        _
      %v578 = vld [vmem:[%s405] sm:$0xff]
      %v579 = vld [vmem:[%s405 + $0x8] sm:$0xff]
      %v580 = vld [vmem:[%s405 + $0x10] sm:$0xff]
      %v581 = vld [vmem:[%s405 + $0x18] sm:$0xff]
      %v582 = vld [vmem:[%s405 + $0x20] sm:$0xff]
      %v583 = vld [vmem:[%s405 + $0x28] sm:$0xff]
      %v584 = vld [vmem:[%s405 + $0x30] sm:$0xff]
      %v585 = vld [vmem:[%s405 + $0x38] sm:$0xff]
      %v586 = vld [vmem:[%s7] sm:$0x3]
      %v587 = vld [vmem:[%s8] sm:$0x1]
      %v589 = vlaneseq
      %v590 = vshrl.u32 %v589, 7
      %v591 = vsub.s32 0, %v590
      %v592 = vrot.slane %v587, %v591
      %vm594 = vcmask 15360
      %v596 = vsel %vm594, %v578, 0
      %v599 = vsel %vm594, %v579, 0
      %v602 = vsel %vm594, %v580, 0
      %v605 = vsel %vm594, %v581, 0
      %v608 = vsel %vm594, %v582, 0
      %v611 = vsel %vm594, %v583, 0
      %v614 = vsel %vm594, %v584, 0
      %v617 = vsel %vm594, %v585, 0
      %vm619 = vcmask 1041408
      %v621 = vsel %vm619, %v586, 0
      %623 = vmatprep.subr.mxu0 0.0
      %624 = vmatpush1.msra.mxu0 %v621
      %625 = vmatprep.subr.mxu0 0.0
      %626 = vmatpush1.msra.mxu0 0.0
      %627 = vmatprep.subr.mxu0 0.0
      %628 = vmatpush1.msra.mxu0 0.0
      %629 = vmatprep.subr.mxu0 0.0
      %630 = vmatpush1.msra.mxu0 0.0
      %631 = vmatprep.subr.mxu0 0.0
      %632 = vmatpush1.msra.mxu0 0.0
      %633 = vmatprep.subr.mxu0 0.0
      %634 = vmatpush1.msra.mxu0 0.0
      %635 = vmatprep.subr.mxu0 0.0
      %636 = vmatpush1.msra.mxu0 0.0
      %637 = vmatprep.subr.mxu0 0.0
      %638 = vmatpush1.msra.mxu0 0.0
      %639 = vmatprep.subr.mxu0 0.0
      %640 = vmatpush1.msra.mxu0 0.0
      %641 = vmatprep.subr.mxu0 0.0
      %642 = vmatpush1.msra.mxu0 0.0
      %643 = vmatprep.subr.mxu0 0.0
      %644 = vmatpush1.msra.mxu0 0.0
      %645 = vmatprep.subr.mxu0 0.0
      %646 = vmatpush1.msra.mxu0 0.0
      %647 = vmatprep.subr.mxu0 0.0
      %648 = vmatpush1.msra.mxu0 0.0
      %649 = vmatprep.subr.mxu0 0.0
      %650 = vmatpush1.msra.mxu0 0.0
      %651 = vmatprep.subr.mxu0 0.0
      %652 = vmatpush1.msra.mxu0 0.0
      %653 = vmatprep.subr.mxu0 0.0
      %654 = vmatpush1.msra.mxu0 0.0
      %655 = vmatprep.subr.mxu0 0.0
      %656 = vmatpush1.msra.mxu0 0.0
      %657 = vmatprep.subr.mxu0 0.0
      %658 = vmatpush1.msra.mxu0 0.0
      %659 = vmatprep.subr.mxu0 0.0
      %660 = vmatpush1.msra.mxu0 0.0
      %661 = vmatprep.subr.mxu0 0.0
      %662 = vmatpush1.msra.mxu0 0.0
      %663 = vmatprep.subr.mxu0 0.0
      %664 = vmatpush1.msra.mxu0 0.0
      %665 = vmatprep.subr.mxu0 0.0
      %666 = vmatpush1.msra.mxu0 0.0
      %667 = vmatprep.subr.mxu0 0.0
      %668 = vmatpush1.msra.mxu0 0.0
      %669 = vmatprep.subr.mxu0 0.0
      %670 = vmatpush1.msra.mxu0 0.0
      %671 = vmatprep.subr.mxu0 0.0
      %672 = vmatpush1.msra.mxu0 0.0
      %673 = vmatprep.subr.mxu0 0.0
      %674 = vmatpush1.msra.mxu0 0.0
      %675 = vmatprep.subr.mxu0 0.0
      %676 = vmatpush1.msra.mxu0 0.0
      %677 = vmatprep.subr.mxu0 0.0
      %678 = vmatpush1.msra.mxu0 0.0
      %679 = vmatprep.subr.mxu0 0.0
      %680 = vmatpush1.msra.mxu0 0.0
      %681 = vmatprep.subr.mxu0 0.0
      %682 = vmatpush1.msra.mxu0 0.0
      %683 = vmatprep.subr.mxu0 0.0
      %684 = vmatpush1.msra.mxu0 0.0
      %685 = vmatprep.subr.mxu0 0.0
      %686 = vmatpush1.msra.mxu0 0.0
      %687 = vmatprep.mubr.f32.mxu0 0.0
      %688 = vmatmul.mubr.f32.gmra.mrb[0].mxu0 %v596
      %v689 = vpop.f32.mrb[0].mxu0
      %v690 = vadd.f32 %v592, %v689
      %v691 = vpop.f32.mrb[0].mxu0
      %692 = vmatprep.mubr.f32.mxu0 0.0
      %693 = vmatmul.mubr.f32.gmra.mrb[0].mxu0 %v599
      %v694 = vpop.f32.mrb[0].mxu0
      %v695 = vadd.f32 %v592, %v694
      %v696 = vpop.f32.mrb[0].mxu0
      %697 = vmatprep.mubr.f32.mxu0 0.0
      %698 = vmatmul.mubr.f32.gmra.mrb[0].mxu0 %v602
      %v699 = vpop.f32.mrb[0].mxu0
      %v700 = vadd.f32 %v592, %v699
      %v701 = vpop.f32.mrb[0].mxu0
      %702 = vmatprep.mubr.f32.mxu0 0.0
      %703 = vmatmul.mubr.f32.gmra.mrb[0].mxu0 %v605
      %v704 = vpop.f32.mrb[0].mxu0
      %v705 = vadd.f32 %v592, %v704
      %v706 = vpop.f32.mrb[0].mxu0
      %707 = vmatprep.mubr.f32.mxu0 0.0
      %708 = vmatmul.mubr.f32.gmra.mrb[0].mxu0 %v608
      %v709 = vpop.f32.mrb[0].mxu0
      %v710 = vadd.f32 %v592, %v709
      %v711 = vpop.f32.mrb[0].mxu0
      %712 = vmatprep.mubr.f32.mxu0 0.0
      %713 = vmatmul.mubr.f32.gmra.mrb[0].mxu0 %v611
      %v714 = vpop.f32.mrb[0].mxu0
      %v715 = vadd.f32 %v592, %v714
      %v716 = vpop.f32.mrb[0].mxu0
      %717 = vmatprep.mubr.f32.mxu0 0.0
      %718 = vmatmul.mubr.f32.gmra.mrb[0].mxu0 %v614
      %v719 = vpop.f32.mrb[0].mxu0
      %v720 = vadd.f32 %v592, %v719
      %v721 = vpop.f32.mrb[0].mxu0
      %722 = vmatprep.mubr.f32.mxu0 0.0
      %723 = vmatmul.mubr.f32.gmra.mrb[0].mxu0 %v617
      %v724 = vpop.f32.mrb[0].mxu0
      %v725 = vadd.f32 %v592, %v724
      %v726 = vpop.f32.mrb[0].mxu0
      %727 = vdwg.mxu0
      %v728 = vtanh.pop %v690
      %v729 = vtanh.pop %v695
      %v730 = vtanh.pop %v700
      %v731 = vtanh.pop %v705
      %v732 = vtanh.pop %v710
      %v733 = vtanh.pop %v715
      %v734 = vtanh.pop %v720
      %v735 = vtanh.pop %v725
      %v736 = vmul.f32 %v728, %v728
      %v737 = vmul.f32 %v729, %v729
      %v738 = vmul.f32 %v730, %v730
      %v739 = vmul.f32 %v731, %v731
      %v740 = vmul.f32 %v732, %v732
      %v741 = vmul.f32 %v733, %v733
      %v742 = vmul.f32 %v734, %v734
      %v743 = vmul.f32 %v735, %v735
      %v744 = vld [vmem:[%s4] sm:$0x3]
      %v745 = vld [vmem:[%s5] sm:$0x3]
      %v747 = vsel %vm594, %v728, 0
      %v750 = vsel %vm594, %v729, 0
      %v753 = vsel %vm594, %v730, 0
      %v756 = vsel %vm594, %v731, 0
      %v759 = vsel %vm594, %v732, 0
      %v762 = vsel %vm594, %v733, 0
      %v765 = vsel %vm594, %v734, 0
      %v768 = vsel %vm594, %v735, 0
      %v771 = vsel %vm619, %v745, 0
      %773 = vmatprep.subr.mxu0 0.0
      %774 = vmatpush1.msra.mxu0 %v771
      %775 = vmatprep.subr.mxu0 0.0
      %776 = vmatpush1.msra.mxu0 0.0
      %777 = vmatprep.subr.mxu0 0.0
      %778 = vmatpush1.msra.mxu0 0.0
      %779 = vmatprep.subr.mxu0 0.0
      %780 = vmatpush1.msra.mxu0 0.0
      %781 = vmatprep.subr.mxu0 0.0
      %782 = vmatpush1.msra.mxu0 0.0
      %783 = vmatprep.subr.mxu0 0.0
      %784 = vmatpush1.msra.mxu0 0.0
      %785 = vmatprep.subr.mxu0 0.0
      %786 = vmatpush1.msra.mxu0 0.0
      %787 = vmatprep.subr.mxu0 0.0
      %788 = vmatpush1.msra.mxu0 0.0
      %789 = vmatprep.subr.mxu0 0.0
      %790 = vmatpush1.msra.mxu0 0.0
      %791 = vmatprep.subr.mxu0 0.0
      %792 = vmatpush1.msra.mxu0 0.0
      %793 = vmatprep.subr.mxu0 0.0
      %794 = vmatpush1.msra.mxu0 0.0
      %795 = vmatprep.subr.mxu0 0.0
      %796 = vmatpush1.msra.mxu0 0.0
      %797 = vmatprep.subr.mxu0 0.0
      %798 = vmatpush1.msra.mxu0 0.0
      %799 = vmatprep.subr.mxu0 0.0
      %800 = vmatpush1.msra.mxu0 0.0
      %801 = vmatprep.subr.mxu0 0.0
      %802 = vmatpush1.msra.mxu0 0.0
      %803 = vmatprep.subr.mxu0 0.0
      %804 = vmatpush1.msra.mxu0 0.0
      %805 = vmatprep.subr.mxu0 0.0
      %806 = vmatpush1.msra.mxu0 0.0
      %807 = vmatprep.subr.mxu0 0.0
      %808 = vmatpush1.msra.mxu0 0.0
      %809 = vmatprep.subr.mxu0 0.0
      %810 = vmatpush1.msra.mxu0 0.0
      %811 = vmatprep.subr.mxu0 0.0
      %812 = vmatpush1.msra.mxu0 0.0
      %813 = vmatprep.subr.mxu0 0.0
      %814 = vmatpush1.msra.mxu0 0.0
      %815 = vmatprep.subr.mxu0 0.0
      %816 = vmatpush1.msra.mxu0 0.0
      %817 = vmatprep.subr.mxu0 0.0
      %818 = vmatpush1.msra.mxu0 0.0
      %819 = vmatprep.subr.mxu0 0.0
      %820 = vmatpush1.msra.mxu0 0.0
      %821 = vmatprep.subr.mxu0 0.0
      %822 = vmatpush1.msra.mxu0 0.0
      %823 = vmatprep.subr.mxu0 0.0
      %824 = vmatpush1.msra.mxu0 0.0
      %825 = vmatprep.subr.mxu0 0.0
      %826 = vmatpush1.msra.mxu0 0.0
      %827 = vmatprep.subr.mxu0 0.0
      %828 = vmatpush1.msra.mxu0 0.0
      %829 = vmatprep.subr.mxu0 0.0
      %830 = vmatpush1.msra.mxu0 0.0
      %831 = vmatprep.subr.mxu0 0.0
      %832 = vmatpush1.msra.mxu0 0.0
      %833 = vmatprep.subr.mxu0 0.0
      %834 = vmatpush1.msra.mxu0 0.0
      %835 = vmatprep.subr.mxu0 0.0
      %836 = vmatpush1.msra.mxu0 0.0
      %837 = vmatprep.mubr.f32.mxu0 0.0
      %838 = vmatmul.mubr.f32.gmra.mrb[0].mxu0 %v747
      %v839 = vpop.f32.mrb[0].mxu0
      %v840 = vadd.f32 0.0, %v839
      %v841 = vpop.f32.mrb[0].mxu0
      %842 = vmatprep.mubr.f32.mxu0 0.0
      %843 = vmatmul.mubr.f32.gmra.mrb[0].mxu0 %v750
      %v844 = vpop.f32.mrb[0].mxu0
      %v845 = vadd.f32 0.0, %v844
      %v846 = vpop.f32.mrb[0].mxu0
      %847 = vmatprep.mubr.f32.mxu0 0.0
      %848 = vmatmul.mubr.f32.gmra.mrb[0].mxu0 %v753
      %v849 = vpop.f32.mrb[0].mxu0
      %v850 = vadd.f32 0.0, %v849
      %v851 = vpop.f32.mrb[0].mxu0
      %852 = vmatprep.mubr.f32.mxu0 0.0
      %853 = vmatmul.mubr.f32.gmra.mrb[0].mxu0 %v756
      %v854 = vpop.f32.mrb[0].mxu0
      %v855 = vadd.f32 0.0, %v854
      %v856 = vpop.f32.mrb[0].mxu0
      %857 = vmatprep.mubr.f32.mxu0 0.0
      %858 = vmatmul.mubr.f32.gmra.mrb[0].mxu0 %v759
      %v859 = vpop.f32.mrb[0].mxu0
      %v860 = vadd.f32 0.0, %v859
      %v861 = vpop.f32.mrb[0].mxu0
      %862 = vmatprep.mubr.f32.mxu0 0.0
      %863 = vmatmul.mubr.f32.gmra.mrb[0].mxu0 %v762
      %v864 = vpop.f32.mrb[0].mxu0
      %v865 = vadd.f32 0.0, %v864
      %v866 = vpop.f32.mrb[0].mxu0
      %867 = vmatprep.mubr.f32.mxu0 0.0
      %868 = vmatmul.mubr.f32.gmra.mrb[0].mxu0 %v765
      %v869 = vpop.f32.mrb[0].mxu0
      %v870 = vadd.f32 0.0, %v869
      %v871 = vpop.f32.mrb[0].mxu0
      %872 = vmatprep.mubr.f32.mxu0 0.0
      %873 = vmatmul.mubr.f32.gmra.mrb[0].mxu0 %v768
      %v874 = vpop.f32.mrb[0].mxu0
      %v875 = vadd.f32 0.0, %v874
      %v876 = vpop.f32.mrb[0].mxu0
      %877 = vdwg.mxu0
      %v879 = vsel %vm594, %v736, 0
      %v882 = vsel %vm594, %v737, 0
      %v885 = vsel %vm594, %v738, 0
      %v888 = vsel %vm594, %v739, 0
      %v891 = vsel %vm594, %v740, 0
      %v894 = vsel %vm594, %v741, 0
      %v897 = vsel %vm594, %v742, 0
      %v900 = vsel %vm594, %v743, 0
      %v903 = vsel %vm619, %v744, 0
      %905 = vmatprep.subr.mxu0 0.0
      %906 = vmatpush1.msra.mxu0 %v903
      %907 = vmatprep.subr.mxu0 0.0
      %908 = vmatpush1.msra.mxu0 0.0
      %909 = vmatprep.subr.mxu0 0.0
      %910 = vmatpush1.msra.mxu0 0.0
      %911 = vmatprep.subr.mxu0 0.0
      %912 = vmatpush1.msra.mxu0 0.0
      %913 = vmatprep.subr.mxu0 0.0
      %914 = vmatpush1.msra.mxu0 0.0
      %915 = vmatprep.subr.mxu0 0.0
      %916 = vmatpush1.msra.mxu0 0.0
      %917 = vmatprep.subr.mxu0 0.0
      %918 = vmatpush1.msra.mxu0 0.0
      %919 = vmatprep.subr.mxu0 0.0
      %920 = vmatpush1.msra.mxu0 0.0
      %921 = vmatprep.subr.mxu0 0.0
      %922 = vmatpush1.msra.mxu0 0.0
      %923 = vmatprep.subr.mxu0 0.0
      %924 = vmatpush1.msra.mxu0 0.0
      %925 = vmatprep.subr.mxu0 0.0
      %926 = vmatpush1.msra.mxu0 0.0
      %927 = vmatprep.subr.mxu0 0.0
      %928 = vmatpush1.msra.mxu0 0.0
      %929 = vmatprep.subr.mxu0 0.0
      %930 = vmatpush1.msra.mxu0 0.0
      %931 = vmatprep.subr.mxu0 0.0
      %932 = vmatpush1.msra.mxu0 0.0
      %933 = vmatprep.subr.mxu0 0.0
      %934 = vmatpush1.msra.mxu0 0.0
      %935 = vmatprep.subr.mxu0 0.0
      %936 = vmatpush1.msra.mxu0 0.0
      %937 = vmatprep.subr.mxu0 0.0
      %938 = vmatpush1.msra.mxu0 0.0
      %939 = vmatprep.subr.mxu0 0.0
      %940 = vmatpush1.msra.mxu0 0.0
      %941 = vmatprep.subr.mxu0 0.0
      %942 = vmatpush1.msra.mxu0 0.0
      %943 = vmatprep.subr.mxu0 0.0
      %944 = vmatpush1.msra.mxu0 0.0
      %945 = vmatprep.subr.mxu0 0.0
      %946 = vmatpush1.msra.mxu0 0.0
      %947 = vmatprep.subr.mxu0 0.0
      %948 = vmatpush1.msra.mxu0 0.0
      %949 = vmatprep.subr.mxu0 0.0
      %950 = vmatpush1.msra.mxu0 0.0
      %951 = vmatprep.subr.mxu0 0.0
      %952 = vmatpush1.msra.mxu0 0.0
      %953 = vmatprep.subr.mxu0 0.0
      %954 = vmatpush1.msra.mxu0 0.0
      %955 = vmatprep.subr.mxu0 0.0
      %956 = vmatpush1.msra.mxu0 0.0
      %957 = vmatprep.subr.mxu0 0.0
      %958 = vmatpush1.msra.mxu0 0.0
      %959 = vmatprep.subr.mxu0 0.0
      %960 = vmatpush1.msra.mxu0 0.0
      %961 = vmatprep.subr.mxu0 0.0
      %962 = vmatpush1.msra.mxu0 0.0
      %963 = vmatprep.subr.mxu0 0.0
      %964 = vmatpush1.msra.mxu0 0.0
      %965 = vmatprep.subr.mxu0 0.0
      %966 = vmatpush1.msra.mxu0 0.0
      %967 = vmatprep.subr.mxu0 0.0
      %968 = vmatpush1.msra.mxu0 0.0
      %969 = vmatprep.mubr.f32.mxu0 0.0
      %970 = vmatmul.mubr.f32.gmra.mrb[0].mxu0 %v879
      %v971 = vpop.f32.mrb[0].mxu0
      %v972 = vadd.f32 %v840, %v971
      %v973 = vpop.f32.mrb[0].mxu0
      %974 = vmatprep.mubr.f32.mxu0 0.0
      %975 = vmatmul.mubr.f32.gmra.mrb[0].mxu0 %v882
      %v976 = vpop.f32.mrb[0].mxu0
      %v977 = vadd.f32 %v845, %v976
      %v978 = vpop.f32.mrb[0].mxu0
      %979 = vmatprep.mubr.f32.mxu0 0.0
      %980 = vmatmul.mubr.f32.gmra.mrb[0].mxu0 %v885
      %v981 = vpop.f32.mrb[0].mxu0
      %v982 = vadd.f32 %v850, %v981
      %v983 = vpop.f32.mrb[0].mxu0
      %984 = vmatprep.mubr.f32.mxu0 0.0
      %985 = vmatmul.mubr.f32.gmra.mrb[0].mxu0 %v888
      %v986 = vpop.f32.mrb[0].mxu0
      %v987 = vadd.f32 %v855, %v986
      %v988 = vpop.f32.mrb[0].mxu0
      %989 = vmatprep.mubr.f32.mxu0 0.0
      %990 = vmatmul.mubr.f32.gmra.mrb[0].mxu0 %v891
      %v991 = vpop.f32.mrb[0].mxu0
      %v992 = vadd.f32 %v860, %v991
      %v993 = vpop.f32.mrb[0].mxu0
      %994 = vmatprep.mubr.f32.mxu0 0.0
      %995 = vmatmul.mubr.f32.gmra.mrb[0].mxu0 %v894
      %v996 = vpop.f32.mrb[0].mxu0
      %v997 = vadd.f32 %v865, %v996
      %v998 = vpop.f32.mrb[0].mxu0
      %999 = vmatprep.mubr.f32.mxu0 0.0
      %1000 = vmatmul.mubr.f32.gmra.mrb[0].mxu0 %v897
      %v1001 = vpop.f32.mrb[0].mxu0
      %v1002 = vadd.f32 %v870, %v1001
      %v1003 = vpop.f32.mrb[0].mxu0
      %1004 = vmatprep.mubr.f32.mxu0 0.0
      %1005 = vmatmul.mubr.f32.gmra.mrb[0].mxu0 %v900
      %v1006 = vpop.f32.mrb[0].mxu0
      %v1007 = vadd.f32 %v875, %v1006
      %v1008 = vpop.f32.mrb[0].mxu0
      %1009 = vdwg.mxu0
      %v1010 = vld [vmem:[%s6] sm:$0x1]
      %v1012 = vlaneseq
      %v1013 = vshrl.u32 %v1012, 7
      %v1014 = vsub.s32 0, %v1013
      %v1015 = vrot.slane %v1010, %v1014
      %v1017 = vadd.f32 %v972, %v1015
      %v1018 = vadd.f32 %v977, %v1015
      %v1019 = vadd.f32 %v982, %v1015
      %v1020 = vadd.f32 %v987, %v1015
      %v1021 = vadd.f32 %v992, %v1015
      %v1022 = vadd.f32 %v997, %v1015
      %v1023 = vadd.f32 %v1002, %v1015
      %v1024 = vadd.f32 %v1007, %v1015
      %v1025 = vmul.f32 %v1017, 1.442695
      %v1026 = vpow.pop %v1025
      %v1027 = vmul.f32 %v1018, 1.442695
      %v1028 = vpow.pop %v1027
      %v1029 = vmul.f32 %v1019, 1.442695
      %v1030 = vpow.pop %v1029
      %v1031 = vmul.f32 %v1020, 1.442695
      %v1032 = vpow.pop %v1031
      %v1033 = vmul.f32 %v1021, 1.442695
      %v1034 = vpow.pop %v1033
      %v1035 = vmul.f32 %v1022, 1.442695
      %v1036 = vpow.pop %v1035
      %v1037 = vmul.f32 %v1023, 1.442695
      %v1038 = vpow.pop %v1037
      %v1039 = vmul.f32 %v1024, 1.442695
      %v1040 = vpow.pop %v1039
      %s1041 = smul.u32 %s434, 64
      %s1042 = scalar_lea.vmem [#allocation2], %s1041
      %v1043 = vld [vmem:[%s1042] sm:$0xff]
      %v1044 = vld [vmem:[%s1042 + $0x8] sm:$0xff]
      %v1045 = vld [vmem:[%s1042 + $0x10] sm:$0xff]
      %v1046 = vld [vmem:[%s1042 + $0x18] sm:$0xff]
      %v1047 = vld [vmem:[%s1042 + $0x20] sm:$0xff]
      %v1048 = vld [vmem:[%s1042 + $0x28] sm:$0xff]
      %v1049 = vld [vmem:[%s1042 + $0x30] sm:$0xff]
      %v1050 = vld [vmem:[%s1042 + $0x38] sm:$0xff]
      %v1051 = vmul.f32 %v1026, %v1043
      %v1052 = vmul.f32 %v1028, %v1044
      %v1053 = vmul.f32 %v1030, %v1045
      %v1054 = vmul.f32 %v1032, %v1046
      %v1055 = vmul.f32 %v1034, %v1047
      %v1056 = vmul.f32 %v1036, %v1048
      %v1057 = vmul.f32 %v1038, %v1049
      %v1058 = vmul.f32 %v1040, %v1050
      %v1059 = vpack.c.bf16 %v1052, %v1051
      %v1060 = vpack.c.bf16 %v1054, %v1053
      %v1061 = vpack.c.bf16 %v1056, %v1055
      %v1062 = vpack.c.bf16 %v1058, %v1057
      %v1063 = vld [vmem:[%s410] sm:$0x1]
      %v1064 = vlaneseq
      %v1065 = vshrl.u32 %v1064, 7
      %v1066 = vadd.s32 %v1065, 8
      %v1067 = vadd.s32 %v1065, 16
      %v1068 = vadd.s32 %v1065, 24
      %s1069 = smul.u32 %s428, 32
      %v1070 = vstv %s1069
      %v1071 = vadd.s32 %v1065, %v1070
      %v1072 = vadd.s32 %v1066, %v1070
      %v1073 = vadd.s32 %v1067, %v1070
      %v1074 = vadd.s32 %v1068, %v1070
      %v1075 = vlaneseq
      %v1076 = vshrl.u32 %v1075, 7
      %v1077 = vsub.s32 0, %v1076
      %v1078 = vrot.slane %v1063, %v1077
      %vm1079 = vcmp.eq.s32.totalorder %v1071, %v1078
      %vm1080 = vcmp.eq.s32.totalorder %v1072, %v1078
      %vm1081 = vcmp.eq.s32.totalorder %v1073, %v1078
      %vm1082 = vcmp.eq.s32.totalorder %v1074, %v1078
      %v1083 = vsel %vm1079, 1, 0
      %v1084 = vsel %vm1080, 1, 0
      %v1085 = vsel %vm1081, 1, 0
      %v1086 = vsel %vm1082, 1, 0
      %v1087 = vcvt.s32.f32 %v1083
      %v1088 = vcvt.s32.f32 %v1084
      %v1089 = vcvt.s32.f32 %v1085
      %v1090 = vcvt.s32.f32 %v1086
      %v1091 = vpack.c.bf16 %v1088, %v1087
      %v1092 = vpack.c.bf16 %v1090, %v1089
      %v1093 = vld [vmem:[#allocation4] sm:$0xff]
      %v1094 = vld [vmem:[#allocation4 + $0x8] sm:$0xff]
      %v1095 = vld [vmem:[#allocation4 + $0x10] sm:$0xff]
      %v1096 = vld [vmem:[#allocation4 + $0x18] sm:$0xff]
      %vm1097 = vcmask 523264
      %v1099 = vsel %vm1097, %v1091, 0
      %v1102 = vsel %vm1097, %v1092, 0
      %1104 = vmatprep.subr.bf16.mxu0 0
      %1105 = vmatpush1.bf16.msra.mxu0 %v1059
      %1106 = vmatprep.subr.bf16.mxu0 0
      %1107 = vmatpush1.bf16.msra.mxu0 %v1060
      %1108 = vmatprep.subr.bf16.mxu0 0
      %1109 = vmatpush1.bf16.msra.mxu0 %v1061
      %1110 = vmatprep.subr.bf16.mxu0 0
      %1111 = vmatpush1.bf16.msra.mxu0 %v1062
      %1112 = vmatprep.subr.bf16.mxu0 0
      %1113 = vmatpush1.bf16.msra.mxu0 0
      %1114 = vmatprep.subr.bf16.mxu0 0
      %1115 = vmatpush1.bf16.msra.mxu0 0
      %1116 = vmatprep.subr.bf16.mxu0 0
      %1117 = vmatpush1.bf16.msra.mxu0 0
      %1118 = vmatprep.subr.bf16.mxu0 0
      %1119 = vmatpush1.bf16.msra.mxu0 0
      %1120 = vmatprep.subr.bf16.mxu0 0
      %1121 = vmatpush1.bf16.msra.mxu0 0
      %1122 = vmatprep.subr.bf16.mxu0 0
      %1123 = vmatpush1.bf16.msra.mxu0 0
      %1124 = vmatprep.subr.bf16.mxu0 0
      %1125 = vmatpush1.bf16.msra.mxu0 0
      %1126 = vmatprep.subr.bf16.mxu0 0
      %1127 = vmatpush1.bf16.msra.mxu0 0
      %1128 = vmatprep.subr.bf16.mxu0 0
      %1129 = vmatpush1.bf16.msra.mxu0 0
      %1130 = vmatprep.subr.bf16.mxu0 0
      %1131 = vmatpush1.bf16.msra.mxu0 0
      %1132 = vmatprep.subr.bf16.mxu0 0
      %1133 = vmatpush1.bf16.msra.mxu0 0
      %1134 = vmatprep.subr.bf16.mxu0 0
      %1135 = vmatpush1.bf16.msra.mxu0 0
      %1136 = vmatprep.mubr.bf16.mxu0 0
      %1137 = vmatmul.mubr.bf16.gmra.mrb[0].mxu0 %v1099
      %v1138 = vpop.f32.mrb[0].mxu0
      %v1139 = vadd.f32 0.0, %v1138
      %v1140 = vpop.f32.mrb[0].mxu0
      %v1141 = vpop.f32.mrb[0].mxu0
      %v1142 = vadd.f32 0.0, %v1141
      %v1143 = vpop.f32.mrb[0].mxu0
      %1144 = vmatprep.mubr.bf16.mxu0 0
      %1145 = vmatmul.mubr.bf16.gmra.mrb[0].mxu0 %v1102
      %v1146 = vpop.f32.mrb[0].mxu0
      %v1147 = vadd.f32 0.0, %v1146
      %v1148 = vpop.f32.mrb[0].mxu0
      %v1149 = vpop.f32.mrb[0].mxu0
      %v1150 = vadd.f32 0.0, %v1149
      %v1151 = vpop.f32.mrb[0].mxu0
      %1152 = vdwg.mxu0
      %v1153 = vadd.f32 %v1093, %v1139
      %v1154 = vadd.f32 %v1094, %v1142
      %v1155 = vadd.f32 %v1095, %v1147
      %v1156 = vadd.f32 %v1096, %v1150
      %1157 = vst [vmem:[#allocation4] sm:$0xff] %v1153
      %1158 = vst [vmem:[#allocation4 + $0x8] sm:$0xff] %v1154
      %1159 = vst [vmem:[#allocation4 + $0x10] sm:$0xff] %v1155
      %1160 = vst [vmem:[#allocation4 + $0x18] sm:$0xff] %v1156
      %s1161 = sld [smem:[#allocation6 + %s501]]
      %p1162 = scmp.ne.s32.totalorder %s1161, %s428
      // Predicated region
      $region154: #{monet_forward.9} parent=59 // pred_check
        %p1163 = pneg %p1162
      $region155: #{monet_forward.9} parent=59 // pred_check_branch
        %1165 = sbr.rel (%p1163) target = $region157
      $region156: #{monet_forward.9} parent=59 // pred_region
        %v1166 = vld [vmem:[#allocation4] sm:$0xff]
        %v1167 = vld [vmem:[#allocation4 + $0x8] sm:$0xff]
        %v1168 = vld [vmem:[#allocation4 + $0x10] sm:$0xff]
        %v1169 = vld [vmem:[#allocation4 + $0x18] sm:$0xff]
        %v1170 = vld [vmem:[%s9] sm:$0xff]
        %v1171 = vld [vmem:[%s9 + $0x8] sm:$0xff]
        %v1172 = vld [vmem:[%s9 + $0x10] sm:$0xff]
        %v1173 = vld [vmem:[%s9 + $0x18] sm:$0xff]
        %v1174 = vld [vmem:[%s9 + $0x20] sm:$0xff]
        %v1175 = vld [vmem:[%s9 + $0x28] sm:$0xff]
        %v1176 = vld [vmem:[%s9 + $0x30] sm:$0xff]
        %v1177 = vld [vmem:[%s9 + $0x38] sm:$0xff]
        %v1178 = vld [vmem:[%s9 + $0x40] sm:$0xff]
        %v1179 = vld [vmem:[%s9 + $0x48] sm:$0xff]
        %v1180 = vld [vmem:[%s9 + $0x50] sm:$0xff]
        %v1181 = vld [vmem:[%s9 + $0x58] sm:$0xff]
        %v1182 = vld [vmem:[%s9 + $0x60] sm:$0xff]
        %v1183 = vld [vmem:[%s9 + $0x68] sm:$0xff]
        %v1184 = vld [vmem:[%s9 + $0x70] sm:$0xff]
        %v1185 = vld [vmem:[%s9 + $0x78] sm:$0xff]
        %v1186 = vld [vmem:[%s10] sm:$0x1]
        %v1188 = vlaneseq
        %v1189 = vshrl.u32 %v1188, 7
        %v1190 = vsub.s32 0, %v1189
        %v1191 = vrot.slane %v1186, %v1190
        %1193 = vmatprep.subr.mxu0 0.0
        %1194 = vmatpush1.msra.mxu0 %v1170
        %1195 = vmatprep.subr.mxu0 0.0
        %1196 = vmatpush1.msra.mxu0 %v1171
        %1197 = vmatprep.subr.mxu0 0.0
        %1198 = vmatpush1.msra.mxu0 %v1172
        %1199 = vmatprep.subr.mxu0 0.0
        %1200 = vmatpush1.msra.mxu0 %v1173
        %1201 = vmatprep.subr.mxu0 0.0
        %1202 = vmatpush1.msra.mxu0 %v1174
        %1203 = vmatprep.subr.mxu0 0.0
        %1204 = vmatpush1.msra.mxu0 %v1175
        %1205 = vmatprep.subr.mxu0 0.0
        %1206 = vmatpush1.msra.mxu0 %v1176
        %1207 = vmatprep.subr.mxu0 0.0
        %1208 = vmatpush1.msra.mxu0 %v1177
        %1209 = vmatprep.subr.mxu0 0.0
        %1210 = vmatpush1.msra.mxu0 %v1178
        %1211 = vmatprep.subr.mxu0 0.0
        %1212 = vmatpush1.msra.mxu0 %v1179
        %1213 = vmatprep.subr.mxu0 0.0
        %1214 = vmatpush1.msra.mxu0 %v1180
        %1215 = vmatprep.subr.mxu0 0.0
        %1216 = vmatpush1.msra.mxu0 %v1181
        %1217 = vmatprep.subr.mxu0 0.0
        %1218 = vmatpush1.msra.mxu0 %v1182
        %1219 = vmatprep.subr.mxu0 0.0
        %1220 = vmatpush1.msra.mxu0 %v1183
        %1221 = vmatprep.subr.mxu0 0.0
        %1222 = vmatpush1.msra.mxu0 %v1184
        %1223 = vmatprep.subr.mxu0 0.0
        %1224 = vmatpush1.msra.mxu0 %v1185
        %1225 = vmatprep.subr.mxu0 0.0
        %1226 = vmatpush1.msra.mxu0 0.0
        %1227 = vmatprep.subr.mxu0 0.0
        %1228 = vmatpush1.msra.mxu0 0.0
        %1229 = vmatprep.subr.mxu0 0.0
        %1230 = vmatpush1.msra.mxu0 0.0
        %1231 = vmatprep.subr.mxu0 0.0
        %1232 = vmatpush1.msra.mxu0 0.0
        %1233 = vmatprep.subr.mxu0 0.0
        %1234 = vmatpush1.msra.mxu0 0.0
        %1235 = vmatprep.subr.mxu0 0.0
        %1236 = vmatpush1.msra.mxu0 0.0
        %1237 = vmatprep.subr.mxu0 0.0
        %1238 = vmatpush1.msra.mxu0 0.0
        %1239 = vmatprep.subr.mxu0 0.0
        %1240 = vmatpush1.msra.mxu0 0.0
        %1241 = vmatprep.subr.mxu0 0.0
        %1242 = vmatpush1.msra.mxu0 0.0
        %1243 = vmatprep.subr.mxu0 0.0
        %1244 = vmatpush1.msra.mxu0 0.0
        %1245 = vmatprep.subr.mxu0 0.0
        %1246 = vmatpush1.msra.mxu0 0.0
        %1247 = vmatprep.subr.mxu0 0.0
        %1248 = vmatpush1.msra.mxu0 0.0
        %1249 = vmatprep.subr.mxu0 0.0
        %1250 = vmatpush1.msra.mxu0 0.0
        %1251 = vmatprep.subr.mxu0 0.0
        %1252 = vmatpush1.msra.mxu0 0.0
        %1253 = vmatprep.subr.mxu0 0.0
        %1254 = vmatpush1.msra.mxu0 0.0
        %1255 = vmatprep.subr.mxu0 0.0
        %1256 = vmatpush1.msra.mxu0 0.0
        %1257 = vmatprep.mubr.f32.mxu0 0.0
        %1258 = vmatmul.mubr.f32.gmra.mrb[0].mxu0 %v1166
        %v1259 = vpop.f32.mrb[0].mxu0
        %v1260 = vadd.f32 %v1191, %v1259
        %v1261 = vpop.f32.mrb[0].mxu0
        %1262 = vmatprep.mubr.f32.mxu0 0.0
        %1263 = vmatmul.mubr.f32.gmra.mrb[0].mxu0 %v1167
        %v1264 = vpop.f32.mrb[0].mxu0
        %v1265 = vadd.f32 %v1191, %v1264
        %v1266 = vpop.f32.mrb[0].mxu0
        %1267 = vmatprep.mubr.f32.mxu0 0.0
        %1268 = vmatmul.mubr.f32.gmra.mrb[0].mxu0 %v1168
        %v1269 = vpop.f32.mrb[0].mxu0
        %v1270 = vadd.f32 %v1191, %v1269
        %v1271 = vpop.f32.mrb[0].mxu0
        %1272 = vmatprep.mubr.f32.mxu0 0.0
        %1273 = vmatmul.mubr.f32.gmra.mrb[0].mxu0 %v1169
        %v1274 = vpop.f32.mrb[0].mxu0
        %v1275 = vadd.f32 %v1191, %v1274
        %v1276 = vpop.f32.mrb[0].mxu0
        %1277 = vdwg.mxu0
        %v1278 = vmax.f32 %v1260, 0.0
        %v1279 = vmax.f32 %v1265, 0.0
        %v1280 = vmax.f32 %v1270, 0.0
        %v1281 = vmax.f32 %v1275, 0.0
        %v1282 = vld [vmem:[%s416] sm:$0xf]
        %v1283 = vld [vmem:[%s416 + $0x4] sm:$0xf]
        %v1284 = vld [vmem:[%s416 + $0x8] sm:$0xf]
        %v1285 = vld [vmem:[%s416 + $0xc] sm:$0xf]
        %v1286 = vunpack.c.l.bf16 %v1282
        %v1287 = vunpack.c.l.bf16 %v1283
        %v1288 = vunpack.c.l.bf16 %v1284
        %v1289 = vunpack.c.l.bf16 %v1285
        %v1290 = vadd.f32 %v1278, %v1286
        %v1291 = vadd.f32 %v1279, %v1287
        %v1292 = vadd.f32 %v1280, %v1288
        %v1293 = vadd.f32 %v1281, %v1289
        %v1294 = vpack.c.bf16 %v1291, %v1290
        %v1295 = vpack.c.bf16 %v1293, %v1292
        %v1298 = vunpack.c.l.b16 %v1294
        %v1299 = vunpack.c.h.b16 %v1294
        %v1300 = vunpack.c.l.b16 %v1295
        %v1301 = vunpack.c.h.b16 %v1295
        %v1302 = vpack.c.b16 %v1298, %v1298
        %v1303 = vpack.c.b16 %v1299, %v1299
        %v1304 = vpack.c.b16 %v1300, %v1300
        %v1305 = vpack.c.b16 %v1301, %v1301
        %1310 = vst [vmem:[%s424] sm:$0xf] %v1302
        %1311 = vst [vmem:[%s424 + $0x4] sm:$0xf] %v1303
        %1312 = vst [vmem:[%s424 + $0x8] sm:$0xf] %v1304
        %1313 = vst [vmem:[%s424 + $0xc] sm:$0xf] %v1305
      $region157: #{monet_forward.9} parent=59 // pred_fallthru
        _
      %s1314 = sld [smem:[#allocation6 + %s34]]
      %s1315 = smul.u32 4, %s1314
      %p1316 = scmp.lt.s32.totalorder %s1315, 3
      %s1317 = scalar_select %p1316, %s1315, 3
      %s1318 = smul.addr %s1317, 4
      %s1319 = scalar_lea.vmem %s13, %s1318
      // Predicated region
      $region158: #{monet_forward.9} parent=59 // pred_check
        %p1320 = pneg %p281
      $region159: #{monet_forward.9} parent=59 // pred_check_branch
        %1322 = sbr.rel (%p1320) target = $region161
      $region160: #{monet_forward.9} parent=59 // pred_region
        %s1323 = sld [smem:[#allocation6 + %s34]]
        %s1324 = smul.u32 4, %s1323
      $region161: #{monet_forward.9} parent=59 // pred_fallthru
        _
    $region60: #{monet_forward.9} parent=5 // pred_fallthru
      _
    %p1325 = scmp.le.s32.totalorder 2, %s29
    // Predicated region
    $region162: #{monet_forward.9} parent=5 // pred_check
      %p1326 = pneg %p1325
    $region163: #{monet_forward.9} parent=5 // pred_check_branch
      %1328 = sbr.rel (%p1326) target = $region165
    $region164: #{monet_forward.9} parent=5 // pred_region
      %s1329 = ssub.s32 %s29, 2
      // Predicated region
      $region166: #{monet_forward.9} parent=164 // pred_check
        %p1330 = pneg %p287
      $region167: #{monet_forward.9} parent=164 // pred_check_branch
        %1332 = sbr.rel (%p1330) target = $region169
      $region168: #{monet_forward.9} parent=164 // pred_region
        %s1333 = sld [smem:[#allocation6 + %s35]]
        %s1334 = smul.u32 4, %s1333
        %p1335 = scmp.lt.s32.totalorder %s1334, 3
        %s1336 = scalar_select %p1335, %s1334, 3
        %s1337 = smul.addr %s1336, 4
        %s1338 = scalar_lea.vmem %s13, %s1337
      $region169: #{monet_forward.9} parent=164 // pred_fallthru
        _
    $region165: #{monet_forward.9} parent=5 // pred_fallthru
      _
  $region6: #{monet_forward.9} parent=0 // loop_footer
    %s33 = sadd.s32 1, %s29
  $region7: #{monet_forward.9} parent=0 // loop_footer_branch
    %28 = sbr.rel target = $region3
  $region8: #{monet_forward.9} parent=0 // loop_exit
    _
  %1339 = vsyncmov [#allocation3]
  %s1340 = vpop.sfrf %1339
  %p1341 = scmp.eq.s32.totalorder %s1340, 0
  %p1342 = pneg %p1341
  %1344 = shalt.err (%p1342)
  %s1345 = scalar_lea.sflag [#allocation3], 1
  %1346 = vsyncmov %s1345
  %s1347 = vpop.sfrf %1346
  %p1348 = scmp.eq.s32.totalorder %s1347, 0
  %p1349 = pneg %p1348
  %1351 = shalt.err (%p1349)

// kernel: monet_forward.13
$region0: #{monet_forward.13}
  #allocation0 [shape = 'u32[]', space=smem, size = 0x4, offset = 0x4, fixed_abs, tag = 'smem constant byte address 0x4 - core index']
  #allocation1 [shape = 'u32[144,128]{1,0:T(1,128)}', space=vmem, size = 0x12000, scoped, tag = 'internal scratch']
  #allocation2 [shape = 'f32[2,64,128]{2,1,0:T(8,128)}', space=vmem, size = 0x10000, scoped, tag = 'scratch operand']
  #allocation3 [shape = 's32[2]{0}', space=sflag, size = 0x8, scoped, tag = 'scratch operand']
  #allocation4 [shape = 'f32[32,128]{1,0:T(8,128)}', space=vmem, size = 0x4000, scoped, tag = 'scratch operand']
  #allocation5 [shape = 's32[1]{0}', space=sflag, size = 0x4, scoped, tag = 'scoped memory for monet_forward.13']
  #allocation6 [shape = 'u8[512]{0}', space=smem, size = 0x200, scoped, tag = 'prefetched SMEM operand 0']
  #allocation7 [shape = 'u8[512]{0}', space=smem, size = 0x200, scoped, tag = 'prefetched SMEM operand 1']
  #allocation8 [shape = 's32[]', space=sflag, size = 0x4, offset = 0, fixed_abs, tag = 'sflag constant byte address 0x0 - dummy sync flag']
  #allocation9 [shape = 's32[]', space=sflag, size = 0x4, offset = 0, fixed_abs, tag = 'sflag constant byte address 0x0 - dummy sync flag']
  %s0 = inlined_call_operand.vmem [shape: s32[3], index: 0, kind: input, shape index: {}]
  %s1 = inlined_call_operand.vmem [shape: s32[128], index: 1, kind: input, shape index: {}]
  %s2 = inlined_call_operand.vmem [shape: f32[128,2], index: 2, kind: input, shape index: {}]
  %s3 = inlined_call_operand.vmem [shape: s32[16,64], index: 3, kind: input, shape index: {}]
  %s4 = inlined_call_operand.vmem [shape: f32[2,128], index: 4, kind: input, shape index: {}]
  %s5 = inlined_call_operand.vmem [shape: f32[2,128], index: 5, kind: input, shape index: {}]
  %s6 = inlined_call_operand.vmem [shape: f32[1,128], index: 6, kind: input, shape index: {}]
  %s7 = inlined_call_operand.vmem [shape: f32[2,2], index: 7, kind: input, shape index: {}]
  %s8 = inlined_call_operand.vmem [shape: f32[1,2], index: 8, kind: input, shape index: {}]
  %s9 = inlined_call_operand.vmem [shape: f32[128,128], index: 9, kind: input, shape index: {}]
  %s10 = inlined_call_operand.vmem [shape: f32[1,128], index: 10, kind: input, shape index: {}]
  %s11 = inlined_call_operand.vmem [shape: f32[32,128], index: 11, kind: input, shape index: {}]
  %s12 = inlined_call_operand.vmem [shape: bf16[32,128], index: 12, kind: output, shape index: {}]
  %s13 = sld [smem:[#allocation0]]
  $region166: #{monet_forward.13} parent=0
    _
  %s15 = ssub.s32 1, %s13
  %s16 = scalar_select 0, %s15, %s13
  %s17 = sshll.u32 %s0, 4
  %s18 = int_to_ptr.vmem [resolvable:$true] %s17
  %20 = dma.vmem_to_smem %s18, 16, [#allocation6], [#allocation5]
  %s21 = sshll.u32 %s1, 4
  %s22 = int_to_ptr.vmem [resolvable:$true] %s21
  %24 = dma.vmem_to_smem %s22, 16, [#allocation7], [#allocation5]
  %25 = dma.done [#allocation5], 32
  %26 = sfence
  loop: start=0, step=1, limit=4
  $region2: #{monet_forward.13} parent=0 // loop_pre_header
    _
  $region3: #{monet_forward.13} parent=0 // loop_header
    %s28 = sphi 0, %s32
    %p29 = scmp.ge.s32.totalorder %s28, 4
    %s38 = sphi 0, %s40
    %s41 = sphi 0, %s38
    %s42 = sphi 0, %s41
    %s58 = sphi 0, %s42
    %s64 = sphi 0, %s66
    %s67 = sphi 0, %s64
    %s68 = sphi 0, %s67
    %s84 = sphi 0, %s68
    %s88 = sphi 0, %s88
    %s90 = sphi 0, %s88
    %s91 = sphi 0, %s90
    %s105 = sphi 0, %s91
    %s109 = sphi 0, %s109
    %s111 = sphi 0, %s109
    %s112 = sphi 0, %s111
    %s126 = sphi 0, %s112
    %s130 = sphi 0, %s130
    %s132 = sphi 0, %s130
    %s133 = sphi 0, %s132
    %s147 = sphi 0, %s133
    %s151 = sphi 0, %s151
    %s153 = sphi 0, %s151
    %s154 = sphi 0, %s153
    %s168 = sphi 0, %s154
    %s172 = sphi 0, %s172
    %s174 = sphi 0, %s172
    %s175 = sphi 0, %s174
    %s189 = sphi 0, %s175
    %s193 = sphi 0, %s193
    %s195 = sphi 0, %s193
    %s196 = sphi 0, %s195
    %s210 = sphi 0, %s196
    %s214 = sphi 0, %s214
    %s216 = sphi 0, %s214
    %s217 = sphi 0, %s216
    %s231 = sphi 0, %s217
    %s239 = sphi 0, %s241
    %s242 = sphi 0, %s239
    %s243 = sphi 0, %s242
    %s259 = sphi 0, %s243
  $region4: #{monet_forward.13} parent=0 // loop_header_branch
    %31 = sbr.rel (%p29) target = $region8
  $region5: #{monet_forward.13} parent=0 // loop_body
    %s33 = ssub.s32 %s28, 1
    %s34 = ssub.s32 %s28, 2
    %s35 = sadd.s32 %s28, 1
    %s36 = ssub.s32 %s28, %s35
    %p37 = scmp.eq.s32.totalorder %s36, 0
    %s39 = sadd.s32 %s38, 1
    %s40 = scalar_select %p37, %s38, %s39
    %p43 = pneg %p37
    %p44 = scmp.eq.s32.totalorder %s28, 1
    %p45 = por %p43, %p44
    %p46 = scmp.ne.s32.totalorder %s38, %s41
    %p47 = scmp.eq.s32.totalorder %s28, 0
    %p48 = por %p46, %p47
    %p49 = scmp.ne.s32.totalorder %s38, %s41
    %p50 = scmp.eq.s32.totalorder %s33, 1
    %p51 = por %p49, %p50
    %p52 = scmp.ne.s32.totalorder %s41, %s42
    %p53 = scmp.eq.s32.totalorder %s33, 0
    %p54 = por %p52, %p53
    %p55 = scmp.ne.s32.totalorder %s41, %s42
    %p56 = scmp.eq.s32.totalorder %s34, 1
    %p57 = por %p55, %p56
    %p59 = scmp.ne.s32.totalorder %s42, %s58
    %p60 = scmp.eq.s32.totalorder %s34, 0
    %p61 = por %p59, %p60
    %s62 = ssub.s32 %s28, %s35
    %p63 = scmp.eq.s32.totalorder %s62, 0
    %s65 = sadd.s32 %s64, 1
    %s66 = scalar_select %p63, %s64, %s65
    %p69 = pneg %p63
    %p70 = scmp.eq.s32.totalorder %s28, 1
    %p71 = por %p69, %p70
    %p72 = scmp.ne.s32.totalorder %s64, %s67
    %p73 = scmp.eq.s32.totalorder %s28, 0
    %p74 = por %p72, %p73
    %p75 = scmp.ne.s32.totalorder %s64, %s67
    %p76 = scmp.eq.s32.totalorder %s33, 1
    %p77 = por %p75, %p76
    %p78 = scmp.ne.s32.totalorder %s67, %s68
    %p79 = scmp.eq.s32.totalorder %s33, 0
    %p80 = por %p78, %p79
    %p81 = scmp.ne.s32.totalorder %s67, %s68
    %p82 = scmp.eq.s32.totalorder %s34, 1
    %p83 = por %p81, %p82
    %p85 = scmp.ne.s32.totalorder %s68, %s84
    %p86 = scmp.eq.s32.totalorder %s34, 0
    %p87 = por %p85, %p86
    %s89 = sadd.s32 %s88, 1
    %p92 = scmp.eq.s32.totalorder %s28, 1
    %p93 = scmp.ne.s32.totalorder %s88, %s90
    %p94 = scmp.eq.s32.totalorder %s28, 0
    %p95 = por %p93, %p94
    %p96 = scmp.ne.s32.totalorder %s88, %s90
    %p97 = scmp.eq.s32.totalorder %s33, 1
    %p98 = por %p96, %p97
    %p99 = scmp.ne.s32.totalorder %s90, %s91
    %p100 = scmp.eq.s32.totalorder %s33, 0
    %p101 = por %p99, %p100
    %p102 = scmp.ne.s32.totalorder %s90, %s91
    %p103 = scmp.eq.s32.totalorder %s34, 1
    %p104 = por %p102, %p103
    %p106 = scmp.ne.s32.totalorder %s91, %s105
    %p107 = scmp.eq.s32.totalorder %s34, 0
    %p108 = por %p106, %p107
    %s110 = sadd.s32 %s109, 1
    %p113 = scmp.eq.s32.totalorder %s28, 1
    %p114 = scmp.ne.s32.totalorder %s109, %s111
    %p115 = scmp.eq.s32.totalorder %s28, 0
    %p116 = por %p114, %p115
    %p117 = scmp.ne.s32.totalorder %s109, %s111
    %p118 = scmp.eq.s32.totalorder %s33, 1
    %p119 = por %p117, %p118
    %p120 = scmp.ne.s32.totalorder %s111, %s112
    %p121 = scmp.eq.s32.totalorder %s33, 0
    %p122 = por %p120, %p121
    %p123 = scmp.ne.s32.totalorder %s111, %s112
    %p124 = scmp.eq.s32.totalorder %s34, 1
    %p125 = por %p123, %p124
    %p127 = scmp.ne.s32.totalorder %s112, %s126
    %p128 = scmp.eq.s32.totalorder %s34, 0
    %p129 = por %p127, %p128
    %s131 = sadd.s32 %s130, 1
    %p134 = scmp.eq.s32.totalorder %s28, 1
    %p135 = scmp.ne.s32.totalorder %s130, %s132
    %p136 = scmp.eq.s32.totalorder %s28, 0
    %p137 = por %p135, %p136
    %p138 = scmp.ne.s32.totalorder %s130, %s132
    %p139 = scmp.eq.s32.totalorder %s33, 1
    %p140 = por %p138, %p139
    %p141 = scmp.ne.s32.totalorder %s132, %s133
    %p142 = scmp.eq.s32.totalorder %s33, 0
    %p143 = por %p141, %p142
    %p144 = scmp.ne.s32.totalorder %s132, %s133
    %p145 = scmp.eq.s32.totalorder %s34, 1
    %p146 = por %p144, %p145
    %p148 = scmp.ne.s32.totalorder %s133, %s147
    %p149 = scmp.eq.s32.totalorder %s34, 0
    %p150 = por %p148, %p149
    %s152 = sadd.s32 %s151, 1
    %p155 = scmp.eq.s32.totalorder %s28, 1
    %p156 = scmp.ne.s32.totalorder %s151, %s153
    %p157 = scmp.eq.s32.totalorder %s28, 0
    %p158 = por %p156, %p157
    %p159 = scmp.ne.s32.totalorder %s151, %s153
    %p160 = scmp.eq.s32.totalorder %s33, 1
    %p161 = por %p159, %p160
    %p162 = scmp.ne.s32.totalorder %s153, %s154
    %p163 = scmp.eq.s32.totalorder %s33, 0
    %p164 = por %p162, %p163
    %p165 = scmp.ne.s32.totalorder %s153, %s154
    %p166 = scmp.eq.s32.totalorder %s34, 1
    %p167 = por %p165, %p166
    %p169 = scmp.ne.s32.totalorder %s154, %s168
    %p170 = scmp.eq.s32.totalorder %s34, 0
    %p171 = por %p169, %p170
    %s173 = sadd.s32 %s172, 1
    %p176 = scmp.eq.s32.totalorder %s28, 1
    %p177 = scmp.ne.s32.totalorder %s172, %s174
    %p178 = scmp.eq.s32.totalorder %s28, 0
    %p179 = por %p177, %p178
    %p180 = scmp.ne.s32.totalorder %s172, %s174
    %p181 = scmp.eq.s32.totalorder %s33, 1
    %p182 = por %p180, %p181
    %p183 = scmp.ne.s32.totalorder %s174, %s175
    %p184 = scmp.eq.s32.totalorder %s33, 0
    %p185 = por %p183, %p184
    %p186 = scmp.ne.s32.totalorder %s174, %s175
    %p187 = scmp.eq.s32.totalorder %s34, 1
    %p188 = por %p186, %p187
    %p190 = scmp.ne.s32.totalorder %s175, %s189
    %p191 = scmp.eq.s32.totalorder %s34, 0
    %p192 = por %p190, %p191
    %s194 = sadd.s32 %s193, 1
    %p197 = scmp.eq.s32.totalorder %s28, 1
    %p198 = scmp.ne.s32.totalorder %s193, %s195
    %p199 = scmp.eq.s32.totalorder %s28, 0
    %p200 = por %p198, %p199
    %p201 = scmp.ne.s32.totalorder %s193, %s195
    %p202 = scmp.eq.s32.totalorder %s33, 1
    %p203 = por %p201, %p202
    %p204 = scmp.ne.s32.totalorder %s195, %s196
    %p205 = scmp.eq.s32.totalorder %s33, 0
    %p206 = por %p204, %p205
    %p207 = scmp.ne.s32.totalorder %s195, %s196
    %p208 = scmp.eq.s32.totalorder %s34, 1
    %p209 = por %p207, %p208
    %p211 = scmp.ne.s32.totalorder %s196, %s210
    %p212 = scmp.eq.s32.totalorder %s34, 0
    %p213 = por %p211, %p212
    %s215 = sadd.s32 %s214, 1
    %p218 = scmp.eq.s32.totalorder %s28, 1
    %p219 = scmp.ne.s32.totalorder %s214, %s216
    %p220 = scmp.eq.s32.totalorder %s28, 0
    %p221 = por %p219, %p220
    %p222 = scmp.ne.s32.totalorder %s214, %s216
    %p223 = scmp.eq.s32.totalorder %s33, 1
    %p224 = por %p222, %p223
    %p225 = scmp.ne.s32.totalorder %s216, %s217
    %p226 = scmp.eq.s32.totalorder %s33, 0
    %p227 = por %p225, %p226
    %p228 = scmp.ne.s32.totalorder %s216, %s217
    %p229 = scmp.eq.s32.totalorder %s34, 1
    %p230 = por %p228, %p229
    %p232 = scmp.ne.s32.totalorder %s217, %s231
    %p233 = scmp.eq.s32.totalorder %s34, 0
    %p234 = por %p232, %p233
    %s235 = sld [smem:[#allocation6 + %s28]]
    %s236 = sld [smem:[#allocation6 + %s35]]
    %s237 = ssub.s32 %s235, %s236
    %p238 = scmp.eq.s32.totalorder %s237, 0
    %s240 = sadd.s32 %s239, 1
    %s241 = scalar_select %p238, %s239, %s240
    %p244 = pneg %p238
    %p245 = scmp.eq.s32.totalorder %s28, 1
    %p246 = por %p244, %p245
    %p247 = scmp.ne.s32.totalorder %s239, %s242
    %p248 = scmp.eq.s32.totalorder %s28, 0
    %p249 = por %p247, %p248
    %p250 = scmp.ne.s32.totalorder %s239, %s242
    %p251 = scmp.eq.s32.totalorder %s33, 1
    %p252 = por %p250, %p251
    %p253 = scmp.ne.s32.totalorder %s242, %s243
    %p254 = scmp.eq.s32.totalorder %s33, 0
    %p255 = por %p253, %p254
    %p256 = scmp.ne.s32.totalorder %s242, %s243
    %p257 = scmp.eq.s32.totalorder %s34, 1
    %p258 = por %p256, %p257
    %p260 = scmp.ne.s32.totalorder %s243, %s259
    %p261 = scmp.eq.s32.totalorder %s34, 0
    %p262 = por %p260, %p261
    %p263 = scmp.le.s32.totalorder 1, %s28
    %p264 = scmp.lt.s32.totalorder %s28, 3
    %p265 = pnand %p263, %p264
    %p266 = pneg %p265
    // Predicated region
    $region9: #{monet_forward.13} parent=5 // pred_check
      _
    $region10: #{monet_forward.13} parent=5 // pred_check_branch
      %268 = sbr.rel (%p265) target = $region12
    $region11: #{monet_forward.13} parent=5 // pred_region
      %s269 = ssub.s32 %s28, 1
      // Predicated region
      $region13: #{monet_forward.13} parent=11 // pred_check
        %p270 = pneg %p101
      $region14: #{monet_forward.13} parent=11 // pred_check_branch
        %272 = sbr.rel (%p270) target = $region16
      $region15: #{monet_forward.13} parent=11 // pred_region
        _
      $region16: #{monet_forward.13} parent=11 // pred_fallthru
        _
      // Predicated region
      $region17: #{monet_forward.13} parent=11 // pred_check
        %p273 = pneg %p122
      $region18: #{monet_forward.13} parent=11 // pred_check_branch
        %275 = sbr.rel (%p273) target = $region20
      $region19: #{monet_forward.13} parent=11 // pred_region
        _
      $region20: #{monet_forward.13} parent=11 // pred_fallthru
        _
      // Predicated region
      $region21: #{monet_forward.13} parent=11 // pred_check
        %p276 = pneg %p143
      $region22: #{monet_forward.13} parent=11 // pred_check_branch
        %278 = sbr.rel (%p276) target = $region24
      $region23: #{monet_forward.13} parent=11 // pred_region
        _
      $region24: #{monet_forward.13} parent=11 // pred_fallthru
        _
      // Predicated region
      $region25: #{monet_forward.13} parent=11 // pred_check
        %p279 = pneg %p164
      $region26: #{monet_forward.13} parent=11 // pred_check_branch
        %281 = sbr.rel (%p279) target = $region28
      $region27: #{monet_forward.13} parent=11 // pred_region
        _
      $region28: #{monet_forward.13} parent=11 // pred_fallthru
        _
      // Predicated region
      $region29: #{monet_forward.13} parent=11 // pred_check
        %p282 = pneg %p185
      $region30: #{monet_forward.13} parent=11 // pred_check_branch
        %284 = sbr.rel (%p282) target = $region32
      $region31: #{monet_forward.13} parent=11 // pred_region
        _
      $region32: #{monet_forward.13} parent=11 // pred_fallthru
        _
      // Predicated region
      $region33: #{monet_forward.13} parent=11 // pred_check
        %p285 = pneg %p206
      $region34: #{monet_forward.13} parent=11 // pred_check_branch
        %287 = sbr.rel (%p285) target = $region36
      $region35: #{monet_forward.13} parent=11 // pred_region
        _
      $region36: #{monet_forward.13} parent=11 // pred_fallthru
        _
      // Predicated region
      $region37: #{monet_forward.13} parent=11 // pred_check
        %p288 = pneg %p227
      $region38: #{monet_forward.13} parent=11 // pred_check_branch
        %290 = sbr.rel (%p288) target = $region40
      $region39: #{monet_forward.13} parent=11 // pred_region
        _
      $region40: #{monet_forward.13} parent=11 // pred_fallthru
        _
    $region12: #{monet_forward.13} parent=5 // pred_fallthru
      _
    %p291 = scmp.lt.s32.totalorder %s28, 2
    // Predicated region
    $region41: #{monet_forward.13} parent=5 // pred_check
      %p292 = pneg %p291
    $region42: #{monet_forward.13} parent=5 // pred_check_branch
      %294 = sbr.rel (%p292) target = $region44
    $region43: #{monet_forward.13} parent=5 // pred_region
      // Predicated region
      $region45: #{monet_forward.13} parent=43 // pred_check
        %p295 = pneg %p48
      $region46: #{monet_forward.13} parent=43 // pred_check_branch
        %297 = sbr.rel (%p295) target = $region48
      $region47: #{monet_forward.13} parent=43 // pred_region
        %s298 = smul.u32 8, %s28
        %p299 = scmp.lt.s32.totalorder %s298, 15
        %s300 = scalar_select %p299, %s298, 15
        %s301 = smul.addr %s300, 8
        %s302 = scalar_lea.vmem %s2, %s301
        %s303 = smul.u32 8, %s28
      $region48: #{monet_forward.13} parent=43 // pred_fallthru
        _
      // Predicated region
      $region49: #{monet_forward.13} parent=43 // pred_check
        %p304 = pneg %p74
      $region50: #{monet_forward.13} parent=43 // pred_check_branch
        %306 = sbr.rel (%p304) target = $region52
      $region51: #{monet_forward.13} parent=43 // pred_region
        %p307 = scmp.lt.s32.totalorder %s28, 1
        %s308 = scalar_select %p307, %s28, 1
        %s309 = smul.addr %s308, 8
        %s310 = scalar_lea.vmem %s3, %s309
      $region52: #{monet_forward.13} parent=43 // pred_fallthru
        _
    $region44: #{monet_forward.13} parent=5 // pred_fallthru
      _
    %p311 = scmp.le.s32.totalorder 1, %s28
    %p312 = scmp.lt.s32.totalorder %s28, 3
    %p313 = pnand %p311, %p312
    %p314 = pneg %p313
    // Predicated region
    $region53: #{monet_forward.13} parent=5 // pred_check
      _
    $region54: #{monet_forward.13} parent=5 // pred_check_branch
      %316 = sbr.rel (%p313) target = $region56
    $region55: #{monet_forward.13} parent=5 // pred_region
      %s317 = ssub.s32 %s28, 1
      %s318 = smul.u32 8, %s33
      %p319 = scmp.lt.s32.totalorder %s318, 15
      %s320 = scalar_select %p319, %s318, 15
      %s321 = smul.addr %s320, 8
      %s322 = scalar_lea.vmem %s2, %s321
      %p323 = pneg %p54
      %p324 = pneg %p51
      %p325 = scmp.lt.s32.totalorder %s33, 1
      %s326 = scalar_select %p325, %s33, 1
      %s327 = smul.addr %s326, 8
      %s328 = scalar_lea.vmem %s3, %s327
      %p329 = pneg %p80
      %p330 = pneg %p77
      %p331 = pneg %p101
      %p332 = pneg %p98
      %p333 = pneg %p122
      %p334 = pneg %p119
      %p335 = pneg %p143
      %p336 = pneg %p140
      %p337 = pneg %p164
      %p338 = pneg %p161
      %p339 = pneg %p185
      %p340 = pneg %p182
      %p341 = pneg %p206
      %p342 = pneg %p203
      %p343 = pneg %p227
      %p344 = pneg %p224
      %p345 = pneg %p255
      %p346 = pneg %p252
      %s347 = sld [smem:[#allocation6 + %s33]]
      %s348 = smul.u32 4, %s347
      %p349 = scmp.lt.s32.totalorder %s348, 3
      %s350 = scalar_select %p349, %s348, 3
      %s351 = smul.addr %s350, 4
      %s352 = scalar_lea.vmem %s12, %s351
      %s353 = smul.u32 8, %s33
      %p354 = scmp.lt.s32.totalorder %s353, 15
      %s355 = scalar_select %p354, %s353, 15
      %s356 = smul.addr %s355, 8
      %s357 = scalar_lea.vmem %s2, %s356
      %s358 = smul.u32 8, %s33
      %p359 = scmp.lt.s32.totalorder %s33, 1
      %s360 = scalar_select %p359, %s33, 1
      %s361 = smul.addr %s360, 8
      %s362 = scalar_lea.vmem %s3, %s361
      %s363 = sld [smem:[#allocation6 + %s33]]
      %s364 = smul.u32 4, %s363
      %p365 = scmp.lt.s32.totalorder %s364, 3
      %s366 = scalar_select %p365, %s364, 3
      %s367 = smul.addr %s366, 4
      %s368 = scalar_lea.vmem %s12, %s367
      %s369 = sld [smem:[#allocation6 + %s33]]
      %s370 = smul.u32 4, %s369
      %s372 = sld [smem:[#allocation6 + %s33]]
      %p373 = scmp.lt.s32.totalorder %s33, 0
      %s374 = ssub.s32 0, %s33
      %s375 = scalar_select %p373, %s374, %s33
      %s376 = sand.u32 %s375, 1
      %s377 = ssub.s32 0, %s376
      %s378 = scalar_select %p373, %s377, %s376
      %p379 = scmp.eq.s32.totalorder %s33, 0
      // Predicated region
      $region57: #{monet_forward.13} parent=55 // pred_check
        %p380 = pneg %p379
      $region58: #{monet_forward.13} parent=55 // pred_check_branch
        %382 = sbr.rel (%p380) target = $region60
      $region59: #{monet_forward.13} parent=55 // pred_region
        loop: start=0, step=1, limit=64
        $region61: #{monet_forward.13} parent=59 // loop_pre_header
          _
        $region62: #{monet_forward.13} parent=59 // loop_header
          %s384 = sphi 0, %s388
          %p385 = scmp.ge.s32.totalorder %s384, 64
        $region63: #{monet_forward.13} parent=59 // loop_header_branch
          %387 = sbr.rel (%p385) target = $region67
        $region64: #{monet_forward.13} parent=59 // loop_body
          %s389 = sld [smem:[#allocation7 + %s384]]
          %s390 = scalar_lea.vmem %s11, %s389
          %s391 = scalar_lea.vmem [#allocation2], %s384
          %p393 = scmp.lt.u32.totalorder 1, 8
          %p394 = pneg %p393
          // Predicated region
          $region68: #{monet_forward.13} parent=64 // pred_check
            _
          $region69: #{monet_forward.13} parent=64 // pred_check_branch
            %396 = sbr.rel (%p393) target = $region71
          $region70: #{monet_forward.13} parent=64 // pred_region
            %s411 = sand.u32 1, 7
            %p412 = scmp.eq.s32.totalorder %s411, 0
            %p413 = pneg %p412
            // Predicated region
            $region83: #{monet_forward.13} parent=70 // pred_check
              _
            $region84: #{monet_forward.13} parent=70 // pred_check_branch
              %415 = sbr.rel (%p412) target = $region86
            $region85: #{monet_forward.13} parent=70 // pred_region
              %s416 = sand.u32 1, 7
              %s417 = ssub.s32 1, %s416
              %s418 = scalar_lea.vmem %s390, %s417
              %s419 = ssub.s32 1, %s416
              %s420 = scalar_lea.vmem %s391, %s419 [#allocation2]
              %s421 = sshllo.u32 0, %s416
              loop: start=0, step=1, limit=1
              $region87: #{monet_forward.13} parent=85 // loop_pre_header
                _
              $region88: #{monet_forward.13} parent=85 // loop_header
                %s423 = sphi 0, %s427
                %p424 = scmp.ge.s32.totalorder %s423, 1
                %s428 = sphi %s418, %s418
                %s429 = sphi %s420, %s420
              $region89: #{monet_forward.13} parent=85 // loop_header_branch
                %426 = sbr.rel (%p424) target = $region93
              $region90: #{monet_forward.13} parent=85 // loop_body
                %v430 = vld [vmem:[%s428] sm:%s421]
                %431 = vst [vmem:[%s429] sm:%s421] %v430
              $region91: #{monet_forward.13} parent=85 // loop_footer
                %s427 = sadd.s32 1, %s423
              $region92: #{monet_forward.13} parent=85 // loop_footer_branch
                %422 = sbr.rel target = $region88
              $region93: #{monet_forward.13} parent=85 // loop_exit
                _
            $region86: #{monet_forward.13} parent=70 // pred_fallthru
              _
          $region71: #{monet_forward.13} parent=64 // pred_fallthru
            _
          // Predicated region
          $region72: #{monet_forward.13} parent=64 // pred_check
            %p397 = pneg %p393
          $region73: #{monet_forward.13} parent=64 // pred_check_branch
            %399 = sbr.rel (%p397) target = $region75
          $region74: #{monet_forward.13} parent=64 // pred_region
            %s400 = sshllo.u32 0, 1
            loop: start=0, step=1, limit=1
            $region76: #{monet_forward.13} parent=74 // loop_pre_header
              _
            $region77: #{monet_forward.13} parent=74 // loop_header
              %s402 = sphi 0, %s406
              %p403 = scmp.ge.s32.totalorder %s402, 1
              %s407 = sphi %s390, %s390
              %s408 = sphi %s391, %s391
            $region78: #{monet_forward.13} parent=74 // loop_header_branch
              %405 = sbr.rel (%p403) target = $region82
            $region79: #{monet_forward.13} parent=74 // loop_body
              %v409 = vld [vmem:[%s407] sm:%s400]
              %410 = vst [vmem:[%s408] sm:%s400] %v409
            $region80: #{monet_forward.13} parent=74 // loop_footer
              %s406 = sadd.s32 1, %s402
            $region81: #{monet_forward.13} parent=74 // loop_footer_branch
              %401 = sbr.rel target = $region77
            $region82: #{monet_forward.13} parent=74 // loop_exit
              _
          $region75: #{monet_forward.13} parent=64 // pred_fallthru
            _
          // Predicated region
          $region94: #{monet_forward.13} parent=64 // pred_check
            _
          $region95: #{monet_forward.13} parent=64 // pred_check_branch
            %434 = sbr.rel (0) target = $region97
          $region96: #{monet_forward.13} parent=64 // pred_region
            %435 = vsyncadd [#allocation3], 16
          $region97: #{monet_forward.13} parent=64 // pred_fallthru
            _
        $region65: #{monet_forward.13} parent=59 // loop_footer
          %s388 = sadd.s32 1, %s384
        $region66: #{monet_forward.13} parent=59 // loop_footer_branch
          %383 = sbr.rel target = $region62
        $region67: #{monet_forward.13} parent=59 // loop_exit
          _
      $region60: #{monet_forward.13} parent=55 // pred_fallthru
        _
      loop: start=0, step=1, limit=64
      $region98: #{monet_forward.13} parent=55 // loop_pre_header
        _
      $region99: #{monet_forward.13} parent=55 // loop_header
        %s437 = sphi 0, %s441
        %p438 = scmp.ge.s32.totalorder %s437, 64
      $region100: #{monet_forward.13} parent=55 // loop_header_branch
        %440 = sbr.rel (%p438) target = $region104
      $region101: #{monet_forward.13} parent=55 // loop_body
        %s442 = scalar_lea.sflag [#allocation3], %s378
        %444 = dma.done %s442, 16
      $region102: #{monet_forward.13} parent=55 // loop_footer
        %s441 = sadd.s32 1, %s437
      $region103: #{monet_forward.13} parent=55 // loop_footer_branch
        %436 = sbr.rel target = $region99
      $region104: #{monet_forward.13} parent=55 // loop_exit
        _
      %s445 = sadd.s32 %s33, 1
      %p446 = scmp.lt.s32.totalorder %s445, 2
      // Predicated region
      $region105: #{monet_forward.13} parent=55 // pred_check
        %p447 = pneg %p446
      $region106: #{monet_forward.13} parent=55 // pred_check_branch
        %449 = sbr.rel (%p447) target = $region108
      $region107: #{monet_forward.13} parent=55 // pred_region
        %s450 = ssub.s32 1, %s378
        %s451 = smul.u32 %s445, 64
        loop: start=0, step=1, limit=64
        $region109: #{monet_forward.13} parent=107 // loop_pre_header
          _
        $region110: #{monet_forward.13} parent=107 // loop_header
          %s453 = sphi 0, %s457
          %p454 = scmp.ge.s32.totalorder %s453, 64
        $region111: #{monet_forward.13} parent=107 // loop_header_branch
          %456 = sbr.rel (%p454) target = $region115
        $region112: #{monet_forward.13} parent=107 // loop_body
          %s458 = sadd.s32 %s451, %s453
          %s459 = sld [smem:[#allocation7 + %s458]]
          %s460 = scalar_lea.vmem %s11, %s459
          %s461 = smul.u32 %s450, 64
          %s462 = sadd.s32 %s453, %s461
          %s463 = scalar_lea.vmem [#allocation2], %s462
          %s464 = scalar_lea.sflag [#allocation3], %s450
          %p466 = scmp.lt.u32.totalorder 1, 8
          %p467 = pneg %p466
          // Predicated region
          $region116: #{monet_forward.13} parent=112 // pred_check
            _
          $region117: #{monet_forward.13} parent=112 // pred_check_branch
            %469 = sbr.rel (%p466) target = $region119
          $region118: #{monet_forward.13} parent=112 // pred_region
            %s484 = sand.u32 1, 7
            %p485 = scmp.eq.s32.totalorder %s484, 0
            %p486 = pneg %p485
            // Predicated region
            $region131: #{monet_forward.13} parent=118 // pred_check
              _
            $region132: #{monet_forward.13} parent=118 // pred_check_branch
              %488 = sbr.rel (%p485) target = $region134
            $region133: #{monet_forward.13} parent=118 // pred_region
              %s489 = sand.u32 1, 7
              %s490 = ssub.s32 1, %s489
              %s491 = scalar_lea.vmem %s460, %s490
              %s492 = ssub.s32 1, %s489
              %s493 = scalar_lea.vmem %s463, %s492 [#allocation2]
              %s494 = sshllo.u32 0, %s489
              loop: start=0, step=1, limit=1
              $region135: #{monet_forward.13} parent=133 // loop_pre_header
                _
              $region136: #{monet_forward.13} parent=133 // loop_header
                %s496 = sphi 0, %s500
                %p497 = scmp.ge.s32.totalorder %s496, 1
                %s501 = sphi %s491, %s491
                %s502 = sphi %s493, %s493
              $region137: #{monet_forward.13} parent=133 // loop_header_branch
                %499 = sbr.rel (%p497) target = $region141
              $region138: #{monet_forward.13} parent=133 // loop_body
                %v503 = vld [vmem:[%s501] sm:%s494]
                %504 = vst [vmem:[%s502] sm:%s494] %v503
              $region139: #{monet_forward.13} parent=133 // loop_footer
                %s500 = sadd.s32 1, %s496
              $region140: #{monet_forward.13} parent=133 // loop_footer_branch
                %495 = sbr.rel target = $region136
              $region141: #{monet_forward.13} parent=133 // loop_exit
                _
            $region134: #{monet_forward.13} parent=118 // pred_fallthru
              _
          $region119: #{monet_forward.13} parent=112 // pred_fallthru
            _
          // Predicated region
          $region120: #{monet_forward.13} parent=112 // pred_check
            %p470 = pneg %p466
          $region121: #{monet_forward.13} parent=112 // pred_check_branch
            %472 = sbr.rel (%p470) target = $region123
          $region122: #{monet_forward.13} parent=112 // pred_region
            %s473 = sshllo.u32 0, 1
            loop: start=0, step=1, limit=1
            $region124: #{monet_forward.13} parent=122 // loop_pre_header
              _
            $region125: #{monet_forward.13} parent=122 // loop_header
              %s475 = sphi 0, %s479
              %p476 = scmp.ge.s32.totalorder %s475, 1
              %s480 = sphi %s460, %s460
              %s481 = sphi %s463, %s463
            $region126: #{monet_forward.13} parent=122 // loop_header_branch
              %478 = sbr.rel (%p476) target = $region130
            $region127: #{monet_forward.13} parent=122 // loop_body
              %v482 = vld [vmem:[%s480] sm:%s473]
              %483 = vst [vmem:[%s481] sm:%s473] %v482
            $region128: #{monet_forward.13} parent=122 // loop_footer
              %s479 = sadd.s32 1, %s475
            $region129: #{monet_forward.13} parent=122 // loop_footer_branch
              %474 = sbr.rel target = $region125
            $region130: #{monet_forward.13} parent=122 // loop_exit
              _
          $region123: #{monet_forward.13} parent=112 // pred_fallthru
            _
          // Predicated region
          $region142: #{monet_forward.13} parent=112 // pred_check
            _
          $region143: #{monet_forward.13} parent=112 // pred_check_branch
            %507 = sbr.rel (0) target = $region145
          $region144: #{monet_forward.13} parent=112 // pred_region
            %508 = vsyncadd %s464, 16
          $region145: #{monet_forward.13} parent=112 // pred_fallthru
            _
        $region113: #{monet_forward.13} parent=107 // loop_footer
          %s457 = sadd.s32 1, %s453
        $region114: #{monet_forward.13} parent=107 // loop_footer_branch
          %452 = sbr.rel target = $region110
        $region115: #{monet_forward.13} parent=107 // loop_exit
          _
      $region108: #{monet_forward.13} parent=55 // pred_fallthru
        _
      %s509 = ssub.s32 %s33, 1
      %p510 = scmp.gt.s32.totalorder %s509, 0
      %s511 = scalar_select %p510, %s509, 0
      %s512 = sld [smem:[#allocation6 + %s511]]
      %p513 = scmp.ne.s32.totalorder %s372, %s512
      %p514 = por %p379, %p513
      // Predicated region
      $region146: #{monet_forward.13} parent=55 // pred_check
        %p515 = pneg %p514
      $region147: #{monet_forward.13} parent=55 // pred_check_branch
        %517 = sbr.rel (%p515) target = $region149
      $region148: #{monet_forward.13} parent=55 // pred_region
        %518 = vst [vmem:[#allocation4] sm:$0xff] 0.0
        %519 = vst [vmem:[#allocation4 + $0x8] sm:$0xff] 0.0
        %520 = vst [vmem:[#allocation4 + $0x10] sm:$0xff] 0.0
        %521 = vst [vmem:[#allocation4 + $0x18] sm:$0xff] 0.0
      $region149: #{monet_forward.13} parent=55 // pred_fallthru
        _
      %v522 = vld [vmem:[%s357] sm:$0xff]
      %v523 = vld [vmem:[%s357 + $0x8] sm:$0xff]
      %v524 = vld [vmem:[%s357 + $0x10] sm:$0xff]
      %v525 = vld [vmem:[%s357 + $0x18] sm:$0xff]
      %v526 = vld [vmem:[%s357 + $0x20] sm:$0xff]
      %v527 = vld [vmem:[%s357 + $0x28] sm:$0xff]
      %v528 = vld [vmem:[%s357 + $0x30] sm:$0xff]
      %v529 = vld [vmem:[%s357 + $0x38] sm:$0xff]
      %v530 = vld [vmem:[%s7] sm:$0x3]
      %v531 = vld [vmem:[%s8] sm:$0x1]
      %v533 = vlaneseq
      %v534 = vshrl.u32 %v533, 7
      %v535 = vsub.s32 0, %v534
      %v536 = vrot.slane %v531, %v535
      %vm538 = vcmask 15360
      %v540 = vsel %vm538, %v522, 0
      %v543 = vsel %vm538, %v523, 0
      %v546 = vsel %vm538, %v524, 0
      %v549 = vsel %vm538, %v525, 0
      %v552 = vsel %vm538, %v526, 0
      %v555 = vsel %vm538, %v527, 0
      %v558 = vsel %vm538, %v528, 0
      %v561 = vsel %vm538, %v529, 0
      %vm563 = vcmask 1041408
      %v565 = vsel %vm563, %v530, 0
      %567 = vmatprep.subr.mxu0 0.0
      %568 = vmatpush1.msra.mxu0 %v565
      %569 = vmatprep.subr.mxu0 0.0
      %570 = vmatpush1.msra.mxu0 0.0
      %571 = vmatprep.subr.mxu0 0.0
      %572 = vmatpush1.msra.mxu0 0.0
      %573 = vmatprep.subr.mxu0 0.0
      %574 = vmatpush1.msra.mxu0 0.0
      %575 = vmatprep.subr.mxu0 0.0
      %576 = vmatpush1.msra.mxu0 0.0
      %577 = vmatprep.subr.mxu0 0.0
      %578 = vmatpush1.msra.mxu0 0.0
      %579 = vmatprep.subr.mxu0 0.0
      %580 = vmatpush1.msra.mxu0 0.0
      %581 = vmatprep.subr.mxu0 0.0
      %582 = vmatpush1.msra.mxu0 0.0
      %583 = vmatprep.subr.mxu0 0.0
      %584 = vmatpush1.msra.mxu0 0.0
      %585 = vmatprep.subr.mxu0 0.0
      %586 = vmatpush1.msra.mxu0 0.0
      %587 = vmatprep.subr.mxu0 0.0
      %588 = vmatpush1.msra.mxu0 0.0
      %589 = vmatprep.subr.mxu0 0.0
      %590 = vmatpush1.msra.mxu0 0.0
      %591 = vmatprep.subr.mxu0 0.0
      %592 = vmatpush1.msra.mxu0 0.0
      %593 = vmatprep.subr.mxu0 0.0
      %594 = vmatpush1.msra.mxu0 0.0
      %595 = vmatprep.subr.mxu0 0.0
      %596 = vmatpush1.msra.mxu0 0.0
      %597 = vmatprep.subr.mxu0 0.0
      %598 = vmatpush1.msra.mxu0 0.0
      %599 = vmatprep.subr.mxu0 0.0
      %600 = vmatpush1.msra.mxu0 0.0
      %601 = vmatprep.subr.mxu0 0.0
      %602 = vmatpush1.msra.mxu0 0.0
      %603 = vmatprep.subr.mxu0 0.0
      %604 = vmatpush1.msra.mxu0 0.0
      %605 = vmatprep.subr.mxu0 0.0
      %606 = vmatpush1.msra.mxu0 0.0
      %607 = vmatprep.subr.mxu0 0.0
      %608 = vmatpush1.msra.mxu0 0.0
      %609 = vmatprep.subr.mxu0 0.0
      %610 = vmatpush1.msra.mxu0 0.0
      %611 = vmatprep.subr.mxu0 0.0
      %612 = vmatpush1.msra.mxu0 0.0
      %613 = vmatprep.subr.mxu0 0.0
      %614 = vmatpush1.msra.mxu0 0.0
      %615 = vmatprep.subr.mxu0 0.0
      %616 = vmatpush1.msra.mxu0 0.0
      %617 = vmatprep.subr.mxu0 0.0
      %618 = vmatpush1.msra.mxu0 0.0
      %619 = vmatprep.subr.mxu0 0.0
      %620 = vmatpush1.msra.mxu0 0.0
      %621 = vmatprep.subr.mxu0 0.0
      %622 = vmatpush1.msra.mxu0 0.0
      %623 = vmatprep.subr.mxu0 0.0
      %624 = vmatpush1.msra.mxu0 0.0
      %625 = vmatprep.subr.mxu0 0.0
      %626 = vmatpush1.msra.mxu0 0.0
      %627 = vmatprep.subr.mxu0 0.0
      %628 = vmatpush1.msra.mxu0 0.0
      %629 = vmatprep.subr.mxu0 0.0
      %630 = vmatpush1.msra.mxu0 0.0
      %631 = vmatprep.mubr.f32.mxu0 0.0
      %632 = vmatmul.mubr.f32.gmra.mrb[0].mxu0 %v540
      %v633 = vpop.f32.mrb[0].mxu0
      %v634 = vadd.f32 %v536, %v633
      %v635 = vpop.f32.mrb[0].mxu0
      %636 = vmatprep.mubr.f32.mxu0 0.0
      %637 = vmatmul.mubr.f32.gmra.mrb[0].mxu0 %v543
      %v638 = vpop.f32.mrb[0].mxu0
      %v639 = vadd.f32 %v536, %v638
      %v640 = vpop.f32.mrb[0].mxu0
      %641 = vmatprep.mubr.f32.mxu0 0.0
      %642 = vmatmul.mubr.f32.gmra.mrb[0].mxu0 %v546
      %v643 = vpop.f32.mrb[0].mxu0
      %v644 = vadd.f32 %v536, %v643
      %v645 = vpop.f32.mrb[0].mxu0
      %646 = vmatprep.mubr.f32.mxu0 0.0
      %647 = vmatmul.mubr.f32.gmra.mrb[0].mxu0 %v549
      %v648 = vpop.f32.mrb[0].mxu0
      %v649 = vadd.f32 %v536, %v648
      %v650 = vpop.f32.mrb[0].mxu0
      %651 = vmatprep.mubr.f32.mxu0 0.0
      %652 = vmatmul.mubr.f32.gmra.mrb[0].mxu0 %v552
      %v653 = vpop.f32.mrb[0].mxu0
      %v654 = vadd.f32 %v536, %v653
      %v655 = vpop.f32.mrb[0].mxu0
      %656 = vmatprep.mubr.f32.mxu0 0.0
      %657 = vmatmul.mubr.f32.gmra.mrb[0].mxu0 %v555
      %v658 = vpop.f32.mrb[0].mxu0
      %v659 = vadd.f32 %v536, %v658
      %v660 = vpop.f32.mrb[0].mxu0
      %661 = vmatprep.mubr.f32.mxu0 0.0
      %662 = vmatmul.mubr.f32.gmra.mrb[0].mxu0 %v558
      %v663 = vpop.f32.mrb[0].mxu0
      %v664 = vadd.f32 %v536, %v663
      %v665 = vpop.f32.mrb[0].mxu0
      %666 = vmatprep.mubr.f32.mxu0 0.0
      %667 = vmatmul.mubr.f32.gmra.mrb[0].mxu0 %v561
      %v668 = vpop.f32.mrb[0].mxu0
      %v669 = vadd.f32 %v536, %v668
      %v670 = vpop.f32.mrb[0].mxu0
      %671 = vdwg.mxu0
      %v672 = vtanh.pop %v634
      %v673 = vtanh.pop %v639
      %v674 = vtanh.pop %v644
      %v675 = vtanh.pop %v649
      %v676 = vtanh.pop %v654
      %v677 = vtanh.pop %v659
      %v678 = vtanh.pop %v664
      %v679 = vtanh.pop %v669
      %v680 = vmul.f32 %v672, %v672
      %v681 = vmul.f32 %v673, %v673
      %v682 = vmul.f32 %v674, %v674
      %v683 = vmul.f32 %v675, %v675
      %v684 = vmul.f32 %v676, %v676
      %v685 = vmul.f32 %v677, %v677
      %v686 = vmul.f32 %v678, %v678
      %v687 = vmul.f32 %v679, %v679
      %v688 = vld [vmem:[%s4] sm:$0x3]
      %v689 = vld [vmem:[%s5] sm:$0x3]
      %v691 = vsel %vm538, %v672, 0
      %v694 = vsel %vm538, %v673, 0
      %v697 = vsel %vm538, %v674, 0
      %v700 = vsel %vm538, %v675, 0
      %v703 = vsel %vm538, %v676, 0
      %v706 = vsel %vm538, %v677, 0
      %v709 = vsel %vm538, %v678, 0
      %v712 = vsel %vm538, %v679, 0
      %v715 = vsel %vm563, %v689, 0
      %717 = vmatprep.subr.mxu0 0.0
      %718 = vmatpush1.msra.mxu0 %v715
      %719 = vmatprep.subr.mxu0 0.0
      %720 = vmatpush1.msra.mxu0 0.0
      %721 = vmatprep.subr.mxu0 0.0
      %722 = vmatpush1.msra.mxu0 0.0
      %723 = vmatprep.subr.mxu0 0.0
      %724 = vmatpush1.msra.mxu0 0.0
      %725 = vmatprep.subr.mxu0 0.0
      %726 = vmatpush1.msra.mxu0 0.0
      %727 = vmatprep.subr.mxu0 0.0
      %728 = vmatpush1.msra.mxu0 0.0
      %729 = vmatprep.subr.mxu0 0.0
      %730 = vmatpush1.msra.mxu0 0.0
      %731 = vmatprep.subr.mxu0 0.0
      %732 = vmatpush1.msra.mxu0 0.0
      %733 = vmatprep.subr.mxu0 0.0
      %734 = vmatpush1.msra.mxu0 0.0
      %735 = vmatprep.subr.mxu0 0.0
      %736 = vmatpush1.msra.mxu0 0.0
      %737 = vmatprep.subr.mxu0 0.0
      %738 = vmatpush1.msra.mxu0 0.0
      %739 = vmatprep.subr.mxu0 0.0
      %740 = vmatpush1.msra.mxu0 0.0
      %741 = vmatprep.subr.mxu0 0.0
      %742 = vmatpush1.msra.mxu0 0.0
      %743 = vmatprep.subr.mxu0 0.0
      %744 = vmatpush1.msra.mxu0 0.0
      %745 = vmatprep.subr.mxu0 0.0
      %746 = vmatpush1.msra.mxu0 0.0
      %747 = vmatprep.subr.mxu0 0.0
      %748 = vmatpush1.msra.mxu0 0.0
      %749 = vmatprep.subr.mxu0 0.0
      %750 = vmatpush1.msra.mxu0 0.0
      %751 = vmatprep.subr.mxu0 0.0
      %752 = vmatpush1.msra.mxu0 0.0
      %753 = vmatprep.subr.mxu0 0.0
      %754 = vmatpush1.msra.mxu0 0.0
      %755 = vmatprep.subr.mxu0 0.0
      %756 = vmatpush1.msra.mxu0 0.0
      %757 = vmatprep.subr.mxu0 0.0
      %758 = vmatpush1.msra.mxu0 0.0
      %759 = vmatprep.subr.mxu0 0.0
      %760 = vmatpush1.msra.mxu0 0.0
      %761 = vmatprep.subr.mxu0 0.0
      %762 = vmatpush1.msra.mxu0 0.0
      %763 = vmatprep.subr.mxu0 0.0
      %764 = vmatpush1.msra.mxu0 0.0
      %765 = vmatprep.subr.mxu0 0.0
      %766 = vmatpush1.msra.mxu0 0.0
      %767 = vmatprep.subr.mxu0 0.0
      %768 = vmatpush1.msra.mxu0 0.0
      %769 = vmatprep.subr.mxu0 0.0
      %770 = vmatpush1.msra.mxu0 0.0
      %771 = vmatprep.subr.mxu0 0.0
      %772 = vmatpush1.msra.mxu0 0.0
      %773 = vmatprep.subr.mxu0 0.0
      %774 = vmatpush1.msra.mxu0 0.0
      %775 = vmatprep.subr.mxu0 0.0
      %776 = vmatpush1.msra.mxu0 0.0
      %777 = vmatprep.subr.mxu0 0.0
      %778 = vmatpush1.msra.mxu0 0.0
      %779 = vmatprep.subr.mxu0 0.0
      %780 = vmatpush1.msra.mxu0 0.0
      %781 = vmatprep.mubr.f32.mxu0 0.0
      %782 = vmatmul.mubr.f32.gmra.mrb[0].mxu0 %v691
      %v783 = vpop.f32.mrb[0].mxu0
      %v784 = vadd.f32 0.0, %v783
      %v785 = vpop.f32.mrb[0].mxu0
      %786 = vmatprep.mubr.f32.mxu0 0.0
      %787 = vmatmul.mubr.f32.gmra.mrb[0].mxu0 %v694
      %v788 = vpop.f32.mrb[0].mxu0
      %v789 = vadd.f32 0.0, %v788
      %v790 = vpop.f32.mrb[0].mxu0
      %791 = vmatprep.mubr.f32.mxu0 0.0
      %792 = vmatmul.mubr.f32.gmra.mrb[0].mxu0 %v697
      %v793 = vpop.f32.mrb[0].mxu0
      %v794 = vadd.f32 0.0, %v793
      %v795 = vpop.f32.mrb[0].mxu0
      %796 = vmatprep.mubr.f32.mxu0 0.0
      %797 = vmatmul.mubr.f32.gmra.mrb[0].mxu0 %v700
      %v798 = vpop.f32.mrb[0].mxu0
      %v799 = vadd.f32 0.0, %v798
      %v800 = vpop.f32.mrb[0].mxu0
      %801 = vmatprep.mubr.f32.mxu0 0.0
      %802 = vmatmul.mubr.f32.gmra.mrb[0].mxu0 %v703
      %v803 = vpop.f32.mrb[0].mxu0
      %v804 = vadd.f32 0.0, %v803
      %v805 = vpop.f32.mrb[0].mxu0
      %806 = vmatprep.mubr.f32.mxu0 0.0
      %807 = vmatmul.mubr.f32.gmra.mrb[0].mxu0 %v706
      %v808 = vpop.f32.mrb[0].mxu0
      %v809 = vadd.f32 0.0, %v808
      %v810 = vpop.f32.mrb[0].mxu0
      %811 = vmatprep.mubr.f32.mxu0 0.0
      %812 = vmatmul.mubr.f32.gmra.mrb[0].mxu0 %v709
      %v813 = vpop.f32.mrb[0].mxu0
      %v814 = vadd.f32 0.0, %v813
      %v815 = vpop.f32.mrb[0].mxu0
      %816 = vmatprep.mubr.f32.mxu0 0.0
      %817 = vmatmul.mubr.f32.gmra.mrb[0].mxu0 %v712
      %v818 = vpop.f32.mrb[0].mxu0
      %v819 = vadd.f32 0.0, %v818
      %v820 = vpop.f32.mrb[0].mxu0
      %821 = vdwg.mxu0
      %v823 = vsel %vm538, %v680, 0
      %v826 = vsel %vm538, %v681, 0
      %v829 = vsel %vm538, %v682, 0
      %v832 = vsel %vm538, %v683, 0
      %v835 = vsel %vm538, %v684, 0
      %v838 = vsel %vm538, %v685, 0
      %v841 = vsel %vm538, %v686, 0
      %v844 = vsel %vm538, %v687, 0
      %v847 = vsel %vm563, %v688, 0
      %849 = vmatprep.subr.mxu0 0.0
      %850 = vmatpush1.msra.mxu0 %v847
      %851 = vmatprep.subr.mxu0 0.0
      %852 = vmatpush1.msra.mxu0 0.0
      %853 = vmatprep.subr.mxu0 0.0
      %854 = vmatpush1.msra.mxu0 0.0
      %855 = vmatprep.subr.mxu0 0.0
      %856 = vmatpush1.msra.mxu0 0.0
      %857 = vmatprep.subr.mxu0 0.0
      %858 = vmatpush1.msra.mxu0 0.0
      %859 = vmatprep.subr.mxu0 0.0
      %860 = vmatpush1.msra.mxu0 0.0
      %861 = vmatprep.subr.mxu0 0.0
      %862 = vmatpush1.msra.mxu0 0.0
      %863 = vmatprep.subr.mxu0 0.0
      %864 = vmatpush1.msra.mxu0 0.0
      %865 = vmatprep.subr.mxu0 0.0
      %866 = vmatpush1.msra.mxu0 0.0
      %867 = vmatprep.subr.mxu0 0.0
      %868 = vmatpush1.msra.mxu0 0.0
      %869 = vmatprep.subr.mxu0 0.0
      %870 = vmatpush1.msra.mxu0 0.0
      %871 = vmatprep.subr.mxu0 0.0
      %872 = vmatpush1.msra.mxu0 0.0
      %873 = vmatprep.subr.mxu0 0.0
      %874 = vmatpush1.msra.mxu0 0.0
      %875 = vmatprep.subr.mxu0 0.0
      %876 = vmatpush1.msra.mxu0 0.0
      %877 = vmatprep.subr.mxu0 0.0
      %878 = vmatpush1.msra.mxu0 0.0
      %879 = vmatprep.subr.mxu0 0.0
      %880 = vmatpush1.msra.mxu0 0.0
      %881 = vmatprep.subr.mxu0 0.0
      %882 = vmatpush1.msra.mxu0 0.0
      %883 = vmatprep.subr.mxu0 0.0
      %884 = vmatpush1.msra.mxu0 0.0
      %885 = vmatprep.subr.mxu0 0.0
      %886 = vmatpush1.msra.mxu0 0.0
      %887 = vmatprep.subr.mxu0 0.0
      %888 = vmatpush1.msra.mxu0 0.0
      %889 = vmatprep.subr.mxu0 0.0
      %890 = vmatpush1.msra.mxu0 0.0
      %891 = vmatprep.subr.mxu0 0.0
      %892 = vmatpush1.msra.mxu0 0.0
      %893 = vmatprep.subr.mxu0 0.0
      %894 = vmatpush1.msra.mxu0 0.0
      %895 = vmatprep.subr.mxu0 0.0
      %896 = vmatpush1.msra.mxu0 0.0
      %897 = vmatprep.subr.mxu0 0.0
      %898 = vmatpush1.msra.mxu0 0.0
      %899 = vmatprep.subr.mxu0 0.0
      %900 = vmatpush1.msra.mxu0 0.0
      %901 = vmatprep.subr.mxu0 0.0
      %902 = vmatpush1.msra.mxu0 0.0
      %903 = vmatprep.subr.mxu0 0.0
      %904 = vmatpush1.msra.mxu0 0.0
      %905 = vmatprep.subr.mxu0 0.0
      %906 = vmatpush1.msra.mxu0 0.0
      %907 = vmatprep.subr.mxu0 0.0
      %908 = vmatpush1.msra.mxu0 0.0
      %909 = vmatprep.subr.mxu0 0.0
      %910 = vmatpush1.msra.mxu0 0.0
      %911 = vmatprep.subr.mxu0 0.0
      %912 = vmatpush1.msra.mxu0 0.0
      %913 = vmatprep.mubr.f32.mxu0 0.0
      %914 = vmatmul.mubr.f32.gmra.mrb[0].mxu0 %v823
      %v915 = vpop.f32.mrb[0].mxu0
      %v916 = vadd.f32 %v784, %v915
      %v917 = vpop.f32.mrb[0].mxu0
      %918 = vmatprep.mubr.f32.mxu0 0.0
      %919 = vmatmul.mubr.f32.gmra.mrb[0].mxu0 %v826
      %v920 = vpop.f32.mrb[0].mxu0
      %v921 = vadd.f32 %v789, %v920
      %v922 = vpop.f32.mrb[0].mxu0
      %923 = vmatprep.mubr.f32.mxu0 0.0
      %924 = vmatmul.mubr.f32.gmra.mrb[0].mxu0 %v829
      %v925 = vpop.f32.mrb[0].mxu0
      %v926 = vadd.f32 %v794, %v925
      %v927 = vpop.f32.mrb[0].mxu0
      %928 = vmatprep.mubr.f32.mxu0 0.0
      %929 = vmatmul.mubr.f32.gmra.mrb[0].mxu0 %v832
      %v930 = vpop.f32.mrb[0].mxu0
      %v931 = vadd.f32 %v799, %v930
      %v932 = vpop.f32.mrb[0].mxu0
      %933 = vmatprep.mubr.f32.mxu0 0.0
      %934 = vmatmul.mubr.f32.gmra.mrb[0].mxu0 %v835
      %v935 = vpop.f32.mrb[0].mxu0
      %v936 = vadd.f32 %v804, %v935
      %v937 = vpop.f32.mrb[0].mxu0
      %938 = vmatprep.mubr.f32.mxu0 0.0
      %939 = vmatmul.mubr.f32.gmra.mrb[0].mxu0 %v838
      %v940 = vpop.f32.mrb[0].mxu0
      %v941 = vadd.f32 %v809, %v940
      %v942 = vpop.f32.mrb[0].mxu0
      %943 = vmatprep.mubr.f32.mxu0 0.0
      %944 = vmatmul.mubr.f32.gmra.mrb[0].mxu0 %v841
      %v945 = vpop.f32.mrb[0].mxu0
      %v946 = vadd.f32 %v814, %v945
      %v947 = vpop.f32.mrb[0].mxu0
      %948 = vmatprep.mubr.f32.mxu0 0.0
      %949 = vmatmul.mubr.f32.gmra.mrb[0].mxu0 %v844
      %v950 = vpop.f32.mrb[0].mxu0
      %v951 = vadd.f32 %v819, %v950
      %v952 = vpop.f32.mrb[0].mxu0
      %953 = vdwg.mxu0
      %v954 = vld [vmem:[%s6] sm:$0x1]
      %v956 = vlaneseq
      %v957 = vshrl.u32 %v956, 7
      %v958 = vsub.s32 0, %v957
      %v959 = vrot.slane %v954, %v958
      %v961 = vadd.f32 %v916, %v959
      %v962 = vadd.f32 %v921, %v959
      %v963 = vadd.f32 %v926, %v959
      %v964 = vadd.f32 %v931, %v959
      %v965 = vadd.f32 %v936, %v959
      %v966 = vadd.f32 %v941, %v959
      %v967 = vadd.f32 %v946, %v959
      %v968 = vadd.f32 %v951, %v959
      %v969 = vmul.f32 %v961, 1.442695
      %v970 = vpow.pop %v969
      %v971 = vmul.f32 %v962, 1.442695
      %v972 = vpow.pop %v971
      %v973 = vmul.f32 %v963, 1.442695
      %v974 = vpow.pop %v973
      %v975 = vmul.f32 %v964, 1.442695
      %v976 = vpow.pop %v975
      %v977 = vmul.f32 %v965, 1.442695
      %v978 = vpow.pop %v977
      %v979 = vmul.f32 %v966, 1.442695
      %v980 = vpow.pop %v979
      %v981 = vmul.f32 %v967, 1.442695
      %v982 = vpow.pop %v981
      %v983 = vmul.f32 %v968, 1.442695
      %v984 = vpow.pop %v983
      %s985 = smul.u32 %s378, 64
      %s986 = scalar_lea.vmem [#allocation2], %s985
      %v987 = vld [vmem:[%s986] sm:$0xff]
      %v988 = vld [vmem:[%s986 + $0x8] sm:$0xff]
      %v989 = vld [vmem:[%s986 + $0x10] sm:$0xff]
      %v990 = vld [vmem:[%s986 + $0x18] sm:$0xff]
      %v991 = vld [vmem:[%s986 + $0x20] sm:$0xff]
      %v992 = vld [vmem:[%s986 + $0x28] sm:$0xff]
      %v993 = vld [vmem:[%s986 + $0x30] sm:$0xff]
      %v994 = vld [vmem:[%s986 + $0x38] sm:$0xff]
      %v995 = vmul.f32 %v970, %v987
      %v996 = vmul.f32 %v972, %v988
      %v997 = vmul.f32 %v974, %v989
      %v998 = vmul.f32 %v976, %v990
      %v999 = vmul.f32 %v978, %v991
      %v1000 = vmul.f32 %v980, %v992
      %v1001 = vmul.f32 %v982, %v993
      %v1002 = vmul.f32 %v984, %v994
      %v1003 = vpack.c.bf16 %v996, %v995
      %v1004 = vpack.c.bf16 %v998, %v997
      %v1005 = vpack.c.bf16 %v1000, %v999
      %v1006 = vpack.c.bf16 %v1002, %v1001
      %v1007 = vld [vmem:[%s362] sm:$0x1]
      %v1008 = vlaneseq
      %v1009 = vshrl.u32 %v1008, 7
      %v1010 = vadd.s32 %v1009, 8
      %v1011 = vadd.s32 %v1009, 16
      %v1012 = vadd.s32 %v1009, 24
      %s1013 = smul.u32 %s372, 32
      %v1014 = vstv %s1013
      %v1015 = vadd.s32 %v1009, %v1014
      %v1016 = vadd.s32 %v1010, %v1014
      %v1017 = vadd.s32 %v1011, %v1014
      %v1018 = vadd.s32 %v1012, %v1014
      %v1019 = vlaneseq
      %v1020 = vshrl.u32 %v1019, 7
      %v1021 = vsub.s32 0, %v1020
      %v1022 = vrot.slane %v1007, %v1021
      %vm1023 = vcmp.eq.s32.totalorder %v1015, %v1022
      %vm1024 = vcmp.eq.s32.totalorder %v1016, %v1022
      %vm1025 = vcmp.eq.s32.totalorder %v1017, %v1022
      %vm1026 = vcmp.eq.s32.totalorder %v1018, %v1022
      %v1027 = vsel %vm1023, 1, 0
      %v1028 = vsel %vm1024, 1, 0
      %v1029 = vsel %vm1025, 1, 0
      %v1030 = vsel %vm1026, 1, 0
      %v1031 = vcvt.s32.f32 %v1027
      %v1032 = vcvt.s32.f32 %v1028
      %v1033 = vcvt.s32.f32 %v1029
      %v1034 = vcvt.s32.f32 %v1030
      %v1035 = vpack.c.bf16 %v1032, %v1031
      %v1036 = vpack.c.bf16 %v1034, %v1033
      %v1037 = vld [vmem:[#allocation4] sm:$0xff]
      %v1038 = vld [vmem:[#allocation4 + $0x8] sm:$0xff]
      %v1039 = vld [vmem:[#allocation4 + $0x10] sm:$0xff]
      %v1040 = vld [vmem:[#allocation4 + $0x18] sm:$0xff]
      %vm1041 = vcmask 523264
      %v1043 = vsel %vm1041, %v1035, 0
      %v1046 = vsel %vm1041, %v1036, 0
      %1048 = vmatprep.subr.bf16.mxu0 0
      %1049 = vmatpush1.bf16.msra.mxu0 %v1003
      %1050 = vmatprep.subr.bf16.mxu0 0
      %1051 = vmatpush1.bf16.msra.mxu0 %v1004
      %1052 = vmatprep.subr.bf16.mxu0 0
      %1053 = vmatpush1.bf16.msra.mxu0 %v1005
      %1054 = vmatprep.subr.bf16.mxu0 0
      %1055 = vmatpush1.bf16.msra.mxu0 %v1006
      %1056 = vmatprep.subr.bf16.mxu0 0
      %1057 = vmatpush1.bf16.msra.mxu0 0
      %1058 = vmatprep.subr.bf16.mxu0 0
      %1059 = vmatpush1.bf16.msra.mxu0 0
      %1060 = vmatprep.subr.bf16.mxu0 0
      %1061 = vmatpush1.bf16.msra.mxu0 0
      %1062 = vmatprep.subr.bf16.mxu0 0
      %1063 = vmatpush1.bf16.msra.mxu0 0
      %1064 = vmatprep.subr.bf16.mxu0 0
      %1065 = vmatpush1.bf16.msra.mxu0 0
      %1066 = vmatprep.subr.bf16.mxu0 0
      %1067 = vmatpush1.bf16.msra.mxu0 0
      %1068 = vmatprep.subr.bf16.mxu0 0
      %1069 = vmatpush1.bf16.msra.mxu0 0
      %1070 = vmatprep.subr.bf16.mxu0 0
      %1071 = vmatpush1.bf16.msra.mxu0 0
      %1072 = vmatprep.subr.bf16.mxu0 0
      %1073 = vmatpush1.bf16.msra.mxu0 0
      %1074 = vmatprep.subr.bf16.mxu0 0
      %1075 = vmatpush1.bf16.msra.mxu0 0
      %1076 = vmatprep.subr.bf16.mxu0 0
      %1077 = vmatpush1.bf16.msra.mxu0 0
      %1078 = vmatprep.subr.bf16.mxu0 0
      %1079 = vmatpush1.bf16.msra.mxu0 0
      %1080 = vmatprep.mubr.bf16.mxu0 0
      %1081 = vmatmul.mubr.bf16.gmra.mrb[0].mxu0 %v1043
      %v1082 = vpop.f32.mrb[0].mxu0
      %v1083 = vadd.f32 0.0, %v1082
      %v1084 = vpop.f32.mrb[0].mxu0
      %v1085 = vpop.f32.mrb[0].mxu0
      %v1086 = vadd.f32 0.0, %v1085
      %v1087 = vpop.f32.mrb[0].mxu0
      %1088 = vmatprep.mubr.bf16.mxu0 0
      %1089 = vmatmul.mubr.bf16.gmra.mrb[0].mxu0 %v1046
      %v1090 = vpop.f32.mrb[0].mxu0
      %v1091 = vadd.f32 0.0, %v1090
      %v1092 = vpop.f32.mrb[0].mxu0
      %v1093 = vpop.f32.mrb[0].mxu0
      %v1094 = vadd.f32 0.0, %v1093
      %v1095 = vpop.f32.mrb[0].mxu0
      %1096 = vdwg.mxu0
      %v1097 = vadd.f32 %v1037, %v1083
      %v1098 = vadd.f32 %v1038, %v1086
      %v1099 = vadd.f32 %v1039, %v1091
      %v1100 = vadd.f32 %v1040, %v1094
      %1101 = vst [vmem:[#allocation4] sm:$0xff] %v1097
      %1102 = vst [vmem:[#allocation4 + $0x8] sm:$0xff] %v1098
      %1103 = vst [vmem:[#allocation4 + $0x10] sm:$0xff] %v1099
      %1104 = vst [vmem:[#allocation4 + $0x18] sm:$0xff] %v1100
      %s1105 = sld [smem:[#allocation6 + %s445]]
      %p1106 = scmp.ne.s32.totalorder %s1105, %s372
      // Predicated region
      $region150: #{monet_forward.13} parent=55 // pred_check
        %p1107 = pneg %p1106
      $region151: #{monet_forward.13} parent=55 // pred_check_branch
        %1109 = sbr.rel (%p1107) target = $region153
      $region152: #{monet_forward.13} parent=55 // pred_region
        %v1110 = vld [vmem:[#allocation4] sm:$0xff]
        %v1111 = vld [vmem:[#allocation4 + $0x8] sm:$0xff]
        %v1112 = vld [vmem:[#allocation4 + $0x10] sm:$0xff]
        %v1113 = vld [vmem:[#allocation4 + $0x18] sm:$0xff]
        %v1114 = vld [vmem:[%s9] sm:$0xff]
        %v1115 = vld [vmem:[%s9 + $0x8] sm:$0xff]
        %v1116 = vld [vmem:[%s9 + $0x10] sm:$0xff]
        %v1117 = vld [vmem:[%s9 + $0x18] sm:$0xff]
        %v1118 = vld [vmem:[%s9 + $0x20] sm:$0xff]
        %v1119 = vld [vmem:[%s9 + $0x28] sm:$0xff]
        %v1120 = vld [vmem:[%s9 + $0x30] sm:$0xff]
        %v1121 = vld [vmem:[%s9 + $0x38] sm:$0xff]
        %v1122 = vld [vmem:[%s9 + $0x40] sm:$0xff]
        %v1123 = vld [vmem:[%s9 + $0x48] sm:$0xff]
        %v1124 = vld [vmem:[%s9 + $0x50] sm:$0xff]
        %v1125 = vld [vmem:[%s9 + $0x58] sm:$0xff]
        %v1126 = vld [vmem:[%s9 + $0x60] sm:$0xff]
        %v1127 = vld [vmem:[%s9 + $0x68] sm:$0xff]
        %v1128 = vld [vmem:[%s9 + $0x70] sm:$0xff]
        %v1129 = vld [vmem:[%s9 + $0x78] sm:$0xff]
        %v1130 = vld [vmem:[%s10] sm:$0x1]
        %v1132 = vlaneseq
        %v1133 = vshrl.u32 %v1132, 7
        %v1134 = vsub.s32 0, %v1133
        %v1135 = vrot.slane %v1130, %v1134
        %1137 = vmatprep.subr.mxu0 0.0
        %1138 = vmatpush1.msra.mxu0 %v1114
        %1139 = vmatprep.subr.mxu0 0.0
        %1140 = vmatpush1.msra.mxu0 %v1115
        %1141 = vmatprep.subr.mxu0 0.0
        %1142 = vmatpush1.msra.mxu0 %v1116
        %1143 = vmatprep.subr.mxu0 0.0
        %1144 = vmatpush1.msra.mxu0 %v1117
        %1145 = vmatprep.subr.mxu0 0.0
        %1146 = vmatpush1.msra.mxu0 %v1118
        %1147 = vmatprep.subr.mxu0 0.0
        %1148 = vmatpush1.msra.mxu0 %v1119
        %1149 = vmatprep.subr.mxu0 0.0
        %1150 = vmatpush1.msra.mxu0 %v1120
        %1151 = vmatprep.subr.mxu0 0.0
        %1152 = vmatpush1.msra.mxu0 %v1121
        %1153 = vmatprep.subr.mxu0 0.0
        %1154 = vmatpush1.msra.mxu0 %v1122
        %1155 = vmatprep.subr.mxu0 0.0
        %1156 = vmatpush1.msra.mxu0 %v1123
        %1157 = vmatprep.subr.mxu0 0.0
        %1158 = vmatpush1.msra.mxu0 %v1124
        %1159 = vmatprep.subr.mxu0 0.0
        %1160 = vmatpush1.msra.mxu0 %v1125
        %1161 = vmatprep.subr.mxu0 0.0
        %1162 = vmatpush1.msra.mxu0 %v1126
        %1163 = vmatprep.subr.mxu0 0.0
        %1164 = vmatpush1.msra.mxu0 %v1127
        %1165 = vmatprep.subr.mxu0 0.0
        %1166 = vmatpush1.msra.mxu0 %v1128
        %1167 = vmatprep.subr.mxu0 0.0
        %1168 = vmatpush1.msra.mxu0 %v1129
        %1169 = vmatprep.subr.mxu0 0.0
        %1170 = vmatpush1.msra.mxu0 0.0
        %1171 = vmatprep.subr.mxu0 0.0
        %1172 = vmatpush1.msra.mxu0 0.0
        %1173 = vmatprep.subr.mxu0 0.0
        %1174 = vmatpush1.msra.mxu0 0.0
        %1175 = vmatprep.subr.mxu0 0.0
        %1176 = vmatpush1.msra.mxu0 0.0
        %1177 = vmatprep.subr.mxu0 0.0
        %1178 = vmatpush1.msra.mxu0 0.0
        %1179 = vmatprep.subr.mxu0 0.0
        %1180 = vmatpush1.msra.mxu0 0.0
        %1181 = vmatprep.subr.mxu0 0.0
        %1182 = vmatpush1.msra.mxu0 0.0
        %1183 = vmatprep.subr.mxu0 0.0
        %1184 = vmatpush1.msra.mxu0 0.0
        %1185 = vmatprep.subr.mxu0 0.0
        %1186 = vmatpush1.msra.mxu0 0.0
        %1187 = vmatprep.subr.mxu0 0.0
        %1188 = vmatpush1.msra.mxu0 0.0
        %1189 = vmatprep.subr.mxu0 0.0
        %1190 = vmatpush1.msra.mxu0 0.0
        %1191 = vmatprep.subr.mxu0 0.0
        %1192 = vmatpush1.msra.mxu0 0.0
        %1193 = vmatprep.subr.mxu0 0.0
        %1194 = vmatpush1.msra.mxu0 0.0
        %1195 = vmatprep.subr.mxu0 0.0
        %1196 = vmatpush1.msra.mxu0 0.0
        %1197 = vmatprep.subr.mxu0 0.0
        %1198 = vmatpush1.msra.mxu0 0.0
        %1199 = vmatprep.subr.mxu0 0.0
        %1200 = vmatpush1.msra.mxu0 0.0
        %1201 = vmatprep.mubr.f32.mxu0 0.0
        %1202 = vmatmul.mubr.f32.gmra.mrb[0].mxu0 %v1110
        %v1203 = vpop.f32.mrb[0].mxu0
        %v1204 = vadd.f32 %v1135, %v1203
        %v1205 = vpop.f32.mrb[0].mxu0
        %1206 = vmatprep.mubr.f32.mxu0 0.0
        %1207 = vmatmul.mubr.f32.gmra.mrb[0].mxu0 %v1111
        %v1208 = vpop.f32.mrb[0].mxu0
        %v1209 = vadd.f32 %v1135, %v1208
        %v1210 = vpop.f32.mrb[0].mxu0
        %1211 = vmatprep.mubr.f32.mxu0 0.0
        %1212 = vmatmul.mubr.f32.gmra.mrb[0].mxu0 %v1112
        %v1213 = vpop.f32.mrb[0].mxu0
        %v1214 = vadd.f32 %v1135, %v1213
        %v1215 = vpop.f32.mrb[0].mxu0
        %1216 = vmatprep.mubr.f32.mxu0 0.0
        %1217 = vmatmul.mubr.f32.gmra.mrb[0].mxu0 %v1113
        %v1218 = vpop.f32.mrb[0].mxu0
        %v1219 = vadd.f32 %v1135, %v1218
        %v1220 = vpop.f32.mrb[0].mxu0
        %1221 = vdwg.mxu0
        %v1222 = vmax.f32 %v1204, 0.0
        %v1223 = vmax.f32 %v1209, 0.0
        %v1224 = vmax.f32 %v1214, 0.0
        %v1225 = vmax.f32 %v1219, 0.0
        %v1226 = vpack.c.bf16 %v1223, %v1222
        %v1227 = vpack.c.bf16 %v1225, %v1224
        %v1230 = vunpack.c.l.b16 %v1226
        %v1231 = vunpack.c.h.b16 %v1226
        %v1232 = vunpack.c.l.b16 %v1227
        %v1233 = vunpack.c.h.b16 %v1227
        %v1234 = vpack.c.b16 %v1230, %v1230
        %v1235 = vpack.c.b16 %v1231, %v1231
        %v1236 = vpack.c.b16 %v1232, %v1232
        %v1237 = vpack.c.b16 %v1233, %v1233
        %1242 = vst [vmem:[%s368] sm:$0xf] %v1234
        %1243 = vst [vmem:[%s368 + $0x4] sm:$0xf] %v1235
        %1244 = vst [vmem:[%s368 + $0x8] sm:$0xf] %v1236
        %1245 = vst [vmem:[%s368 + $0xc] sm:$0xf] %v1237
      $region153: #{monet_forward.13} parent=55 // pred_fallthru
        _
      %s1246 = sld [smem:[#allocation6 + %s33]]
      %s1247 = smul.u32 4, %s1246
      %p1248 = scmp.lt.s32.totalorder %s1247, 3
      %s1249 = scalar_select %p1248, %s1247, 3
      %s1250 = smul.addr %s1249, 4
      %s1251 = scalar_lea.vmem %s12, %s1250
      // Predicated region
      $region154: #{monet_forward.13} parent=55 // pred_check
        %p1252 = pneg %p252
      $region155: #{monet_forward.13} parent=55 // pred_check_branch
        %1254 = sbr.rel (%p1252) target = $region157
      $region156: #{monet_forward.13} parent=55 // pred_region
        %s1255 = sld [smem:[#allocation6 + %s33]]
        %s1256 = smul.u32 4, %s1255
      $region157: #{monet_forward.13} parent=55 // pred_fallthru
        _
    $region56: #{monet_forward.13} parent=5 // pred_fallthru
      _
    %p1257 = scmp.le.s32.totalorder 2, %s28
    // Predicated region
    $region158: #{monet_forward.13} parent=5 // pred_check
      %p1258 = pneg %p1257
    $region159: #{monet_forward.13} parent=5 // pred_check_branch
      %1260 = sbr.rel (%p1258) target = $region161
    $region160: #{monet_forward.13} parent=5 // pred_region
      %s1261 = ssub.s32 %s28, 2
      // Predicated region
      $region162: #{monet_forward.13} parent=160 // pred_check
        %p1262 = pneg %p258
      $region163: #{monet_forward.13} parent=160 // pred_check_branch
        %1264 = sbr.rel (%p1262) target = $region165
      $region164: #{monet_forward.13} parent=160 // pred_region
        %s1265 = sld [smem:[#allocation6 + %s34]]
        %s1266 = smul.u32 4, %s1265
        %p1267 = scmp.lt.s32.totalorder %s1266, 3
        %s1268 = scalar_select %p1267, %s1266, 3
        %s1269 = smul.addr %s1268, 4
        %s1270 = scalar_lea.vmem %s12, %s1269
      $region165: #{monet_forward.13} parent=160 // pred_fallthru
        _
    $region161: #{monet_forward.13} parent=5 // pred_fallthru
      _
  $region6: #{monet_forward.13} parent=0 // loop_footer
    %s32 = sadd.s32 1, %s28
  $region7: #{monet_forward.13} parent=0 // loop_footer_branch
    %27 = sbr.rel target = $region3
  $region8: #{monet_forward.13} parent=0 // loop_exit
    _
  %1271 = vsyncmov [#allocation3]
  %s1272 = vpop.sfrf %1271
  %p1273 = scmp.eq.s32.totalorder %s1272, 0
  %p1274 = pneg %p1273
  %1276 = shalt.err (%p1274)
  %s1277 = scalar_lea.sflag [#allocation3], 1
  %1278 = vsyncmov %s1277
  %s1279 = vpop.sfrf %1278
  %p1280 = scmp.eq.s32.totalorder %s1279, 0
  %p1281 = pneg %p1280
  %1283 = shalt.err (%p1281)

</llo_original>
